<compile_context>
chip_gen: v5e
topology: v5e:2x2
jax: 0.10.0
libtpu: 0.0.40
codegen_flags: <defaults>
</compile_context>

<pallas_src>
import functools

import jax
import jax.numpy as jnp
from jax.experimental import pallas as pl
from jax.experimental.pallas import tpu as pltpu

NEG_SLOPE = 0.01              # nn.LeakyReLU default
BN_EPS = 1e-5                 # nn.BatchNorm2d default
ACT_DTYPE = jnp.bfloat16      # inter-stage activation / weight dtype
SINGLE_MATMUL_MAX_K = 256     # one 9-tap matmul when 9*Cin <= this (one K tile on v6e/v7x)
FOLD_MAX_C = 128              # fold (W, C) into lanes for stage outputs with C < this


# ----------------------------------------------------------------------------
# Fused stage kernel: (optional MaxPool2x2) + 2x (Conv3x3 + BN + LeakyReLU)
# ----------------------------------------------------------------------------
def _stage_kernel(x_ref, w1_ref, s1_ref, b1_ref, w2_ref, s2_ref, b2_ref,
                  o_ref, pad_ref, patch_ref, *acc_scratch,
                  do_pool, hp, wp, cin, cout, fold_out, single1, single2):
    """One batch element per grid step.

    x_ref    : (1, Hin, Win, Cin)          stage input (bf16, NHWC)
    w*_ref   : (9*Cin_l, Cout)             tap-packed weights, K = (kh*3+kw)*Cin+ci
    s*_ref   : (1, Cout)  f32              gamma / sqrt(running_var + eps)
    b*_ref   : (1, Cout)  f32              beta + (bias - running_mean) * scale
    o_ref    : (1, Hp, Wp*Cout) if fold_out else (1, Hp, Wp, Cout)   (bf16)
    pad_ref  : (Hp+2, Wp+2, Cmax)  VMEM    zero-haloed scratch, reused for the
                                           pooled input and the conv1 output
    patch_ref: (Hp+2, Wp, 3*Cmax)  VMEM    kw-packed patch scratch
    acc_ref  : (Hp*Wp, Cout) f32   VMEM    optional matmul accumulator (kh-loop path)
    """
    acc_ref = acc_scratch[0] if acc_scratch else None

    # ---- zero the 1-pixel halo of the shared padded scratch (4 thin stores) --
    hpad, wpad, cpad = pad_ref.shape
    pad_ref[0:1, :, :] = jnp.zeros((1, wpad, cpad), pad_ref.dtype)
    pad_ref[hpad - 1:hpad, :, :] = jnp.zeros((1, wpad, cpad), pad_ref.dtype)
    pad_ref[:, 0:1, :] = jnp.zeros((hpad, 1, cpad), pad_ref.dtype)
    pad_ref[:, wpad - 1:wpad, :] = jnp.zeros((hpad, 1, cpad), pad_ref.dtype)

    # ---- optional 2x2 max-pool: H pairs first (major dim), then W pairs ------
    x = x_ref[0]                                            # (Hin, Win, Cin)
    if do_pool:
        win = 2 * wp
        xh = x.reshape(hp, 2, win, cin)                     # split major dim only
        xh = jnp.maximum(xh[:, 0, :, :], xh[:, 1, :, :])    # (hp, win, cin)
        xw = xh.reshape(hp, wp, 2, cin)                     # split W (sublane) dim
        x = jnp.maximum(xw[:, :, 0, :], xw[:, :, 1, :])     # (hp, wp, cin)
    pad_ref[1:hp + 1, 1:wp + 1, :cin] = x.astype(pad_ref.dtype)

    # ---- fused conv3x3 (pad=1) + BN(eval) + LeakyReLU -------------------------
    def conv_bn_lrelu(cin_l, w_ref, s_ref, b_ref, single):
        # Build the kw-packed patch ONCE: patch[h, w, kw*cin+c] = pad[h, w+kw, c]
        for kw in range(3):
            patch_ref[:, :, kw * cin_l:(kw + 1) * cin_l] = \
                pad_ref[:, kw:kw + wp, :cin_l]

        if single:
            # All 9 taps in one matmul (K = 9*cin_l): 3x fewer MXU pipelines when
            # K is tiny (early stages).
            p9 = jnp.concatenate(
                [patch_ref[kh:kh + hp, :, :3 * cin_l] for kh in range(3)],
                axis=-1)                                    # (hp, wp, 9*cin_l)
            acc = jnp.dot(p9.reshape(hp * wp, 9 * cin_l), w_ref[:, :],
                          preferred_element_type=jnp.float32)
        else:
            # Wide stages: 3 matmuls with K = 3*cin_l, accumulating into an
            # explicit f32 VMEM scratch (no uncontrolled spills).
            for kh in range(3):
                part = jnp.dot(
                    patch_ref[kh:kh + hp, :, :3 * cin_l].reshape(hp * wp,
                                                                 3 * cin_l),
                    w_ref[kh * 3 * cin_l:(kh + 1) * 3 * cin_l, :],
                    preferred_element_type=jnp.float32)
                if kh == 0:
                    acc_ref[...] = part
                else:
                    acc_ref[...] += part
            acc = acc_ref[...]

        y = acc * s_ref[...] + b_ref[...]                   # f32 epilogue (v5e-safe)
        return jnp.where(y >= 0, y, NEG_SLOPE * y)          # LeakyReLU(0.01)

    # conv1 -> back into the shared padded scratch (channels [:cout])
    y1 = conv_bn_lrelu(cin, w1_ref, s1_ref, b1_ref, single1)
    pad_ref[1:hp + 1, 1:wp + 1, :cout] = (
        y1.astype(pad_ref.dtype).reshape(hp, wp, cout))

    # conv2 -> stage output
    y2 = conv_bn_lrelu(cout, w2_ref, s2_ref, b2_ref, single2)
    y2 = y2.astype(o_ref.dtype).reshape(hp, wp, cout)
    if fold_out:
        # Lane-dense store: assemble (near) 128-lane chunks with static lane
        # concats, then store dense rows into the folded (Hp, Wp*Cout) output.
        group = max(1, 128 // cout)
        for w0 in range(0, wp, group):
            g = min(group, wp - w0)
            chunk = jnp.concatenate([y2[:, w0 + j, :] for j in range(g)],
                                    axis=-1)                # (hp, g*cout)
            o_ref[0, :, w0 * cout:(w0 + g) * cout] = chunk
    else:
        o_ref[0] = y2


# ----------------------------------------------------------------------------
# VMEM budgeting helpers
# ----------------------------------------------------------------------------
def _estimate_stage_vmem(hin, win, cin, hp, wp, cout, cmax):
    bf, f32 = 2, 4
    in_blk = hin * win * cin * bf
    out_blk = hp * max(wp * cout, 128) * bf
    wbytes = 9 * (cin + cout) * cout * bf + 4 * cout * f32
    pad = (hp + 2) * (wp + 2) * cmax * bf
    patch = (hp + 2) * wp * 3 * cmax * bf
    acc = hp * wp * cout * f32
    f32_tmp = 3 * hp * wp * cout * f32          # matmul result + epilogue temps
    patch9 = hp * wp * 9 * cmax * bf            # live patch in the single-matmul path
    # inputs/outputs/weights are double-buffered by the pipeline
    return 2 * (in_blk + out_blk + wbytes) + pad + patch + acc + f32_tmp + patch9


def _vmem_limit_bytes(est_bytes):
    """Raise the scoped-VMEM cap only when needed; cap at ~85% of physical."""
    if est_bytes <= 16 * 2 ** 20:        # fits the most conservative default
        return None
    try:
        phys = pltpu.get_tpu_info().vmem_capacity_bytes
    except Exception:                    # pragma: no cover - conservative fallback
        phys = 64 * 2 ** 20              # assume smallest (v7x) physical VMEM
    return int(phys * 85 // 100)


# ----------------------------------------------------------------------------
# Stage wrapper
# ----------------------------------------------------------------------------
def encoder_stage(x_nhwc, stage_params, *, do_pool):
    """x_nhwc: (B, Hin, Win, Cin) bf16 -> folded (B, Hp, Wp*Cout) or NHWC bf16."""
    conv1, conv2 = stage_params
    B, hin, win, cin = x_nhwc.shape
    cout = conv1["scale"].shape[-1]

    if do_pool:
        # PyTorch MaxPool2d(2) floors odd spatial dims: crop explicitly.
        he, we = (hin // 2) * 2, (win // 2) * 2
        if (he, we) != (hin, win):
            x_nhwc = x_nhwc[:, :he, :we, :]
            hin, win = he, we
        hp, wp = hin // 2, win // 2
    else:
        hp, wp = hin, win

    cmax = max(cin, cout)
    single1 = 9 * cin <= SINGLE_MATMUL_MAX_K
    single2 = 9 * cout <= SINGLE_MATMUL_MAX_K
    need_acc = (not single1) or (not single2)
    fold_out = cout < FOLD_MAX_C

    kernel = functools.partial(
        _stage_kernel, do_pool=do_pool, hp=hp, wp=wp, cin=cin, cout=cout,
        fold_out=fold_out, single1=single1, single2=single2)

    if fold_out:
        out_shape = jax.ShapeDtypeStruct((B, hp, wp * cout), ACT_DTYPE)
        out_spec = pl.BlockSpec((1, hp, wp * cout), lambda b: (b, 0, 0))
    else:
        out_shape = jax.ShapeDtypeStruct((B, hp, wp, cout), ACT_DTYPE)
        out_spec = pl.BlockSpec((1, hp, wp, cout), lambda b: (b, 0, 0, 0))

    scratch = [pltpu.VMEM((hp + 2, wp + 2, cmax), ACT_DTYPE),   # pooled in / conv1 out + halo
               pltpu.VMEM((hp + 2, wp, 3 * cmax), ACT_DTYPE)]   # kw-packed patch
    if need_acc:
        scratch.append(pltpu.VMEM((hp * wp, cout), jnp.float32))

    est = _estimate_stage_vmem(hin, win, cin, hp, wp, cout, cmax)
    flops = 2 * B * hp * wp * 9 * (cin * cout + cout * cout)
    bytes_accessed = (B * (hin * win * cin + hp * wp * cout) * 2
                      + 9 * (cin + cout) * cout * 2 + 4 * cout * 4)

    out = pl.pallas_call(
        kernel,
        out_shape=out_shape,
        grid=(B,),
        in_specs=[
            pl.BlockSpec((1, hin, win, cin), lambda b: (b, 0, 0, 0)),
            pl.BlockSpec((9 * cin, cout), lambda b: (0, 0)),
            pl.BlockSpec((1, cout), lambda b: (0, 0)),
            pl.BlockSpec((1, cout), lambda b: (0, 0)),
            pl.BlockSpec((9 * cout, cout), lambda b: (0, 0)),
            pl.BlockSpec((1, cout), lambda b: (0, 0)),
            pl.BlockSpec((1, cout), lambda b: (0, 0)),
        ],
        out_specs=out_spec,
        scratch_shapes=scratch,
        compiler_params=pltpu.CompilerParams(
            dimension_semantics=("parallel",),
            vmem_limit_bytes=_vmem_limit_bytes(est)),
        cost_estimate=pl.CostEstimate(
            flops=int(flops), transcendentals=0,
            bytes_accessed=int(bytes_accessed)),
    )(x_nhwc, conv1["w"], conv1["scale"], conv1["shift"],
      conv2["w"], conv2["scale"], conv2["shift"])

    return out, (hp, wp, cout, fold_out)


# ----------------------------------------------------------------------------
# Parameter init (deterministic, synthetic) — BN folded, 9 taps K-packed, bf16
# ----------------------------------------------------------------------------
def init_unet_encoder_params(key, in_channels=2, base_channels=32, num_downs=3):
    channels_stages_out = [base_channels * 2 ** i for i in range(num_downs + 1)]
    params = []
    cin_prev = in_channels
    for cout in channels_stages_out:
        stage = []
        # MultiConv2d with n_conv=2: conv channels [cin_prev, cout, cout]
        for cin in (cin_prev, cout):
            key, k1, k2, k3, k4, k5, k6 = jax.random.split(key, 7)
            w = jax.random.normal(k1, (3, 3, cin, cout), jnp.float32)
            w = w * (1.0 / jnp.sqrt(9.0 * cin))
            bias = 0.01 * jax.random.normal(k2, (cout,), jnp.float32)
            gamma = 1.0 + 0.1 * jax.random.normal(k3, (cout,), jnp.float32)
            beta = 0.1 * jax.random.normal(k4, (cout,), jnp.float32)
            r_mean = 0.1 * jax.random.normal(k5, (cout,), jnp.float32)
            r_var = 1.0 + 0.1 * jax.random.uniform(k6, (cout,), jnp.float32)
            inv_std = 1.0 / jnp.sqrt(r_var + BN_EPS)
            scale = (gamma * inv_std).reshape(1, cout).astype(jnp.float32)
            shift = (beta + (bias - r_mean) * gamma * inv_std
                     ).reshape(1, cout).astype(jnp.float32)
            # (3, 3, cin, cout) -> (9*cin, cout): K index = (kh*3 + kw)*cin + ci,
            # matching the in-kernel kw-packed patch / kh row slicing.
            w_packed = w.reshape(9 * cin, cout).astype(ACT_DTYPE)
            stage.append({"w": w_packed, "scale": scale, "shift": shift})
        params.append(stage)
        cin_prev = cout
    return params


# ----------------------------------------------------------------------------
# UNetEncoder2d forward
# ----------------------------------------------------------------------------
def unet_encoder2d_forward(x_nchw, params, *, channels_last_out=False):
    """x_nchw: (B, C_in, H, W) -> list of stage outputs (NCHW by default)."""
    B = x_nchw.shape[0]
    x = jnp.transpose(x_nchw, (0, 2, 3, 1)).astype(ACT_DTYPE)   # -> NHWC once
    xs = []
    for i, stage in enumerate(params):
        y, (hp, wp, cout, folded) = encoder_stage(x, stage, do_pool=(i > 0))
        # Folded (B, Hp, Wp*Cout) -> NHWC is a free metadata reshape.
        y_nhwc = y.reshape(B, hp, wp, cout) if folded else y
        xs.append(y_nhwc if channels_last_out
                  else jnp.transpose(y_nhwc, (0, 3, 1, 2)))
        x = y_nhwc
    return xs


# ----------------------------------------------------------------------------
if __name__ == "__main__":
    key = jax.random.PRNGKey(0)
    k_params, k_x = jax.random.split(key)

    # Small shapes consistent with the module (in_channels=2, num_downs=3).
    B, C_IN, H, W = 2, 2, 16, 16
    BASE_CH, NUM_DOWNS = 8, 3

    params = init_unet_encoder_params(
        k_params, in_channels=C_IN, base_channels=BASE_CH, num_downs=NUM_DOWNS)
    x = jax.random.normal(k_x, (B, C_IN, H, W), jnp.float32)

    xs = unet_encoder2d_forward(x, params)
    xs = jax.block_until_ready(xs)

    expected = [(B, BASE_CH * 2 ** i, H // 2 ** i, W // 2 ** i)
                for i in range(NUM_DOWNS + 1)]
    assert [tuple(o.shape) for o in xs] == expected, \
        f"got {[o.shape for o in xs]}, want {expected}"
    assert all(bool(jnp.all(jnp.isfinite(o.astype(jnp.float32)))) for o in xs)

    print("KERNEL_OK")
</pallas_src>

<mosaic_0001>
module attributes {stable_mosaic.version = 11 : i64} {
  func.func @_stage_kernel(%arg0: i32, %arg1: memref<1x16x16x2xbf16, #tpu.memory_space<vmem>>, %arg2: memref<18x8xbf16, #tpu.memory_space<vmem>>, %arg3: memref<1x8xf32, #tpu.memory_space<vmem>>, %arg4: memref<1x8xf32, #tpu.memory_space<vmem>>, %arg5: memref<72x8xbf16, #tpu.memory_space<vmem>>, %arg6: memref<1x8xf32, #tpu.memory_space<vmem>>, %arg7: memref<1x8xf32, #tpu.memory_space<vmem>>, %arg8: memref<1x16x128xbf16, #tpu.memory_space<vmem>>, %arg9: memref<18x18x8xbf16, #tpu.memory_space<vmem>>, %arg10: memref<18x16x24xbf16, #tpu.memory_space<vmem>>) attributes {dimension_semantics = [#tpu.dimension_semantics<parallel>], iteration_bounds = array<i64: 2>, scalar_prefetch = 0 : i64, scratch_operands = 2 : i64, tpu.core_type = #tpu.core_type<tc>, window_params = [{transform_indices = @transform_0, window_bounds = array<i64: 1, 16, 16, 2>}, {pipeline_mode = #tpu.pipeline_mode<synchronous>, transform_indices = @transform_1, window_bounds = array<i64: 18, 8>}, {pipeline_mode = #tpu.pipeline_mode<synchronous>, transform_indices = @transform_2, window_bounds = array<i64: 1, 8>}, {pipeline_mode = #tpu.pipeline_mode<synchronous>, transform_indices = @transform_3, window_bounds = array<i64: 1, 8>}, {pipeline_mode = #tpu.pipeline_mode<synchronous>, transform_indices = @transform_4, window_bounds = array<i64: 72, 8>}, {pipeline_mode = #tpu.pipeline_mode<synchronous>, transform_indices = @transform_5, window_bounds = array<i64: 1, 8>}, {pipeline_mode = #tpu.pipeline_mode<synchronous>, transform_indices = @transform_6, window_bounds = array<i64: 1, 8>}, {transform_indices = @transform_7, window_bounds = array<i64: 1, 16, 128>}]} {
    %cst = arith.constant 0.000000e+00 : bf16
    %0 = vector.broadcast %cst : bf16 to vector<1x18x8xbf16>
    %c0 = arith.constant 0 : index
    %c0_0 = arith.constant 0 : index
    %c0_1 = arith.constant 0 : index
    %1 = vector.load %arg9[%c0, %c0_0, %c0_1] : memref<18x18x8xbf16, #tpu.memory_space<vmem>>, vector<1x18x8xbf16>
    tpu.vector_store %arg9[%c0, %c0_0, %c0_1], %0 {strides = array<i32>} : memref<18x18x8xbf16, #tpu.memory_space<vmem>>, vector<1x18x8xbf16>,
    %cst_2 = arith.constant 0.000000e+00 : bf16
    %2 = vector.broadcast %cst_2 : bf16 to vector<1x18x8xbf16>
    %c17 = arith.constant 17 : index
    %c0_3 = arith.constant 0 : index
    %c0_4 = arith.constant 0 : index
    %3 = vector.load %arg9[%c17, %c0_3, %c0_4] : memref<18x18x8xbf16, #tpu.memory_space<vmem>>, vector<1x18x8xbf16>
    tpu.vector_store %arg9[%c17, %c0_3, %c0_4], %2 {strides = array<i32>} : memref<18x18x8xbf16, #tpu.memory_space<vmem>>, vector<1x18x8xbf16>,
    %cst_5 = arith.constant 0.000000e+00 : bf16
    %4 = vector.broadcast %cst_5 : bf16 to vector<18x1x8xbf16>
    %c0_6 = arith.constant 0 : index
    %c0_7 = arith.constant 0 : index
    %c0_8 = arith.constant 0 : index
    %5 = vector.load %arg9[%c0_6, %c0_7, %c0_8] : memref<18x18x8xbf16, #tpu.memory_space<vmem>>, vector<18x1x8xbf16>
    tpu.vector_store %arg9[%c0_6, %c0_7, %c0_8], %4 {strides = array<i32>} : memref<18x18x8xbf16, #tpu.memory_space<vmem>>, vector<18x1x8xbf16>,
    %cst_9 = arith.constant 0.000000e+00 : bf16
    %6 = vector.broadcast %cst_9 : bf16 to vector<18x1x8xbf16>
    %c0_10 = arith.constant 0 : index
    %c17_11 = arith.constant 17 : index
    %c0_12 = arith.constant 0 : index
    %7 = vector.load %arg9[%c0_10, %c17_11, %c0_12] : memref<18x18x8xbf16, #tpu.memory_space<vmem>>, vector<18x1x8xbf16>
    tpu.vector_store %arg9[%c0_10, %c17_11, %c0_12], %6 {strides = array<i32>} : memref<18x18x8xbf16, #tpu.memory_space<vmem>>, vector<18x1x8xbf16>,
    %c0_13 = arith.constant 0 : index
    %c0_14 = arith.constant 0 : index
    %c0_15 = arith.constant 0 : index
    %c0_16 = arith.constant 0 : index
    %8 = vector.load %arg1[%c0_13, %c0_14, %c0_15, %c0_16] : memref<1x16x16x2xbf16, #tpu.memory_space<vmem>>, vector<1x16x16x2xbf16>
    %9 = vector.shape_cast %8 : vector<1x16x16x2xbf16> to vector<16x16x2xbf16>
    %c1 = arith.constant 1 : index
    %c1_17 = arith.constant 1 : index
    %c0_18 = arith.constant 0 : index
    %10 = vector.load %arg9[%c1, %c1_17, %c0_18] : memref<18x18x8xbf16, #tpu.memory_space<vmem>>, vector<16x16x2xbf16>
    tpu.vector_store %arg9[%c1, %c1_17, %c0_18], %9 {strides = array<i32>} : memref<18x18x8xbf16, #tpu.memory_space<vmem>>, vector<16x16x2xbf16>,
    %c0_19 = arith.constant 0 : index
    %c0_20 = arith.constant 0 : index
    %c0_21 = arith.constant 0 : index
    %11 = vector.load %arg9[%c0_19, %c0_20, %c0_21] : memref<18x18x8xbf16, #tpu.memory_space<vmem>>, vector<18x16x2xbf16>
    %c0_22 = arith.constant 0 : index
    %c0_23 = arith.constant 0 : index
    %c0_24 = arith.constant 0 : index
    %12 = vector.load %arg10[%c0_22, %c0_23, %c0_24] : memref<18x16x24xbf16, #tpu.memory_space<vmem>>, vector<18x16x2xbf16>
    tpu.vector_store %arg10[%c0_22, %c0_23, %c0_24], %11 {strides = array<i32>} : memref<18x16x24xbf16, #tpu.memory_space<vmem>>, vector<18x16x2xbf16>,
    %c0_25 = arith.constant 0 : index
    %c1_26 = arith.constant 1 : index
    %c0_27 = arith.constant 0 : index
    %13 = vector.load %arg9[%c0_25, %c1_26, %c0_27] : memref<18x18x8xbf16, #tpu.memory_space<vmem>>, vector<18x16x2xbf16>
    %c0_28 = arith.constant 0 : index
    %c0_29 = arith.constant 0 : index
    %c2 = arith.constant 2 : index
    %14 = vector.load %arg10[%c0_28, %c0_29, %c2] : memref<18x16x24xbf16, #tpu.memory_space<vmem>>, vector<18x16x2xbf16>
    tpu.vector_store %arg10[%c0_28, %c0_29, %c2], %13 {strides = array<i32>} : memref<18x16x24xbf16, #tpu.memory_space<vmem>>, vector<18x16x2xbf16>,
    %c0_30 = arith.constant 0 : index
    %c2_31 = arith.constant 2 : index
    %c0_32 = arith.constant 0 : index
    %15 = vector.load %arg9[%c0_30, %c2_31, %c0_32] : memref<18x18x8xbf16, #tpu.memory_space<vmem>>, vector<18x16x2xbf16>
    %c0_33 = arith.constant 0 : index
    %c0_34 = arith.constant 0 : index
    %c4 = arith.constant 4 : index
    %16 = vector.load %arg10[%c0_33, %c0_34, %c4] : memref<18x16x24xbf16, #tpu.memory_space<vmem>>, vector<18x16x2xbf16>
    tpu.vector_store %arg10[%c0_33, %c0_34, %c4], %15 {strides = array<i32>} : memref<18x16x24xbf16, #tpu.memory_space<vmem>>, vector<18x16x2xbf16>,
    %c0_35 = arith.constant 0 : index
    %c0_36 = arith.constant 0 : index
    %c0_37 = arith.constant 0 : index
    %17 = vector.load %arg10[%c0_35, %c0_36, %c0_37] : memref<18x16x24xbf16, #tpu.memory_space<vmem>>, vector<16x16x6xbf16>
    %c1_38 = arith.constant 1 : index
    %c0_39 = arith.constant 0 : index
    %c0_40 = arith.constant 0 : index
    %18 = vector.load %arg10[%c1_38, %c0_39, %c0_40] : memref<18x16x24xbf16, #tpu.memory_space<vmem>>, vector<16x16x6xbf16>
    %c2_41 = arith.constant 2 : index
    %c0_42 = arith.constant 0 : index
    %c0_43 = arith.constant 0 : index
    %19 = vector.load %arg10[%c2_41, %c0_42, %c0_43] : memref<18x16x24xbf16, #tpu.memory_space<vmem>>, vector<16x16x6xbf16>
    %20 = tpu.concatenate %17, %18, %19 in 2 : vector<16x16x6xbf16>, vector<16x16x6xbf16>, vector<16x16x6xbf16> -> vector<16x16x18xbf16>
    %21 = vector.shape_cast %20 : vector<16x16x18xbf16> to vector<256x18xbf16>
    %c0_44 = arith.constant 0 : index
    %c0_45 = arith.constant 0 : index
    %22 = vector.load %arg2[%c0_44, %c0_45] : memref<18x8xbf16, #tpu.memory_space<vmem>>, vector<18x8xbf16>
    %cst_46 = arith.constant dense<0.000000e+00> : vector<256x8xf32>
    %23 = tpu.matmul %21, %22, %cst_46 {dimension_numbers = #tpu.dot_dimension_numbers<[1], [0], [0], [1], [0, 0, 1, 1], [], []>} : vector<256x18xbf16>, vector<18x8xbf16>, vector<256x8xf32> -> vector<256x8xf32>
    %c0_47 = arith.constant 0 : index
    %c0_48 = arith.constant 0 : index
    %24 = vector.load %arg3[%c0_47, %c0_48] : memref<1x8xf32, #tpu.memory_space<vmem>>, vector<1x8xf32>
    %25 = vector.broadcast %24 : vector<1x8xf32> to vector<256x8xf32>
    %26 = arith.mulf %23, %25 : vector<256x8xf32>
    %c0_49 = arith.constant 0 : index
    %c0_50 = arith.constant 0 : index
    %27 = vector.load %arg4[%c0_49, %c0_50] : memref<1x8xf32, #tpu.memory_space<vmem>>, vector<1x8xf32>
    %28 = vector.broadcast %27 : vector<1x8xf32> to vector<256x8xf32>
    %29 = arith.addf %26, %28 : vector<256x8xf32>
    %cst_51 = arith.constant 0.000000e+00 : f32
    %30 = vector.broadcast %cst_51 : f32 to vector<256x8xf32>
    %31 = arith.cmpf oge, %29, %30 : vector<256x8xf32>
    %cst_52 = arith.constant 0.00999999977 : f32
    %32 = vector.broadcast %cst_52 : f32 to vector<256x8xf32>
    %33 = arith.mulf %32, %29 : vector<256x8xf32>
    %34 = arith.select %31, %29, %33 : vector<256x8xi1>, vector<256x8xf32>
    %35 = arith.truncf %34 : vector<256x8xf32> to vector<256x8xbf16>
    %36 = vector.shape_cast %35 : vector<256x8xbf16> to vector<16x16x8xbf16>
    %c1_53 = arith.constant 1 : index
    %c1_54 = arith.constant 1 : index
    %c0_55 = arith.constant 0 : index
    %37 = vector.load %arg9[%c1_53, %c1_54, %c0_55] : memref<18x18x8xbf16, #tpu.memory_space<vmem>>, vector<16x16x8xbf16>
    tpu.vector_store %arg9[%c1_53, %c1_54, %c0_55], %36 {strides = array<i32>} : memref<18x18x8xbf16, #tpu.memory_space<vmem>>, vector<16x16x8xbf16>,
    %c0_56 = arith.constant 0 : index
    %c0_57 = arith.constant 0 : index
    %c0_58 = arith.constant 0 : index
    %38 = vector.load %arg9[%c0_56, %c0_57, %c0_58] : memref<18x18x8xbf16, #tpu.memory_space<vmem>>, vector<18x16x8xbf16>
    %c0_59 = arith.constant 0 : index
    %c0_60 = arith.constant 0 : index
    %c0_61 = arith.constant 0 : index
    %39 = vector.load %arg10[%c0_59, %c0_60, %c0_61] : memref<18x16x24xbf16, #tpu.memory_space<vmem>>, vector<18x16x8xbf16>
    tpu.vector_store %arg10[%c0_59, %c0_60, %c0_61], %38 {strides = array<i32>} : memref<18x16x24xbf16, #tpu.memory_space<vmem>>, vector<18x16x8xbf16>,
    %c0_62 = arith.constant 0 : index
    %c1_63 = arith.constant 1 : index
    %c0_64 = arith.constant 0 : index
    %40 = vector.load %arg9[%c0_62, %c1_63, %c0_64] : memref<18x18x8xbf16, #tpu.memory_space<vmem>>, vector<18x16x8xbf16>
    %c0_65 = arith.constant 0 : index
    %c0_66 = arith.constant 0 : index
    %c8 = arith.constant 8 : index
    %41 = vector.load %arg10[%c0_65, %c0_66, %c8] : memref<18x16x24xbf16, #tpu.memory_space<vmem>>, vector<18x16x8xbf16>
    tpu.vector_store %arg10[%c0_65, %c0_66, %c8], %40 {strides = array<i32>} : memref<18x16x24xbf16, #tpu.memory_space<vmem>>, vector<18x16x8xbf16>,
    %c0_67 = arith.constant 0 : index
    %c2_68 = arith.constant 2 : index
    %c0_69 = arith.constant 0 : index
    %42 = vector.load %arg9[%c0_67, %c2_68, %c0_69] : memref<18x18x8xbf16, #tpu.memory_space<vmem>>, vector<18x16x8xbf16>
    %c0_70 = arith.constant 0 : index
    %c0_71 = arith.constant 0 : index
    %c16 = arith.constant 16 : index
    %43 = vector.load %arg10[%c0_70, %c0_71, %c16] : memref<18x16x24xbf16, #tpu.memory_space<vmem>>, vector<18x16x8xbf16>
    tpu.vector_store %arg10[%c0_70, %c0_71, %c16], %42 {strides = array<i32>} : memref<18x16x24xbf16, #tpu.memory_space<vmem>>, vector<18x16x8xbf16>,
    %c0_72 = arith.constant 0 : index
    %c0_73 = arith.constant 0 : index
    %c0_74 = arith.constant 0 : index
    %44 = vector.load %arg10[%c0_72, %c0_73, %c0_74] : memref<18x16x24xbf16, #tpu.memory_space<vmem>>, vector<16x16x24xbf16>
    %c1_75 = arith.constant 1 : index
    %c0_76 = arith.constant 0 : index
    %c0_77 = arith.constant 0 : index
    %45 = vector.load %arg10[%c1_75, %c0_76, %c0_77] : memref<18x16x24xbf16, #tpu.memory_space<vmem>>, vector<16x16x24xbf16>
    %c2_78 = arith.constant 2 : index
    %c0_79 = arith.constant 0 : index
    %c0_80 = arith.constant 0 : index
    %46 = vector.load %arg10[%c2_78, %c0_79, %c0_80] : memref<18x16x24xbf16, #tpu.memory_space<vmem>>, vector<16x16x24xbf16>
    %47 = tpu.concatenate %44, %45, %46 in 2 : vector<16x16x24xbf16>, vector<16x16x24xbf16>, vector<16x16x24xbf16> -> vector<16x16x72xbf16>
    %48 = vector.shape_cast %47 : vector<16x16x72xbf16> to vector<256x72xbf16>
    %c0_81 = arith.constant 0 : index
    %c0_82 = arith.constant 0 : index
    %49 = vector.load %arg5[%c0_81, %c0_82] : memref<72x8xbf16, #tpu.memory_space<vmem>>, vector<72x8xbf16>
    %cst_83 = arith.constant dense<0.000000e+00> : vector<256x8xf32>
    %50 = tpu.matmul %48, %49, %cst_83 {dimension_numbers = #tpu.dot_dimension_numbers<[1], [0], [0], [1], [0, 0, 1, 1], [], []>} : vector<256x72xbf16>, vector<72x8xbf16>, vector<256x8xf32> -> vector<256x8xf32>
    %c0_84 = arith.constant 0 : index
    %c0_85 = arith.constant 0 : index
    %51 = vector.load %arg6[%c0_84, %c0_85] : memref<1x8xf32, #tpu.memory_space<vmem>>, vector<1x8xf32>
    %52 = vector.broadcast %51 : vector<1x8xf32> to vector<256x8xf32>
    %53 = arith.mulf %50, %52 : vector<256x8xf32>
    %c0_86 = arith.constant 0 : index
    %c0_87 = arith.constant 0 : index
    %54 = vector.load %arg7[%c0_86, %c0_87] : memref<1x8xf32, #tpu.memory_space<vmem>>, vector<1x8xf32>
    %55 = vector.broadcast %54 : vector<1x8xf32> to vector<256x8xf32>
    %56 = arith.addf %53, %55 : vector<256x8xf32>
    %cst_88 = arith.constant 0.000000e+00 : f32
    %57 = vector.broadcast %cst_88 : f32 to vector<256x8xf32>
    %58 = arith.cmpf oge, %56, %57 : vector<256x8xf32>
    %cst_89 = arith.constant 0.00999999977 : f32
    %59 = vector.broadcast %cst_89 : f32 to vector<256x8xf32>
    %60 = arith.mulf %59, %56 : vector<256x8xf32>
    %61 = arith.select %58, %56, %60 : vector<256x8xi1>, vector<256x8xf32>
    %62 = arith.truncf %61 : vector<256x8xf32> to vector<256x8xbf16>
    %63 = vector.shape_cast %62 : vector<256x8xbf16> to vector<16x16x8xbf16>
    %64 = vector.extract_strided_slice %63 {offsets = [0, 0, 0], sizes = [16, 1, 8], strides = [1, 1, 1]} : vector<16x16x8xbf16> to vector<16x1x8xbf16>
    %65 = vector.shape_cast %64 : vector<16x1x8xbf16> to vector<16x8xbf16>
    %66 = vector.extract_strided_slice %63 {offsets = [0, 1, 0], sizes = [16, 1, 8], strides = [1, 1, 1]} : vector<16x16x8xbf16> to vector<16x1x8xbf16>
    %67 = vector.shape_cast %66 : vector<16x1x8xbf16> to vector<16x8xbf16>
    %68 = vector.extract_strided_slice %63 {offsets = [0, 2, 0], sizes = [16, 1, 8], strides = [1, 1, 1]} : vector<16x16x8xbf16> to vector<16x1x8xbf16>
    %69 = vector.shape_cast %68 : vector<16x1x8xbf16> to vector<16x8xbf16>
    %70 = vector.extract_strided_slice %63 {offsets = [0, 3, 0], sizes = [16, 1, 8], strides = [1, 1, 1]} : vector<16x16x8xbf16> to vector<16x1x8xbf16>
    %71 = vector.shape_cast %70 : vector<16x1x8xbf16> to vector<16x8xbf16>
    %72 = vector.extract_strided_slice %63 {offsets = [0, 4, 0], sizes = [16, 1, 8], strides = [1, 1, 1]} : vector<16x16x8xbf16> to vector<16x1x8xbf16>
    %73 = vector.shape_cast %72 : vector<16x1x8xbf16> to vector<16x8xbf16>
    %74 = vector.extract_strided_slice %63 {offsets = [0, 5, 0], sizes = [16, 1, 8], strides = [1, 1, 1]} : vector<16x16x8xbf16> to vector<16x1x8xbf16>
    %75 = vector.shape_cast %74 : vector<16x1x8xbf16> to vector<16x8xbf16>
    %76 = vector.extract_strided_slice %63 {offsets = [0, 6, 0], sizes = [16, 1, 8], strides = [1, 1, 1]} : vector<16x16x8xbf16> to vector<16x1x8xbf16>
    %77 = vector.shape_cast %76 : vector<16x1x8xbf16> to vector<16x8xbf16>
    %78 = vector.extract_strided_slice %63 {offsets = [0, 7, 0], sizes = [16, 1, 8], strides = [1, 1, 1]} : vector<16x16x8xbf16> to vector<16x1x8xbf16>
    %79 = vector.shape_cast %78 : vector<16x1x8xbf16> to vector<16x8xbf16>
    %80 = vector.extract_strided_slice %63 {offsets = [0, 8, 0], sizes = [16, 1, 8], strides = [1, 1, 1]} : vector<16x16x8xbf16> to vector<16x1x8xbf16>
    %81 = vector.shape_cast %80 : vector<16x1x8xbf16> to vector<16x8xbf16>
    %82 = vector.extract_strided_slice %63 {offsets = [0, 9, 0], sizes = [16, 1, 8], strides = [1, 1, 1]} : vector<16x16x8xbf16> to vector<16x1x8xbf16>
    %83 = vector.shape_cast %82 : vector<16x1x8xbf16> to vector<16x8xbf16>
    %84 = vector.extract_strided_slice %63 {offsets = [0, 10, 0], sizes = [16, 1, 8], strides = [1, 1, 1]} : vector<16x16x8xbf16> to vector<16x1x8xbf16>
    %85 = vector.shape_cast %84 : vector<16x1x8xbf16> to vector<16x8xbf16>
    %86 = vector.extract_strided_slice %63 {offsets = [0, 11, 0], sizes = [16, 1, 8], strides = [1, 1, 1]} : vector<16x16x8xbf16> to vector<16x1x8xbf16>
    %87 = vector.shape_cast %86 : vector<16x1x8xbf16> to vector<16x8xbf16>
    %88 = vector.extract_strided_slice %63 {offsets = [0, 12, 0], sizes = [16, 1, 8], strides = [1, 1, 1]} : vector<16x16x8xbf16> to vector<16x1x8xbf16>
    %89 = vector.shape_cast %88 : vector<16x1x8xbf16> to vector<16x8xbf16>
    %90 = vector.extract_strided_slice %63 {offsets = [0, 13, 0], sizes = [16, 1, 8], strides = [1, 1, 1]} : vector<16x16x8xbf16> to vector<16x1x8xbf16>
    %91 = vector.shape_cast %90 : vector<16x1x8xbf16> to vector<16x8xbf16>
    %92 = vector.extract_strided_slice %63 {offsets = [0, 14, 0], sizes = [16, 1, 8], strides = [1, 1, 1]} : vector<16x16x8xbf16> to vector<16x1x8xbf16>
    %93 = vector.shape_cast %92 : vector<16x1x8xbf16> to vector<16x8xbf16>
    %94 = vector.extract_strided_slice %63 {offsets = [0, 15, 0], sizes = [16, 1, 8], strides = [1, 1, 1]} : vector<16x16x8xbf16> to vector<16x1x8xbf16>
    %95 = vector.shape_cast %94 : vector<16x1x8xbf16> to vector<16x8xbf16>
    %96 = tpu.concatenate %65, %67, %69, %71, %73, %75, %77, %79, %81, %83, %85, %87, %89, %91, %93, %95 in 1 : vector<16x8xbf16>, vector<16x8xbf16>, vector<16x8xbf16>, vector<16x8xbf16>, vector<16x8xbf16>, vector<16x8xbf16>, vector<16x8xbf16>, vector<16x8xbf16>, vector<16x8xbf16>, vector<16x8xbf16>, vector<16x8xbf16>, vector<16x8xbf16>, vector<16x8xbf16>, vector<16x8xbf16>, vector<16x8xbf16>, vector<16x8xbf16> -> vector<16x128xbf16>
    %c0_90 = arith.constant 0 : index
    %c0_91 = arith.constant 0 : index
    %c0_92 = arith.constant 0 : index
    %97 = vector.load %arg8[%c0_90, %c0_91, %c0_92] : memref<1x16x128xbf16, #tpu.memory_space<vmem>>, vector<1x16x128xbf16>
    %98 = vector.shape_cast %97 : vector<1x16x128xbf16> to vector<16x128xbf16>
    %99 = vector.shape_cast %96 : vector<16x128xbf16> to vector<1x16x128xbf16>
    tpu.vector_store %arg8[%c0_90, %c0_91, %c0_92], %99 {strides = array<i32>} : memref<1x16x128xbf16, #tpu.memory_space<vmem>>, vector<1x16x128xbf16>,
    return
  }
  func.func @transform_0(%arg0: i32) -> (i32, i32, i32, i32) {
    %c0_i32 = arith.constant 0 : i32
    %c0_i32_0 = arith.constant 0 : i32
    %c0_i32_1 = arith.constant 0 : i32
    %c0_i32_2 = arith.constant 0 : i32
    return %arg0, %c0_i32, %c0_i32_0, %c0_i32_1 : i32, i32, i32, i32
  }
  func.func @transform_1(%arg0: i32) -> (i32, i32) {
    %c0_i32 = arith.constant 0 : i32
    %c0_i32_0 = arith.constant 0 : i32
    %c0_i32_1 = arith.constant 0 : i32
    return %c0_i32, %c0_i32_0 : i32, i32
  }
  func.func @transform_2(%arg0: i32) -> (i32, i32) {
    %c0_i32 = arith.constant 0 : i32
    %c0_i32_0 = arith.constant 0 : i32
    %c0_i32_1 = arith.constant 0 : i32
    return %c0_i32, %c0_i32_0 : i32, i32
  }
  func.func @transform_3(%arg0: i32) -> (i32, i32) {
    %c0_i32 = arith.constant 0 : i32
    %c0_i32_0 = arith.constant 0 : i32
    %c0_i32_1 = arith.constant 0 : i32
    return %c0_i32, %c0_i32_0 : i32, i32
  }
  func.func @transform_4(%arg0: i32) -> (i32, i32) {
    %c0_i32 = arith.constant 0 : i32
    %c0_i32_0 = arith.constant 0 : i32
    %c0_i32_1 = arith.constant 0 : i32
    return %c0_i32, %c0_i32_0 : i32, i32
  }
  func.func @transform_5(%arg0: i32) -> (i32, i32) {
    %c0_i32 = arith.constant 0 : i32
    %c0_i32_0 = arith.constant 0 : i32
    %c0_i32_1 = arith.constant 0 : i32
    return %c0_i32, %c0_i32_0 : i32, i32
  }
  func.func @transform_6(%arg0: i32) -> (i32, i32) {
    %c0_i32 = arith.constant 0 : i32
    %c0_i32_0 = arith.constant 0 : i32
    %c0_i32_1 = arith.constant 0 : i32
    return %c0_i32, %c0_i32_0 : i32, i32
  }
  func.func @transform_7(%arg0: i32) -> (i32, i32, i32) {
    %c0_i32 = arith.constant 0 : i32
    %c0_i32_0 = arith.constant 0 : i32
    %c0_i32_1 = arith.constant 0 : i32
    return %arg0, %c0_i32, %c0_i32_0 : i32, i32, i32
  }
}

</mosaic_0001>

<llo_original>
// kernel: tpu_custom_call.1
$region0: #{tpu_custom_call.1}
  #allocation0 [shape = 'u32[]', space=smem, size = 0x4, offset = 0x4, fixed_abs, tag = 'smem constant byte address 0x4 - core index']
  #allocation1 [shape = 'u32[72,128]{1,0:T(1,128)}', space=vmem, size = 0x9000, scoped, tag = 'internal scratch']
  #allocation2 [shape = 'bf16[18,18,8]{2,1,0:T(8,128)(2,1)}', space=vmem, size = 0x1b000, scoped, tag = 'scratch operand']
  #allocation3 [shape = 'bf16[18,16,24]{2,1,0:T(8,128)(2,1)}', space=vmem, size = 0x12000, scoped, tag = 'scratch operand']
  %s0 = inlined_call_operand.vmem [shape: bf16[2,16,16,2], index: 0, kind: input, shape index: {}]
  %s1 = inlined_call_operand.vmem [shape: bf16[18,8], index: 1, kind: input, shape index: {}]
  %s2 = inlined_call_operand.vmem [shape: f32[1,8], index: 2, kind: input, shape index: {}]
  %s3 = inlined_call_operand.vmem [shape: f32[1,8], index: 3, kind: input, shape index: {}]
  %s4 = inlined_call_operand.vmem [shape: bf16[72,8], index: 4, kind: input, shape index: {}]
  %s5 = inlined_call_operand.vmem [shape: f32[1,8], index: 5, kind: input, shape index: {}]
  %s6 = inlined_call_operand.vmem [shape: f32[1,8], index: 6, kind: input, shape index: {}]
  %s7 = inlined_call_operand.hbm [shape: bf16[2,16,128], index: 7, kind: output, shape index: {}]
  %s8 = sld [smem:[#allocation0]]
  $region61: #{tpu_custom_call.1} parent=0
    _
  %s10 = ssub.s32 1, %s8
  %s11 = scalar_select 0, %s10, %s8
  $region1: #{tpu_custom_call.1} parent=0
    #allocation4 [shape = 'u8[8192]{0}', space=vmem, size = 0x2000, scoped, tag = 'output window, operand 0']
    #allocation5 [shape = 's32[2]{0}', space=sflag, size = 0x8, scoped, tag = 'scoped memory for tpu_custom_call.1']
    %12 = vsyncpa [#allocation5], 0
    %s13 = scalar_lea.sflag [#allocation5], 1
    %14 = vsyncpa %s13, 0
    loop: start=0, step=1, limit=4
    $region2: #{tpu_custom_call.1} parent=1 // loop_pre_header
      _
    $region3: #{tpu_custom_call.1} parent=1 // loop_header
      %s16 = sphi 0, %s20
      %p17 = scmp.ge.s32.totalorder %s16, 4
      %s26 = sphi 0, %s28
      %s29 = sphi 0, %s26
      %s30 = sphi 0, %s29
      %s46 = sphi 0, %s30
      %s50 = sphi 0, %s50
      %s52 = sphi 0, %s50
      %s53 = sphi 0, %s52
      %s67 = sphi 0, %s53
      %s71 = sphi 0, %s71
      %s73 = sphi 0, %s71
      %s74 = sphi 0, %s73
      %s88 = sphi 0, %s74
      %s92 = sphi 0, %s92
      %s94 = sphi 0, %s92
      %s95 = sphi 0, %s94
      %s109 = sphi 0, %s95
      %s113 = sphi 0, %s113
      %s115 = sphi 0, %s113
      %s116 = sphi 0, %s115
      %s130 = sphi 0, %s116
      %s134 = sphi 0, %s134
      %s136 = sphi 0, %s134
      %s137 = sphi 0, %s136
      %s151 = sphi 0, %s137
      %s155 = sphi 0, %s155
      %s157 = sphi 0, %s155
      %s158 = sphi 0, %s157
      %s172 = sphi 0, %s158
      %s178 = sphi 0, %s180
      %s181 = sphi 0, %s178
      %s182 = sphi 0, %s181
      %s198 = sphi 0, %s182
    $region4: #{tpu_custom_call.1} parent=1 // loop_header_branch
      %19 = sbr.rel (%p17) target = $region8
    $region5: #{tpu_custom_call.1} parent=1 // loop_body
      %s21 = ssub.s32 %s16, 1
      %s22 = ssub.s32 %s16, 2
      %s23 = sadd.s32 %s16, 1
      %s24 = ssub.s32 %s16, %s23
      %p25 = scmp.eq.s32.totalorder %s24, 0
      %s27 = sadd.s32 %s26, 1
      %s28 = scalar_select %p25, %s26, %s27
      %p31 = pneg %p25
      %p32 = scmp.eq.s32.totalorder %s16, 1
      %p33 = por %p31, %p32
      %p34 = scmp.ne.s32.totalorder %s26, %s29
      %p35 = scmp.eq.s32.totalorder %s16, 0
      %p36 = por %p34, %p35
      %p37 = scmp.ne.s32.totalorder %s26, %s29
      %p38 = scmp.eq.s32.totalorder %s21, 1
      %p39 = por %p37, %p38
      %p40 = scmp.ne.s32.totalorder %s29, %s30
      %p41 = scmp.eq.s32.totalorder %s21, 0
      %p42 = por %p40, %p41
      %p43 = scmp.ne.s32.totalorder %s29, %s30
      %p44 = scmp.eq.s32.totalorder %s22, 1
      %p45 = por %p43, %p44
      %p47 = scmp.ne.s32.totalorder %s30, %s46
      %p48 = scmp.eq.s32.totalorder %s22, 0
      %p49 = por %p47, %p48
      %s51 = sadd.s32 %s50, 1
      %p54 = scmp.eq.s32.totalorder %s16, 1
      %p55 = scmp.ne.s32.totalorder %s50, %s52
      %p56 = scmp.eq.s32.totalorder %s16, 0
      %p57 = por %p55, %p56
      %p58 = scmp.ne.s32.totalorder %s50, %s52
      %p59 = scmp.eq.s32.totalorder %s21, 1
      %p60 = por %p58, %p59
      %p61 = scmp.ne.s32.totalorder %s52, %s53
      %p62 = scmp.eq.s32.totalorder %s21, 0
      %p63 = por %p61, %p62
      %p64 = scmp.ne.s32.totalorder %s52, %s53
      %p65 = scmp.eq.s32.totalorder %s22, 1
      %p66 = por %p64, %p65
      %p68 = scmp.ne.s32.totalorder %s53, %s67
      %p69 = scmp.eq.s32.totalorder %s22, 0
      %p70 = por %p68, %p69
      %s72 = sadd.s32 %s71, 1
      %p75 = scmp.eq.s32.totalorder %s16, 1
      %p76 = scmp.ne.s32.totalorder %s71, %s73
      %p77 = scmp.eq.s32.totalorder %s16, 0
      %p78 = por %p76, %p77
      %p79 = scmp.ne.s32.totalorder %s71, %s73
      %p80 = scmp.eq.s32.totalorder %s21, 1
      %p81 = por %p79, %p80
      %p82 = scmp.ne.s32.totalorder %s73, %s74
      %p83 = scmp.eq.s32.totalorder %s21, 0
      %p84 = por %p82, %p83
      %p85 = scmp.ne.s32.totalorder %s73, %s74
      %p86 = scmp.eq.s32.totalorder %s22, 1
      %p87 = por %p85, %p86
      %p89 = scmp.ne.s32.totalorder %s74, %s88
      %p90 = scmp.eq.s32.totalorder %s22, 0
      %p91 = por %p89, %p90
      %s93 = sadd.s32 %s92, 1
      %p96 = scmp.eq.s32.totalorder %s16, 1
      %p97 = scmp.ne.s32.totalorder %s92, %s94
      %p98 = scmp.eq.s32.totalorder %s16, 0
      %p99 = por %p97, %p98
      %p100 = scmp.ne.s32.totalorder %s92, %s94
      %p101 = scmp.eq.s32.totalorder %s21, 1
      %p102 = por %p100, %p101
      %p103 = scmp.ne.s32.totalorder %s94, %s95
      %p104 = scmp.eq.s32.totalorder %s21, 0
      %p105 = por %p103, %p104
      %p106 = scmp.ne.s32.totalorder %s94, %s95
      %p107 = scmp.eq.s32.totalorder %s22, 1
      %p108 = por %p106, %p107
      %p110 = scmp.ne.s32.totalorder %s95, %s109
      %p111 = scmp.eq.s32.totalorder %s22, 0
      %p112 = por %p110, %p111
      %s114 = sadd.s32 %s113, 1
      %p117 = scmp.eq.s32.totalorder %s16, 1
      %p118 = scmp.ne.s32.totalorder %s113, %s115
      %p119 = scmp.eq.s32.totalorder %s16, 0
      %p120 = por %p118, %p119
      %p121 = scmp.ne.s32.totalorder %s113, %s115
      %p122 = scmp.eq.s32.totalorder %s21, 1
      %p123 = por %p121, %p122
      %p124 = scmp.ne.s32.totalorder %s115, %s116
      %p125 = scmp.eq.s32.totalorder %s21, 0
      %p126 = por %p124, %p125
      %p127 = scmp.ne.s32.totalorder %s115, %s116
      %p128 = scmp.eq.s32.totalorder %s22, 1
      %p129 = por %p127, %p128
      %p131 = scmp.ne.s32.totalorder %s116, %s130
      %p132 = scmp.eq.s32.totalorder %s22, 0
      %p133 = por %p131, %p132
      %s135 = sadd.s32 %s134, 1
      %p138 = scmp.eq.s32.totalorder %s16, 1
      %p139 = scmp.ne.s32.totalorder %s134, %s136
      %p140 = scmp.eq.s32.totalorder %s16, 0
      %p141 = por %p139, %p140
      %p142 = scmp.ne.s32.totalorder %s134, %s136
      %p143 = scmp.eq.s32.totalorder %s21, 1
      %p144 = por %p142, %p143
      %p145 = scmp.ne.s32.totalorder %s136, %s137
      %p146 = scmp.eq.s32.totalorder %s21, 0
      %p147 = por %p145, %p146
      %p148 = scmp.ne.s32.totalorder %s136, %s137
      %p149 = scmp.eq.s32.totalorder %s22, 1
      %p150 = por %p148, %p149
      %p152 = scmp.ne.s32.totalorder %s137, %s151
      %p153 = scmp.eq.s32.totalorder %s22, 0
      %p154 = por %p152, %p153
      %s156 = sadd.s32 %s155, 1
      %p159 = scmp.eq.s32.totalorder %s16, 1
      %p160 = scmp.ne.s32.totalorder %s155, %s157
      %p161 = scmp.eq.s32.totalorder %s16, 0
      %p162 = por %p160, %p161
      %p163 = scmp.ne.s32.totalorder %s155, %s157
      %p164 = scmp.eq.s32.totalorder %s21, 1
      %p165 = por %p163, %p164
      %p166 = scmp.ne.s32.totalorder %s157, %s158
      %p167 = scmp.eq.s32.totalorder %s21, 0
      %p168 = por %p166, %p167
      %p169 = scmp.ne.s32.totalorder %s157, %s158
      %p170 = scmp.eq.s32.totalorder %s22, 1
      %p171 = por %p169, %p170
      %p173 = scmp.ne.s32.totalorder %s158, %s172
      %p174 = scmp.eq.s32.totalorder %s22, 0
      %p175 = por %p173, %p174
      %s176 = ssub.s32 %s16, %s23
      %p177 = scmp.eq.s32.totalorder %s176, 0
      %s179 = sadd.s32 %s178, 1
      %s180 = scalar_select %p177, %s178, %s179
      %p183 = pneg %p177
      %p184 = scmp.eq.s32.totalorder %s16, 1
      %p185 = por %p183, %p184
      %p186 = scmp.ne.s32.totalorder %s178, %s181
      %p187 = scmp.eq.s32.totalorder %s16, 0
      %p188 = por %p186, %p187
      %p189 = scmp.ne.s32.totalorder %s178, %s181
      %p190 = scmp.eq.s32.totalorder %s21, 1
      %p191 = por %p189, %p190
      %p192 = scmp.ne.s32.totalorder %s181, %s182
      %p193 = scmp.eq.s32.totalorder %s21, 0
      %p194 = por %p192, %p193
      %p195 = scmp.ne.s32.totalorder %s181, %s182
      %p196 = scmp.eq.s32.totalorder %s22, 1
      %p197 = por %p195, %p196
      %p199 = scmp.ne.s32.totalorder %s182, %s198
      %p200 = scmp.eq.s32.totalorder %s22, 0
      %p201 = por %p199, %p200
      %p202 = scmp.le.s32.totalorder 1, %s16
      %p203 = scmp.lt.s32.totalorder %s16, 3
      %p204 = pnand %p202, %p203
      %p205 = pneg %p204
      // Predicated region
      $region9: #{tpu_custom_call.1} parent=5 // pred_check
        _
      $region10: #{tpu_custom_call.1} parent=5 // pred_check_branch
        %207 = sbr.rel (%p204) target = $region12
      $region11: #{tpu_custom_call.1} parent=5 // pred_region
        %s208 = ssub.s32 %s16, 1
        // Predicated region
        $region13: #{tpu_custom_call.1} parent=11 // pred_check
          %p209 = pneg %p63
        $region14: #{tpu_custom_call.1} parent=11 // pred_check_branch
          %211 = sbr.rel (%p209) target = $region16
        $region15: #{tpu_custom_call.1} parent=11 // pred_region
          _
        $region16: #{tpu_custom_call.1} parent=11 // pred_fallthru
          _
        // Predicated region
        $region17: #{tpu_custom_call.1} parent=11 // pred_check
          %p212 = pneg %p84
        $region18: #{tpu_custom_call.1} parent=11 // pred_check_branch
          %214 = sbr.rel (%p212) target = $region20
        $region19: #{tpu_custom_call.1} parent=11 // pred_region
          _
        $region20: #{tpu_custom_call.1} parent=11 // pred_fallthru
          _
        // Predicated region
        $region21: #{tpu_custom_call.1} parent=11 // pred_check
          %p215 = pneg %p105
        $region22: #{tpu_custom_call.1} parent=11 // pred_check_branch
          %217 = sbr.rel (%p215) target = $region24
        $region23: #{tpu_custom_call.1} parent=11 // pred_region
          _
        $region24: #{tpu_custom_call.1} parent=11 // pred_fallthru
          _
        // Predicated region
        $region25: #{tpu_custom_call.1} parent=11 // pred_check
          %p218 = pneg %p126
        $region26: #{tpu_custom_call.1} parent=11 // pred_check_branch
          %220 = sbr.rel (%p218) target = $region28
        $region27: #{tpu_custom_call.1} parent=11 // pred_region
          _
        $region28: #{tpu_custom_call.1} parent=11 // pred_fallthru
          _
        // Predicated region
        $region29: #{tpu_custom_call.1} parent=11 // pred_check
          %p221 = pneg %p147
        $region30: #{tpu_custom_call.1} parent=11 // pred_check_branch
          %223 = sbr.rel (%p221) target = $region32
        $region31: #{tpu_custom_call.1} parent=11 // pred_region
          _
        $region32: #{tpu_custom_call.1} parent=11 // pred_fallthru
          _
        // Predicated region
        $region33: #{tpu_custom_call.1} parent=11 // pred_check
          %p224 = pneg %p168
        $region34: #{tpu_custom_call.1} parent=11 // pred_check_branch
          %226 = sbr.rel (%p224) target = $region36
        $region35: #{tpu_custom_call.1} parent=11 // pred_region
          _
        $region36: #{tpu_custom_call.1} parent=11 // pred_fallthru
          _
      $region12: #{tpu_custom_call.1} parent=5 // pred_fallthru
        _
      %p227 = scmp.lt.s32.totalorder %s16, 2
      // Predicated region
      $region37: #{tpu_custom_call.1} parent=5 // pred_check
        %p228 = pneg %p227
      $region38: #{tpu_custom_call.1} parent=5 // pred_check_branch
        %230 = sbr.rel (%p228) target = $region40
      $region39: #{tpu_custom_call.1} parent=5 // pred_region
        // Predicated region
        $region41: #{tpu_custom_call.1} parent=39 // pred_check
          %p231 = pneg %p36
        $region42: #{tpu_custom_call.1} parent=39 // pred_check_branch
          %233 = sbr.rel (%p231) target = $region44
        $region43: #{tpu_custom_call.1} parent=39 // pred_region
          %p234 = scmp.lt.s32.totalorder %s16, 1
          %s235 = scalar_select %p234, %s16, 1
          %s236 = smul.addr %s235, 32
          %s237 = smul.addr %s236, 4
          %s238 = scalar_lea.vmem %s0, %s237
        $region44: #{tpu_custom_call.1} parent=39 // pred_fallthru
          _
      $region40: #{tpu_custom_call.1} parent=5 // pred_fallthru
        _
      %p239 = scmp.le.s32.totalorder 1, %s16
      %p240 = scmp.lt.s32.totalorder %s16, 3
      %p241 = pnand %p239, %p240
      %p242 = pneg %p241
      // Predicated region
      $region45: #{tpu_custom_call.1} parent=5 // pred_check
        _
      $region46: #{tpu_custom_call.1} parent=5 // pred_check_branch
        %244 = sbr.rel (%p241) target = $region48
      $region47: #{tpu_custom_call.1} parent=5 // pred_region
        %s245 = ssub.s32 %s16, 1
        %p246 = scmp.lt.s32.totalorder %s21, 1
        %s247 = scalar_select %p246, %s21, 1
        %s248 = smul.addr %s247, 32
        %s249 = smul.addr %s248, 4
        %s250 = scalar_lea.vmem %s0, %s249
        %p251 = pneg %p42
        %p252 = pneg %p39
        %p253 = pneg %p63
        %p254 = pneg %p60
        %p255 = pneg %p84
        %p256 = pneg %p81
        %p257 = pneg %p105
        %p258 = pneg %p102
        %p259 = pneg %p126
        %p260 = pneg %p123
        %p261 = pneg %p147
        %p262 = pneg %p144
        %p263 = pneg %p168
        %p264 = pneg %p165
        %p265 = pneg %p194
        %p266 = pneg %p191
        %s267 = sand.u32 %s181, 1
        %s268 = scalar_lea.sflag [#allocation5], %s267
        %s269 = sand.u32 %s181, 1
        %s270 = smul.addr %s269, 8
        %s271 = scalar_lea.vmem [#allocation4], %s270
        %p272 = scmp.lt.s32.totalorder %s21, 1
        %s273 = scalar_select %p272, %s21, 1
        %s274 = smul.addr %s273, 32
        %s275 = smul.addr %s274, 4
        %s276 = scalar_lea.vmem %s0, %s275
        %vm278 = vcmask 60416
        %279 = vst.msk [vmem:[#allocation2] sm:$0xf] %vm278, 0
        %280 = vst.msk [vmem:[#allocation2 + $0x4] sm:$0xf] %vm278, 0
        %vm281 = vcmask 57344
        %282 = vst.msk [vmem:[#allocation2 + $0x8] sm:$0x1] %vm281, 0
        %s283 = scalar_lea.vmem [#allocation2], 204
        %284 = vst.msk [vmem:[%s283] sm:$0xf] %vm278, 0
        %285 = vst.msk [vmem:[%s283 + $0x4] sm:$0xf] %vm278, 0
        %286 = vst.msk [vmem:[%s283 + $0x8] sm:$0x1] %vm281, 0
        %vm287 = vcmask 57344
        %vm288 = vsmask.f32 256
        %vm289 = vmand %vm287, %vm288
        %v290 = vld [vmem:[#allocation2] sm:$0x1]
        %v291 = vsel %vm289, 0, %v290
        %292 = vst [vmem:[#allocation2] sm:$0x1] %v291
        %v293 = vld [vmem:[#allocation2 + $0xc] sm:$0x1]
        %v294 = vsel %vm289, 0, %v293
        %295 = vst [vmem:[#allocation2 + $0xc] sm:$0x1] %v294
        %v296 = vld [vmem:[#allocation2 + $0x18] sm:$0x1]
        %v297 = vsel %vm289, 0, %v296
        %298 = vst [vmem:[#allocation2 + $0x18] sm:$0x1] %v297
        %v299 = vld [vmem:[#allocation2 + $0x24] sm:$0x1]
        %v300 = vsel %vm289, 0, %v299
        %301 = vst [vmem:[#allocation2 + $0x24] sm:$0x1] %v300
        %v302 = vld [vmem:[#allocation2 + $0x30] sm:$0x1]
        %v303 = vsel %vm289, 0, %v302
        %304 = vst [vmem:[#allocation2 + $0x30] sm:$0x1] %v303
        %v305 = vld [vmem:[#allocation2 + $0x3c] sm:$0x1]
        %v306 = vsel %vm289, 0, %v305
        %307 = vst [vmem:[#allocation2 + $0x3c] sm:$0x1] %v306
        %v308 = vld [vmem:[#allocation2 + $0x48] sm:$0x1]
        %v309 = vsel %vm289, 0, %v308
        %310 = vst [vmem:[#allocation2 + $0x48] sm:$0x1] %v309
        %v311 = vld [vmem:[#allocation2 + $0x54] sm:$0x1]
        %v312 = vsel %vm289, 0, %v311
        %313 = vst [vmem:[#allocation2 + $0x54] sm:$0x1] %v312
        %v314 = vld [vmem:[#allocation2 + $0x60] sm:$0x1]
        %v315 = vsel %vm289, 0, %v314
        %316 = vst [vmem:[#allocation2 + $0x60] sm:$0x1] %v315
        %v317 = vld [vmem:[#allocation2 + $0x6c] sm:$0x1]
        %v318 = vsel %vm289, 0, %v317
        %319 = vst [vmem:[#allocation2 + $0x6c] sm:$0x1] %v318
        %v320 = vld [vmem:[#allocation2 + $0x78] sm:$0x1]
        %v321 = vsel %vm289, 0, %v320
        %322 = vst [vmem:[#allocation2 + $0x78] sm:$0x1] %v321
        %v323 = vld [vmem:[#allocation2 + $0x84] sm:$0x1]
        %v324 = vsel %vm289, 0, %v323
        %325 = vst [vmem:[#allocation2 + $0x84] sm:$0x1] %v324
        %v326 = vld [vmem:[#allocation2 + $0x90] sm:$0x1]
        %v327 = vsel %vm289, 0, %v326
        %328 = vst [vmem:[#allocation2 + $0x90] sm:$0x1] %v327
        %v329 = vld [vmem:[#allocation2 + $0x9c] sm:$0x1]
        %v330 = vsel %vm289, 0, %v329
        %331 = vst [vmem:[#allocation2 + $0x9c] sm:$0x1] %v330
        %v332 = vld [vmem:[#allocation2 + $0xa8] sm:$0x1]
        %v333 = vsel %vm289, 0, %v332
        %334 = vst [vmem:[#allocation2 + $0xa8] sm:$0x1] %v333
        %v335 = vld [vmem:[#allocation2 + $0xb4] sm:$0x1]
        %v336 = vsel %vm289, 0, %v335
        %337 = vst [vmem:[#allocation2 + $0xb4] sm:$0x1] %v336
        %v338 = vld [vmem:[#allocation2 + $0xc0] sm:$0x1]
        %v339 = vsel %vm289, 0, %v338
        %340 = vst [vmem:[#allocation2 + $0xc0] sm:$0x1] %v339
        %v341 = vld [vmem:[#allocation2 + $0xcc] sm:$0x1]
        %v342 = vsel %vm289, 0, %v341
        %343 = vst [vmem:[#allocation2 + $0xcc] sm:$0x1] %v342
        %vm344 = vsmask.f32 7938
        %vm345 = vmand %vm287, %vm344
        %v346 = vld [vmem:[#allocation2 + $0x8] sm:$0x1]
        %v347 = vsel %vm345, 0, %v346
        %348 = vst [vmem:[#allocation2 + $0x8] sm:$0x1] %v347
        %v349 = vld [vmem:[#allocation2 + $0x14] sm:$0x1]
        %v350 = vsel %vm345, 0, %v349
        %351 = vst [vmem:[#allocation2 + $0x14] sm:$0x1] %v350
        %v352 = vld [vmem:[#allocation2 + $0x20] sm:$0x1]
        %v353 = vsel %vm345, 0, %v352
        %354 = vst [vmem:[#allocation2 + $0x20] sm:$0x1] %v353
        %v355 = vld [vmem:[#allocation2 + $0x2c] sm:$0x1]
        %v356 = vsel %vm345, 0, %v355
        %357 = vst [vmem:[#allocation2 + $0x2c] sm:$0x1] %v356
        %v358 = vld [vmem:[#allocation2 + $0x38] sm:$0x1]
        %v359 = vsel %vm345, 0, %v358
        %360 = vst [vmem:[#allocation2 + $0x38] sm:$0x1] %v359
        %v361 = vld [vmem:[#allocation2 + $0x44] sm:$0x1]
        %v362 = vsel %vm345, 0, %v361
        %363 = vst [vmem:[#allocation2 + $0x44] sm:$0x1] %v362
        %v364 = vld [vmem:[#allocation2 + $0x50] sm:$0x1]
        %v365 = vsel %vm345, 0, %v364
        %366 = vst [vmem:[#allocation2 + $0x50] sm:$0x1] %v365
        %v367 = vld [vmem:[#allocation2 + $0x5c] sm:$0x1]
        %v368 = vsel %vm345, 0, %v367
        %369 = vst [vmem:[#allocation2 + $0x5c] sm:$0x1] %v368
        %v370 = vld [vmem:[#allocation2 + $0x68] sm:$0x1]
        %v371 = vsel %vm345, 0, %v370
        %372 = vst [vmem:[#allocation2 + $0x68] sm:$0x1] %v371
        %v373 = vld [vmem:[#allocation2 + $0x74] sm:$0x1]
        %v374 = vsel %vm345, 0, %v373
        %375 = vst [vmem:[#allocation2 + $0x74] sm:$0x1] %v374
        %v376 = vld [vmem:[#allocation2 + $0x80] sm:$0x1]
        %v377 = vsel %vm345, 0, %v376
        %378 = vst [vmem:[#allocation2 + $0x80] sm:$0x1] %v377
        %v379 = vld [vmem:[#allocation2 + $0x8c] sm:$0x1]
        %v380 = vsel %vm345, 0, %v379
        %381 = vst [vmem:[#allocation2 + $0x8c] sm:$0x1] %v380
        %v382 = vld [vmem:[#allocation2 + $0x98] sm:$0x1]
        %v383 = vsel %vm345, 0, %v382
        %384 = vst [vmem:[#allocation2 + $0x98] sm:$0x1] %v383
        %v385 = vld [vmem:[#allocation2 + $0xa4] sm:$0x1]
        %v386 = vsel %vm345, 0, %v385
        %387 = vst [vmem:[#allocation2 + $0xa4] sm:$0x1] %v386
        %v388 = vld [vmem:[#allocation2 + $0xb0] sm:$0x1]
        %v389 = vsel %vm345, 0, %v388
        %390 = vst [vmem:[#allocation2 + $0xb0] sm:$0x1] %v389
        %v391 = vld [vmem:[#allocation2 + $0xbc] sm:$0x1]
        %v392 = vsel %vm345, 0, %v391
        %393 = vst [vmem:[#allocation2 + $0xbc] sm:$0x1] %v392
        %v394 = vld [vmem:[#allocation2 + $0xc8] sm:$0x1]
        %v395 = vsel %vm345, 0, %v394
        %396 = vst [vmem:[#allocation2 + $0xc8] sm:$0x1] %v395
        %v397 = vld [vmem:[#allocation2 + $0xd4] sm:$0x1]
        %v398 = vsel %vm345, 0, %v397
        %399 = vst [vmem:[#allocation2 + $0xd4] sm:$0x1] %v398
        %v400 = vld [vmem:[%s276] sm:$0xf]
        %v401 = vld [vmem:[%s276 + $0x4] sm:$0xf]
        %v402 = vld [vmem:[%s276 + $0x8] sm:$0xf]
        %v403 = vld [vmem:[%s276 + $0xc] sm:$0xf]
        %v404 = vld [vmem:[%s276 + $0x10] sm:$0xf]
        %v405 = vld [vmem:[%s276 + $0x14] sm:$0xf]
        %v406 = vld [vmem:[%s276 + $0x18] sm:$0xf]
        %v407 = vld [vmem:[%s276 + $0x1c] sm:$0xf]
        %v408 = vld [vmem:[%s276 + $0x20] sm:$0xf]
        %v409 = vld [vmem:[%s276 + $0x24] sm:$0xf]
        %v410 = vld [vmem:[%s276 + $0x28] sm:$0xf]
        %v411 = vld [vmem:[%s276 + $0x2c] sm:$0xf]
        %v412 = vld [vmem:[%s276 + $0x30] sm:$0xf]
        %v413 = vld [vmem:[%s276 + $0x34] sm:$0xf]
        %v414 = vld [vmem:[%s276 + $0x38] sm:$0xf]
        %v415 = vld [vmem:[%s276 + $0x3c] sm:$0xf]
        %v416 = vld [vmem:[%s276 + $0x40] sm:$0xf]
        %v417 = vld [vmem:[%s276 + $0x44] sm:$0xf]
        %v418 = vld [vmem:[%s276 + $0x48] sm:$0xf]
        %v419 = vld [vmem:[%s276 + $0x4c] sm:$0xf]
        %v420 = vld [vmem:[%s276 + $0x50] sm:$0xf]
        %v421 = vld [vmem:[%s276 + $0x54] sm:$0xf]
        %v422 = vld [vmem:[%s276 + $0x58] sm:$0xf]
        %v423 = vld [vmem:[%s276 + $0x5c] sm:$0xf]
        %v424 = vld [vmem:[%s276 + $0x60] sm:$0xf]
        %v425 = vld [vmem:[%s276 + $0x64] sm:$0xf]
        %v426 = vld [vmem:[%s276 + $0x68] sm:$0xf]
        %v427 = vld [vmem:[%s276 + $0x6c] sm:$0xf]
        %v428 = vld [vmem:[%s276 + $0x70] sm:$0xf]
        %v429 = vld [vmem:[%s276 + $0x74] sm:$0xf]
        %v430 = vld [vmem:[%s276 + $0x78] sm:$0xf]
        %v431 = vld [vmem:[%s276 + $0x7c] sm:$0xf]
        %vm432 = vsmask.f32 4368
        %vm433 = vmor %vm288, %vm432
        %v435 = vshrl.u32 %v400, 16
        %v437 = vrot.slane %v435, 7
        %v438 = vshll.u32 %v400, 16
        %v440 = vor.u32 %v437, %v438
        %v441 = vrot.slane %v437, 4
        %v443 = vshrl.u32 %v401, 16
        %v445 = vrot.slane %v443, 7
        %v446 = vshll.u32 %v401, 16
        %v448 = vor.u32 %v445, %v446
        %v449 = vsel %vm433, %v441, %v448
        %v450 = vrot.slane %v445, 4
        %v452 = vshrl.u32 %v402, 16
        %v454 = vrot.slane %v452, 7
        %v455 = vshll.u32 %v402, 16
        %v457 = vor.u32 %v454, %v455
        %v458 = vrot.slane %v454, 4
        %v460 = vshrl.u32 %v403, 16
        %v462 = vrot.slane %v460, 7
        %v463 = vshll.u32 %v403, 16
        %v465 = vor.u32 %v462, %v463
        %v466 = vsel %vm433, %v458, %v465
        %v467 = vrot.slane %v462, 4
        %v469 = vshrl.u32 %v404, 16
        %v471 = vrot.slane %v469, 7
        %v472 = vshll.u32 %v404, 16
        %v474 = vor.u32 %v471, %v472
        %v475 = vrot.slane %v471, 4
        %v477 = vshrl.u32 %v405, 16
        %v479 = vrot.slane %v477, 7
        %v480 = vshll.u32 %v405, 16
        %v482 = vor.u32 %v479, %v480
        %v483 = vsel %vm433, %v475, %v482
        %v484 = vrot.slane %v479, 4
        %v486 = vshrl.u32 %v406, 16
        %v488 = vrot.slane %v486, 7
        %v489 = vshll.u32 %v406, 16
        %v491 = vor.u32 %v488, %v489
        %v492 = vrot.slane %v488, 4
        %v494 = vshrl.u32 %v407, 16
        %v496 = vrot.slane %v494, 7
        %v497 = vshll.u32 %v407, 16
        %v499 = vor.u32 %v496, %v497
        %v500 = vsel %vm433, %v492, %v499
        %v501 = vrot.slane %v496, 4
        %v503 = vshrl.u32 %v408, 16
        %v505 = vrot.slane %v503, 7
        %v506 = vshll.u32 %v408, 16
        %v508 = vor.u32 %v505, %v506
        %v509 = vrot.slane %v505, 4
        %v511 = vshrl.u32 %v409, 16
        %v513 = vrot.slane %v511, 7
        %v514 = vshll.u32 %v409, 16
        %v516 = vor.u32 %v513, %v514
        %v517 = vsel %vm433, %v509, %v516
        %v518 = vrot.slane %v513, 4
        %v520 = vshrl.u32 %v410, 16
        %v522 = vrot.slane %v520, 7
        %v523 = vshll.u32 %v410, 16
        %v525 = vor.u32 %v522, %v523
        %v526 = vrot.slane %v522, 4
        %v528 = vshrl.u32 %v411, 16
        %v530 = vrot.slane %v528, 7
        %v531 = vshll.u32 %v411, 16
        %v533 = vor.u32 %v530, %v531
        %v534 = vsel %vm433, %v526, %v533
        %v535 = vrot.slane %v530, 4
        %v537 = vshrl.u32 %v412, 16
        %v539 = vrot.slane %v537, 7
        %v540 = vshll.u32 %v412, 16
        %v542 = vor.u32 %v539, %v540
        %v543 = vrot.slane %v539, 4
        %v545 = vshrl.u32 %v413, 16
        %v547 = vrot.slane %v545, 7
        %v548 = vshll.u32 %v413, 16
        %v550 = vor.u32 %v547, %v548
        %v551 = vsel %vm433, %v543, %v550
        %v552 = vrot.slane %v547, 4
        %v554 = vshrl.u32 %v414, 16
        %v556 = vrot.slane %v554, 7
        %v557 = vshll.u32 %v414, 16
        %v559 = vor.u32 %v556, %v557
        %v560 = vrot.slane %v556, 4
        %v562 = vshrl.u32 %v415, 16
        %v564 = vrot.slane %v562, 7
        %v565 = vshll.u32 %v415, 16
        %v567 = vor.u32 %v564, %v565
        %v568 = vsel %vm433, %v560, %v567
        %v569 = vrot.slane %v564, 4
        %v571 = vshrl.u32 %v416, 16
        %v573 = vrot.slane %v571, 7
        %v574 = vshll.u32 %v416, 16
        %v576 = vor.u32 %v573, %v574
        %v577 = vrot.slane %v573, 4
        %v579 = vshrl.u32 %v417, 16
        %v581 = vrot.slane %v579, 7
        %v582 = vshll.u32 %v417, 16
        %v584 = vor.u32 %v581, %v582
        %v585 = vsel %vm433, %v577, %v584
        %v586 = vrot.slane %v581, 4
        %v588 = vshrl.u32 %v418, 16
        %v590 = vrot.slane %v588, 7
        %v591 = vshll.u32 %v418, 16
        %v593 = vor.u32 %v590, %v591
        %v594 = vrot.slane %v590, 4
        %v596 = vshrl.u32 %v419, 16
        %v598 = vrot.slane %v596, 7
        %v599 = vshll.u32 %v419, 16
        %v601 = vor.u32 %v598, %v599
        %v602 = vsel %vm433, %v594, %v601
        %v603 = vrot.slane %v598, 4
        %v605 = vshrl.u32 %v420, 16
        %v607 = vrot.slane %v605, 7
        %v608 = vshll.u32 %v420, 16
        %v610 = vor.u32 %v607, %v608
        %v611 = vrot.slane %v607, 4
        %v613 = vshrl.u32 %v421, 16
        %v615 = vrot.slane %v613, 7
        %v616 = vshll.u32 %v421, 16
        %v618 = vor.u32 %v615, %v616
        %v619 = vsel %vm433, %v611, %v618
        %v620 = vrot.slane %v615, 4
        %v622 = vshrl.u32 %v422, 16
        %v624 = vrot.slane %v622, 7
        %v625 = vshll.u32 %v422, 16
        %v627 = vor.u32 %v624, %v625
        %v628 = vrot.slane %v624, 4
        %v630 = vshrl.u32 %v423, 16
        %v632 = vrot.slane %v630, 7
        %v633 = vshll.u32 %v423, 16
        %v635 = vor.u32 %v632, %v633
        %v636 = vsel %vm433, %v628, %v635
        %v637 = vrot.slane %v632, 4
        %v639 = vshrl.u32 %v424, 16
        %v641 = vrot.slane %v639, 7
        %v642 = vshll.u32 %v424, 16
        %v644 = vor.u32 %v641, %v642
        %v645 = vrot.slane %v641, 4
        %v647 = vshrl.u32 %v425, 16
        %v649 = vrot.slane %v647, 7
        %v650 = vshll.u32 %v425, 16
        %v652 = vor.u32 %v649, %v650
        %v653 = vsel %vm433, %v645, %v652
        %v654 = vrot.slane %v649, 4
        %v656 = vshrl.u32 %v426, 16
        %v658 = vrot.slane %v656, 7
        %v659 = vshll.u32 %v426, 16
        %v661 = vor.u32 %v658, %v659
        %v662 = vrot.slane %v658, 4
        %v664 = vshrl.u32 %v427, 16
        %v666 = vrot.slane %v664, 7
        %v667 = vshll.u32 %v427, 16
        %v669 = vor.u32 %v666, %v667
        %v670 = vsel %vm433, %v662, %v669
        %v671 = vrot.slane %v666, 4
        %v673 = vshrl.u32 %v428, 16
        %v675 = vrot.slane %v673, 7
        %v676 = vshll.u32 %v428, 16
        %v678 = vor.u32 %v675, %v676
        %v679 = vrot.slane %v675, 4
        %v681 = vshrl.u32 %v429, 16
        %v683 = vrot.slane %v681, 7
        %v684 = vshll.u32 %v429, 16
        %v686 = vor.u32 %v683, %v684
        %v687 = vsel %vm433, %v679, %v686
        %v688 = vrot.slane %v683, 4
        %v690 = vshrl.u32 %v430, 16
        %v692 = vrot.slane %v690, 7
        %v693 = vshll.u32 %v430, 16
        %v695 = vor.u32 %v692, %v693
        %v696 = vrot.slane %v692, 4
        %v698 = vshrl.u32 %v431, 16
        %v700 = vrot.slane %v698, 7
        %v701 = vshll.u32 %v431, 16
        %v703 = vor.u32 %v700, %v701
        %v704 = vsel %vm433, %v696, %v703
        %v705 = vrot.slane %v700, 4
        %s754 = scalar_lea.vmem [#allocation2], 12
        %vm755 = vcmask 11264
        %vm756 = vmand %vm755, %vm344
        %v757 = vld [vmem:[%s754] sm:$0xf]
        %v758 = vsel %vm756, %v440, %v757
        %759 = vst [vmem:[%s754] sm:$0xf] %v758
        %vm760 = vcmask 11264
        %761 = vst.msk [vmem:[%s754 + $0x4] sm:$0xf] %vm760, %v449
        %vm762 = vcmask 8192
        %vm763 = vmand %vm762, %vm288
        %v764 = vld [vmem:[%s754 + $0x8] sm:$0x1]
        %v765 = vsel %vm763, %v450, %v764
        %766 = vst [vmem:[%s754 + $0x8] sm:$0x1] %v765
        %v767 = vld [vmem:[%s754 + $0xc] sm:$0xf]
        %v768 = vsel %vm756, %v457, %v767
        %769 = vst [vmem:[%s754 + $0xc] sm:$0xf] %v768
        %770 = vst.msk [vmem:[%s754 + $0x10] sm:$0xf] %vm760, %v466
        %v771 = vld [vmem:[%s754 + $0x14] sm:$0x1]
        %v772 = vsel %vm763, %v467, %v771
        %773 = vst [vmem:[%s754 + $0x14] sm:$0x1] %v772
        %v774 = vld [vmem:[%s754 + $0x18] sm:$0xf]
        %v775 = vsel %vm756, %v474, %v774
        %776 = vst [vmem:[%s754 + $0x18] sm:$0xf] %v775
        %777 = vst.msk [vmem:[%s754 + $0x1c] sm:$0xf] %vm760, %v483
        %v778 = vld [vmem:[%s754 + $0x20] sm:$0x1]
        %v779 = vsel %vm763, %v484, %v778
        %780 = vst [vmem:[%s754 + $0x20] sm:$0x1] %v779
        %v781 = vld [vmem:[%s754 + $0x24] sm:$0xf]
        %v782 = vsel %vm756, %v491, %v781
        %783 = vst [vmem:[%s754 + $0x24] sm:$0xf] %v782
        %784 = vst.msk [vmem:[%s754 + $0x28] sm:$0xf] %vm760, %v500
        %v785 = vld [vmem:[%s754 + $0x2c] sm:$0x1]
        %v786 = vsel %vm763, %v501, %v785
        %787 = vst [vmem:[%s754 + $0x2c] sm:$0x1] %v786
        %v788 = vld [vmem:[%s754 + $0x30] sm:$0xf]
        %v789 = vsel %vm756, %v508, %v788
        %790 = vst [vmem:[%s754 + $0x30] sm:$0xf] %v789
        %791 = vst.msk [vmem:[%s754 + $0x34] sm:$0xf] %vm760, %v517
        %v792 = vld [vmem:[%s754 + $0x38] sm:$0x1]
        %v793 = vsel %vm763, %v518, %v792
        %794 = vst [vmem:[%s754 + $0x38] sm:$0x1] %v793
        %v795 = vld [vmem:[%s754 + $0x3c] sm:$0xf]
        %v796 = vsel %vm756, %v525, %v795
        %797 = vst [vmem:[%s754 + $0x3c] sm:$0xf] %v796
        %798 = vst.msk [vmem:[%s754 + $0x40] sm:$0xf] %vm760, %v534
        %v799 = vld [vmem:[%s754 + $0x44] sm:$0x1]
        %v800 = vsel %vm763, %v535, %v799
        %801 = vst [vmem:[%s754 + $0x44] sm:$0x1] %v800
        %v802 = vld [vmem:[%s754 + $0x48] sm:$0xf]
        %v803 = vsel %vm756, %v542, %v802
        %804 = vst [vmem:[%s754 + $0x48] sm:$0xf] %v803
        %805 = vst.msk [vmem:[%s754 + $0x4c] sm:$0xf] %vm760, %v551
        %v806 = vld [vmem:[%s754 + $0x50] sm:$0x1]
        %v807 = vsel %vm763, %v552, %v806
        %808 = vst [vmem:[%s754 + $0x50] sm:$0x1] %v807
        %v809 = vld [vmem:[%s754 + $0x54] sm:$0xf]
        %v810 = vsel %vm756, %v559, %v809
        %811 = vst [vmem:[%s754 + $0x54] sm:$0xf] %v810
        %812 = vst.msk [vmem:[%s754 + $0x58] sm:$0xf] %vm760, %v568
        %v813 = vld [vmem:[%s754 + $0x5c] sm:$0x1]
        %v814 = vsel %vm763, %v569, %v813
        %815 = vst [vmem:[%s754 + $0x5c] sm:$0x1] %v814
        %v816 = vld [vmem:[%s754 + $0x60] sm:$0xf]
        %v817 = vsel %vm756, %v576, %v816
        %818 = vst [vmem:[%s754 + $0x60] sm:$0xf] %v817
        %819 = vst.msk [vmem:[%s754 + $0x64] sm:$0xf] %vm760, %v585
        %v820 = vld [vmem:[%s754 + $0x68] sm:$0x1]
        %v821 = vsel %vm763, %v586, %v820
        %822 = vst [vmem:[%s754 + $0x68] sm:$0x1] %v821
        %v823 = vld [vmem:[%s754 + $0x6c] sm:$0xf]
        %v824 = vsel %vm756, %v593, %v823
        %825 = vst [vmem:[%s754 + $0x6c] sm:$0xf] %v824
        %826 = vst.msk [vmem:[%s754 + $0x70] sm:$0xf] %vm760, %v602
        %v827 = vld [vmem:[%s754 + $0x74] sm:$0x1]
        %v828 = vsel %vm763, %v603, %v827
        %829 = vst [vmem:[%s754 + $0x74] sm:$0x1] %v828
        %v830 = vld [vmem:[%s754 + $0x78] sm:$0xf]
        %v831 = vsel %vm756, %v610, %v830
        %832 = vst [vmem:[%s754 + $0x78] sm:$0xf] %v831
        %833 = vst.msk [vmem:[%s754 + $0x7c] sm:$0xf] %vm760, %v619
        %v834 = vld [vmem:[%s754 + $0x80] sm:$0x1]
        %v835 = vsel %vm763, %v620, %v834
        %836 = vst [vmem:[%s754 + $0x80] sm:$0x1] %v835
        %v837 = vld [vmem:[%s754 + $0x84] sm:$0xf]
        %v838 = vsel %vm756, %v627, %v837
        %839 = vst [vmem:[%s754 + $0x84] sm:$0xf] %v838
        %840 = vst.msk [vmem:[%s754 + $0x88] sm:$0xf] %vm760, %v636
        %v841 = vld [vmem:[%s754 + $0x8c] sm:$0x1]
        %v842 = vsel %vm763, %v637, %v841
        %843 = vst [vmem:[%s754 + $0x8c] sm:$0x1] %v842
        %v844 = vld [vmem:[%s754 + $0x90] sm:$0xf]
        %v845 = vsel %vm756, %v644, %v844
        %846 = vst [vmem:[%s754 + $0x90] sm:$0xf] %v845
        %847 = vst.msk [vmem:[%s754 + $0x94] sm:$0xf] %vm760, %v653
        %v848 = vld [vmem:[%s754 + $0x98] sm:$0x1]
        %v849 = vsel %vm763, %v654, %v848
        %850 = vst [vmem:[%s754 + $0x98] sm:$0x1] %v849
        %v851 = vld [vmem:[%s754 + $0x9c] sm:$0xf]
        %v852 = vsel %vm756, %v661, %v851
        %853 = vst [vmem:[%s754 + $0x9c] sm:$0xf] %v852
        %854 = vst.msk [vmem:[%s754 + $0xa0] sm:$0xf] %vm760, %v670
        %v855 = vld [vmem:[%s754 + $0xa4] sm:$0x1]
        %v856 = vsel %vm763, %v671, %v855
        %857 = vst [vmem:[%s754 + $0xa4] sm:$0x1] %v856
        %v858 = vld [vmem:[%s754 + $0xa8] sm:$0xf]
        %v859 = vsel %vm756, %v678, %v858
        %860 = vst [vmem:[%s754 + $0xa8] sm:$0xf] %v859
        %861 = vst.msk [vmem:[%s754 + $0xac] sm:$0xf] %vm760, %v687
        %v862 = vld [vmem:[%s754 + $0xb0] sm:$0x1]
        %v863 = vsel %vm763, %v688, %v862
        %864 = vst [vmem:[%s754 + $0xb0] sm:$0x1] %v863
        %v865 = vld [vmem:[%s754 + $0xb4] sm:$0xf]
        %v866 = vsel %vm756, %v695, %v865
        %867 = vst [vmem:[%s754 + $0xb4] sm:$0xf] %v866
        %868 = vst.msk [vmem:[%s754 + $0xb8] sm:$0xf] %vm760, %v704
        %v869 = vld [vmem:[%s754 + $0xbc] sm:$0x1]
        %v870 = vsel %vm763, %v705, %v869
        %871 = vst [vmem:[%s754 + $0xbc] sm:$0x1] %v870
        %v872 = vld [vmem:[#allocation2] sm:$0xf]
        %v873 = vld [vmem:[#allocation2 + $0x4] sm:$0xf]
        %v874 = vld [vmem:[#allocation2 + $0xc] sm:$0xf]
        %v875 = vld [vmem:[#allocation2 + $0x10] sm:$0xf]
        %v876 = vld [vmem:[#allocation2 + $0x18] sm:$0xf]
        %v877 = vld [vmem:[#allocation2 + $0x1c] sm:$0xf]
        %v878 = vld [vmem:[#allocation2 + $0x24] sm:$0xf]
        %v879 = vld [vmem:[#allocation2 + $0x28] sm:$0xf]
        %v880 = vld [vmem:[#allocation2 + $0x30] sm:$0xf]
        %v881 = vld [vmem:[#allocation2 + $0x34] sm:$0xf]
        %v882 = vld [vmem:[#allocation2 + $0x3c] sm:$0xf]
        %v883 = vld [vmem:[#allocation2 + $0x40] sm:$0xf]
        %v884 = vld [vmem:[#allocation2 + $0x48] sm:$0xf]
        %v885 = vld [vmem:[#allocation2 + $0x4c] sm:$0xf]
        %v886 = vld [vmem:[#allocation2 + $0x54] sm:$0xf]
        %v887 = vld [vmem:[#allocation2 + $0x58] sm:$0xf]
        %v888 = vld [vmem:[#allocation2 + $0x60] sm:$0xf]
        %v889 = vld [vmem:[#allocation2 + $0x64] sm:$0xf]
        %v890 = vld [vmem:[#allocation2 + $0x6c] sm:$0xf]
        %v891 = vld [vmem:[#allocation2 + $0x70] sm:$0xf]
        %v892 = vld [vmem:[#allocation2 + $0x78] sm:$0xf]
        %v893 = vld [vmem:[#allocation2 + $0x7c] sm:$0xf]
        %v894 = vld [vmem:[#allocation2 + $0x84] sm:$0xf]
        %v895 = vld [vmem:[#allocation2 + $0x88] sm:$0xf]
        %v896 = vld [vmem:[#allocation2 + $0x90] sm:$0xf]
        %v897 = vld [vmem:[#allocation2 + $0x94] sm:$0xf]
        %v898 = vld [vmem:[#allocation2 + $0x9c] sm:$0xf]
        %v899 = vld [vmem:[#allocation2 + $0xa0] sm:$0xf]
        %v900 = vld [vmem:[#allocation2 + $0xa8] sm:$0xf]
        %v901 = vld [vmem:[#allocation2 + $0xac] sm:$0xf]
        %v902 = vld [vmem:[#allocation2 + $0xb4] sm:$0xf]
        %v903 = vld [vmem:[#allocation2 + $0xb8] sm:$0xf]
        %v904 = vld [vmem:[#allocation2 + $0xc0] sm:$0xf]
        %v905 = vld [vmem:[#allocation2 + $0xc4] sm:$0xf]
        %v906 = vld [vmem:[#allocation2 + $0xcc] sm:$0xf]
        %v907 = vld [vmem:[#allocation2 + $0xd0] sm:$0xf]
        %908 = vst.msk [vmem:[#allocation3] sm:$0xf] %vm760, %v872
        %909 = vst.msk [vmem:[#allocation3 + $0x4] sm:$0xf] %vm760, %v873
        %910 = vst.msk [vmem:[#allocation3 + $0x8] sm:$0xf] %vm760, %v874
        %911 = vst.msk [vmem:[#allocation3 + $0xc] sm:$0xf] %vm760, %v875
        %912 = vst.msk [vmem:[#allocation3 + $0x10] sm:$0xf] %vm760, %v876
        %913 = vst.msk [vmem:[#allocation3 + $0x14] sm:$0xf] %vm760, %v877
        %914 = vst.msk [vmem:[#allocation3 + $0x18] sm:$0xf] %vm760, %v878
        %915 = vst.msk [vmem:[#allocation3 + $0x1c] sm:$0xf] %vm760, %v879
        %916 = vst.msk [vmem:[#allocation3 + $0x20] sm:$0xf] %vm760, %v880
        %917 = vst.msk [vmem:[#allocation3 + $0x24] sm:$0xf] %vm760, %v881
        %918 = vst.msk [vmem:[#allocation3 + $0x28] sm:$0xf] %vm760, %v882
        %919 = vst.msk [vmem:[#allocation3 + $0x2c] sm:$0xf] %vm760, %v883
        %920 = vst.msk [vmem:[#allocation3 + $0x30] sm:$0xf] %vm760, %v884
        %921 = vst.msk [vmem:[#allocation3 + $0x34] sm:$0xf] %vm760, %v885
        %922 = vst.msk [vmem:[#allocation3 + $0x38] sm:$0xf] %vm760, %v886
        %923 = vst.msk [vmem:[#allocation3 + $0x3c] sm:$0xf] %vm760, %v887
        %924 = vst.msk [vmem:[#allocation3 + $0x40] sm:$0xf] %vm760, %v888
        %925 = vst.msk [vmem:[#allocation3 + $0x44] sm:$0xf] %vm760, %v889
        %926 = vst.msk [vmem:[#allocation3 + $0x48] sm:$0xf] %vm760, %v890
        %927 = vst.msk [vmem:[#allocation3 + $0x4c] sm:$0xf] %vm760, %v891
        %928 = vst.msk [vmem:[#allocation3 + $0x50] sm:$0xf] %vm760, %v892
        %929 = vst.msk [vmem:[#allocation3 + $0x54] sm:$0xf] %vm760, %v893
        %930 = vst.msk [vmem:[#allocation3 + $0x58] sm:$0xf] %vm760, %v894
        %931 = vst.msk [vmem:[#allocation3 + $0x5c] sm:$0xf] %vm760, %v895
        %932 = vst.msk [vmem:[#allocation3 + $0x60] sm:$0xf] %vm760, %v896
        %933 = vst.msk [vmem:[#allocation3 + $0x64] sm:$0xf] %vm760, %v897
        %934 = vst.msk [vmem:[#allocation3 + $0x68] sm:$0xf] %vm760, %v898
        %935 = vst.msk [vmem:[#allocation3 + $0x6c] sm:$0xf] %vm760, %v899
        %936 = vst.msk [vmem:[#allocation3 + $0x70] sm:$0xf] %vm760, %v900
        %937 = vst.msk [vmem:[#allocation3 + $0x74] sm:$0xf] %vm760, %v901
        %938 = vst.msk [vmem:[#allocation3 + $0x78] sm:$0xf] %vm760, %v902
        %939 = vst.msk [vmem:[#allocation3 + $0x7c] sm:$0xf] %vm760, %v903
        %940 = vst.msk [vmem:[#allocation3 + $0x80] sm:$0xf] %vm760, %v904
        %941 = vst.msk [vmem:[#allocation3 + $0x84] sm:$0xf] %vm760, %v905
        %942 = vst.msk [vmem:[#allocation3 + $0x88] sm:$0xf] %vm760, %v906
        %943 = vst.msk [vmem:[#allocation3 + $0x8c] sm:$0xf] %vm760, %v907
        %v944 = vld [vmem:[#allocation2] sm:$0xf]
        %v945 = vld [vmem:[#allocation2 + $0x4] sm:$0xf]
        %v946 = vld [vmem:[#allocation2 + $0x8] sm:$0x1]
        %v947 = vld [vmem:[#allocation2 + $0xc] sm:$0xf]
        %v948 = vld [vmem:[#allocation2 + $0x10] sm:$0xf]
        %v949 = vld [vmem:[#allocation2 + $0x14] sm:$0x1]
        %v950 = vld [vmem:[#allocation2 + $0x18] sm:$0xf]
        %v951 = vld [vmem:[#allocation2 + $0x1c] sm:$0xf]
        %v952 = vld [vmem:[#allocation2 + $0x20] sm:$0x1]
        %v953 = vld [vmem:[#allocation2 + $0x24] sm:$0xf]
        %v954 = vld [vmem:[#allocation2 + $0x28] sm:$0xf]
        %v955 = vld [vmem:[#allocation2 + $0x2c] sm:$0x1]
        %v956 = vld [vmem:[#allocation2 + $0x30] sm:$0xf]
        %v957 = vld [vmem:[#allocation2 + $0x34] sm:$0xf]
        %v958 = vld [vmem:[#allocation2 + $0x38] sm:$0x1]
        %v959 = vld [vmem:[#allocation2 + $0x3c] sm:$0xf]
        %v960 = vld [vmem:[#allocation2 + $0x40] sm:$0xf]
        %v961 = vld [vmem:[#allocation2 + $0x44] sm:$0x1]
        %v962 = vld [vmem:[#allocation2 + $0x48] sm:$0xf]
        %v963 = vld [vmem:[#allocation2 + $0x4c] sm:$0xf]
        %v964 = vld [vmem:[#allocation2 + $0x50] sm:$0x1]
        %v965 = vld [vmem:[#allocation2 + $0x54] sm:$0xf]
        %v966 = vld [vmem:[#allocation2 + $0x58] sm:$0xf]
        %v967 = vld [vmem:[#allocation2 + $0x5c] sm:$0x1]
        %v968 = vld [vmem:[#allocation2 + $0x60] sm:$0xf]
        %v969 = vld [vmem:[#allocation2 + $0x64] sm:$0xf]
        %v970 = vld [vmem:[#allocation2 + $0x68] sm:$0x1]
        %v971 = vld [vmem:[#allocation2 + $0x6c] sm:$0xf]
        %v972 = vld [vmem:[#allocation2 + $0x70] sm:$0xf]
        %v973 = vld [vmem:[#allocation2 + $0x74] sm:$0x1]
        %v974 = vld [vmem:[#allocation2 + $0x78] sm:$0xf]
        %v975 = vld [vmem:[#allocation2 + $0x7c] sm:$0xf]
        %v976 = vld [vmem:[#allocation2 + $0x80] sm:$0x1]
        %v977 = vld [vmem:[#allocation2 + $0x84] sm:$0xf]
        %v978 = vld [vmem:[#allocation2 + $0x88] sm:$0xf]
        %v979 = vld [vmem:[#allocation2 + $0x8c] sm:$0x1]
        %v980 = vld [vmem:[#allocation2 + $0x90] sm:$0xf]
        %v981 = vld [vmem:[#allocation2 + $0x94] sm:$0xf]
        %v982 = vld [vmem:[#allocation2 + $0x98] sm:$0x1]
        %v983 = vld [vmem:[#allocation2 + $0x9c] sm:$0xf]
        %v984 = vld [vmem:[#allocation2 + $0xa0] sm:$0xf]
        %v985 = vld [vmem:[#allocation2 + $0xa4] sm:$0x1]
        %v986 = vld [vmem:[#allocation2 + $0xa8] sm:$0xf]
        %v987 = vld [vmem:[#allocation2 + $0xac] sm:$0xf]
        %v988 = vld [vmem:[#allocation2 + $0xb0] sm:$0x1]
        %v989 = vld [vmem:[#allocation2 + $0xb4] sm:$0xf]
        %v990 = vld [vmem:[#allocation2 + $0xb8] sm:$0xf]
        %v991 = vld [vmem:[#allocation2 + $0xbc] sm:$0x1]
        %v992 = vld [vmem:[#allocation2 + $0xc0] sm:$0xf]
        %v993 = vld [vmem:[#allocation2 + $0xc4] sm:$0xf]
        %v994 = vld [vmem:[#allocation2 + $0xc8] sm:$0x1]
        %v995 = vld [vmem:[#allocation2 + $0xcc] sm:$0xf]
        %v996 = vld [vmem:[#allocation2 + $0xd0] sm:$0xf]
        %v997 = vld [vmem:[#allocation2 + $0xd4] sm:$0x1]
        %vm998 = vsmask.f32 3328
        %vm999 = vsmask.f32 7440
        %vm1000 = vmor %vm998, %vm999
        %v1002 = vshrl.u32 %v944, 16
        %v1004 = vrot.slane %v1002, 4
        %v1005 = vshll.u32 %v944, 16
        %v1007 = vrot.slane %v1005, 5
        %v1008 = vor.u32 %v1004, %v1007
        %v1009 = vrot.slane %v1008, 4
        %v1011 = vshll.u32 %v945, 16
        %v1013 = vrot.slane %v1011, 5
        %v1014 = vsel %vm1000, %v1009, %v1013
        %v1015 = vshrl.u32 %v945, 16
        %v1017 = vrot.slane %v1015, 4
        %v1018 = vor.u32 %v1017, %v1013
        %v1019 = vrot.slane %v1018, 4
        %v1021 = vshll.u32 %v946, 16
        %v1023 = vrot.slane %v1021, 5
        %v1024 = vsel %vm1000, %v1019, %v1023
        %v1026 = vshrl.u32 %v947, 16
        %v1028 = vrot.slane %v1026, 4
        %v1029 = vshll.u32 %v947, 16
        %v1031 = vrot.slane %v1029, 5
        %v1032 = vor.u32 %v1028, %v1031
        %v1033 = vrot.slane %v1032, 4
        %v1035 = vshll.u32 %v948, 16
        %v1037 = vrot.slane %v1035, 5
        %v1038 = vsel %vm1000, %v1033, %v1037
        %v1039 = vshrl.u32 %v948, 16
        %v1041 = vrot.slane %v1039, 4
        %v1042 = vor.u32 %v1041, %v1037
        %v1043 = vrot.slane %v1042, 4
        %v1045 = vshll.u32 %v949, 16
        %v1047 = vrot.slane %v1045, 5
        %v1048 = vsel %vm1000, %v1043, %v1047
        %v1050 = vshrl.u32 %v950, 16
        %v1052 = vrot.slane %v1050, 4
        %v1053 = vshll.u32 %v950, 16
        %v1055 = vrot.slane %v1053, 5
        %v1056 = vor.u32 %v1052, %v1055
        %v1057 = vrot.slane %v1056, 4
        %v1059 = vshll.u32 %v951, 16
        %v1061 = vrot.slane %v1059, 5
        %v1062 = vsel %vm1000, %v1057, %v1061
        %v1063 = vshrl.u32 %v951, 16
        %v1065 = vrot.slane %v1063, 4
        %v1066 = vor.u32 %v1065, %v1061
        %v1067 = vrot.slane %v1066, 4
        %v1069 = vshll.u32 %v952, 16
        %v1071 = vrot.slane %v1069, 5
        %v1072 = vsel %vm1000, %v1067, %v1071
        %v1074 = vshrl.u32 %v953, 16
        %v1076 = vrot.slane %v1074, 4
        %v1077 = vshll.u32 %v953, 16
        %v1079 = vrot.slane %v1077, 5
        %v1080 = vor.u32 %v1076, %v1079
        %v1081 = vrot.slane %v1080, 4
        %v1083 = vshll.u32 %v954, 16
        %v1085 = vrot.slane %v1083, 5
        %v1086 = vsel %vm1000, %v1081, %v1085
        %v1087 = vshrl.u32 %v954, 16
        %v1089 = vrot.slane %v1087, 4
        %v1090 = vor.u32 %v1089, %v1085
        %v1091 = vrot.slane %v1090, 4
        %v1093 = vshll.u32 %v955, 16
        %v1095 = vrot.slane %v1093, 5
        %v1096 = vsel %vm1000, %v1091, %v1095
        %v1098 = vshrl.u32 %v956, 16
        %v1100 = vrot.slane %v1098, 4
        %v1101 = vshll.u32 %v956, 16
        %v1103 = vrot.slane %v1101, 5
        %v1104 = vor.u32 %v1100, %v1103
        %v1105 = vrot.slane %v1104, 4
        %v1107 = vshll.u32 %v957, 16
        %v1109 = vrot.slane %v1107, 5
        %v1110 = vsel %vm1000, %v1105, %v1109
        %v1111 = vshrl.u32 %v957, 16
        %v1113 = vrot.slane %v1111, 4
        %v1114 = vor.u32 %v1113, %v1109
        %v1115 = vrot.slane %v1114, 4
        %v1117 = vshll.u32 %v958, 16
        %v1119 = vrot.slane %v1117, 5
        %v1120 = vsel %vm1000, %v1115, %v1119
        %v1122 = vshrl.u32 %v959, 16
        %v1124 = vrot.slane %v1122, 4
        %v1125 = vshll.u32 %v959, 16
        %v1127 = vrot.slane %v1125, 5
        %v1128 = vor.u32 %v1124, %v1127
        %v1129 = vrot.slane %v1128, 4
        %v1131 = vshll.u32 %v960, 16
        %v1133 = vrot.slane %v1131, 5
        %v1134 = vsel %vm1000, %v1129, %v1133
        %v1135 = vshrl.u32 %v960, 16
        %v1137 = vrot.slane %v1135, 4
        %v1138 = vor.u32 %v1137, %v1133
        %v1139 = vrot.slane %v1138, 4
        %v1141 = vshll.u32 %v961, 16
        %v1143 = vrot.slane %v1141, 5
        %v1144 = vsel %vm1000, %v1139, %v1143
        %v1146 = vshrl.u32 %v962, 16
        %v1148 = vrot.slane %v1146, 4
        %v1149 = vshll.u32 %v962, 16
        %v1151 = vrot.slane %v1149, 5
        %v1152 = vor.u32 %v1148, %v1151
        %v1153 = vrot.slane %v1152, 4
        %v1155 = vshll.u32 %v963, 16
        %v1157 = vrot.slane %v1155, 5
        %v1158 = vsel %vm1000, %v1153, %v1157
        %v1159 = vshrl.u32 %v963, 16
        %v1161 = vrot.slane %v1159, 4
        %v1162 = vor.u32 %v1161, %v1157
        %v1163 = vrot.slane %v1162, 4
        %v1165 = vshll.u32 %v964, 16
        %v1167 = vrot.slane %v1165, 5
        %v1168 = vsel %vm1000, %v1163, %v1167
        %v1170 = vshrl.u32 %v965, 16
        %v1172 = vrot.slane %v1170, 4
        %v1173 = vshll.u32 %v965, 16
        %v1175 = vrot.slane %v1173, 5
        %v1176 = vor.u32 %v1172, %v1175
        %v1177 = vrot.slane %v1176, 4
        %v1179 = vshll.u32 %v966, 16
        %v1181 = vrot.slane %v1179, 5
        %v1182 = vsel %vm1000, %v1177, %v1181
        %v1183 = vshrl.u32 %v966, 16
        %v1185 = vrot.slane %v1183, 4
        %v1186 = vor.u32 %v1185, %v1181
        %v1187 = vrot.slane %v1186, 4
        %v1189 = vshll.u32 %v967, 16
        %v1191 = vrot.slane %v1189, 5
        %v1192 = vsel %vm1000, %v1187, %v1191
        %v1194 = vshrl.u32 %v968, 16
        %v1196 = vrot.slane %v1194, 4
        %v1197 = vshll.u32 %v968, 16
        %v1199 = vrot.slane %v1197, 5
        %v1200 = vor.u32 %v1196, %v1199
        %v1201 = vrot.slane %v1200, 4
        %v1203 = vshll.u32 %v969, 16
        %v1205 = vrot.slane %v1203, 5
        %v1206 = vsel %vm1000, %v1201, %v1205
        %v1207 = vshrl.u32 %v969, 16
        %v1209 = vrot.slane %v1207, 4
        %v1210 = vor.u32 %v1209, %v1205
        %v1211 = vrot.slane %v1210, 4
        %v1213 = vshll.u32 %v970, 16
        %v1215 = vrot.slane %v1213, 5
        %v1216 = vsel %vm1000, %v1211, %v1215
        %v1218 = vshrl.u32 %v971, 16
        %v1220 = vrot.slane %v1218, 4
        %v1221 = vshll.u32 %v971, 16
        %v1223 = vrot.slane %v1221, 5
        %v1224 = vor.u32 %v1220, %v1223
        %v1225 = vrot.slane %v1224, 4
        %v1227 = vshll.u32 %v972, 16
        %v1229 = vrot.slane %v1227, 5
        %v1230 = vsel %vm1000, %v1225, %v1229
        %v1231 = vshrl.u32 %v972, 16
        %v1233 = vrot.slane %v1231, 4
        %v1234 = vor.u32 %v1233, %v1229
        %v1235 = vrot.slane %v1234, 4
        %v1237 = vshll.u32 %v973, 16
        %v1239 = vrot.slane %v1237, 5
        %v1240 = vsel %vm1000, %v1235, %v1239
        %v1242 = vshrl.u32 %v974, 16
        %v1244 = vrot.slane %v1242, 4
        %v1245 = vshll.u32 %v974, 16
        %v1247 = vrot.slane %v1245, 5
        %v1248 = vor.u32 %v1244, %v1247
        %v1249 = vrot.slane %v1248, 4
        %v1251 = vshll.u32 %v975, 16
        %v1253 = vrot.slane %v1251, 5
        %v1254 = vsel %vm1000, %v1249, %v1253
        %v1255 = vshrl.u32 %v975, 16
        %v1257 = vrot.slane %v1255, 4
        %v1258 = vor.u32 %v1257, %v1253
        %v1259 = vrot.slane %v1258, 4
        %v1261 = vshll.u32 %v976, 16
        %v1263 = vrot.slane %v1261, 5
        %v1264 = vsel %vm1000, %v1259, %v1263
        %v1266 = vshrl.u32 %v977, 16
        %v1268 = vrot.slane %v1266, 4
        %v1269 = vshll.u32 %v977, 16
        %v1271 = vrot.slane %v1269, 5
        %v1272 = vor.u32 %v1268, %v1271
        %v1273 = vrot.slane %v1272, 4
        %v1275 = vshll.u32 %v978, 16
        %v1277 = vrot.slane %v1275, 5
        %v1278 = vsel %vm1000, %v1273, %v1277
        %v1279 = vshrl.u32 %v978, 16
        %v1281 = vrot.slane %v1279, 4
        %v1282 = vor.u32 %v1281, %v1277
        %v1283 = vrot.slane %v1282, 4
        %v1285 = vshll.u32 %v979, 16
        %v1287 = vrot.slane %v1285, 5
        %v1288 = vsel %vm1000, %v1283, %v1287
        %v1290 = vshrl.u32 %v980, 16
        %v1292 = vrot.slane %v1290, 4
        %v1293 = vshll.u32 %v980, 16
        %v1295 = vrot.slane %v1293, 5
        %v1296 = vor.u32 %v1292, %v1295
        %v1297 = vrot.slane %v1296, 4
        %v1299 = vshll.u32 %v981, 16
        %v1301 = vrot.slane %v1299, 5
        %v1302 = vsel %vm1000, %v1297, %v1301
        %v1303 = vshrl.u32 %v981, 16
        %v1305 = vrot.slane %v1303, 4
        %v1306 = vor.u32 %v1305, %v1301
        %v1307 = vrot.slane %v1306, 4
        %v1309 = vshll.u32 %v982, 16
        %v1311 = vrot.slane %v1309, 5
        %v1312 = vsel %vm1000, %v1307, %v1311
        %v1314 = vshrl.u32 %v983, 16
        %v1316 = vrot.slane %v1314, 4
        %v1317 = vshll.u32 %v983, 16
        %v1319 = vrot.slane %v1317, 5
        %v1320 = vor.u32 %v1316, %v1319
        %v1321 = vrot.slane %v1320, 4
        %v1323 = vshll.u32 %v984, 16
        %v1325 = vrot.slane %v1323, 5
        %v1326 = vsel %vm1000, %v1321, %v1325
        %v1327 = vshrl.u32 %v984, 16
        %v1329 = vrot.slane %v1327, 4
        %v1330 = vor.u32 %v1329, %v1325
        %v1331 = vrot.slane %v1330, 4
        %v1333 = vshll.u32 %v985, 16
        %v1335 = vrot.slane %v1333, 5
        %v1336 = vsel %vm1000, %v1331, %v1335
        %v1338 = vshrl.u32 %v986, 16
        %v1340 = vrot.slane %v1338, 4
        %v1341 = vshll.u32 %v986, 16
        %v1343 = vrot.slane %v1341, 5
        %v1344 = vor.u32 %v1340, %v1343
        %v1345 = vrot.slane %v1344, 4
        %v1347 = vshll.u32 %v987, 16
        %v1349 = vrot.slane %v1347, 5
        %v1350 = vsel %vm1000, %v1345, %v1349
        %v1351 = vshrl.u32 %v987, 16
        %v1353 = vrot.slane %v1351, 4
        %v1354 = vor.u32 %v1353, %v1349
        %v1355 = vrot.slane %v1354, 4
        %v1357 = vshll.u32 %v988, 16
        %v1359 = vrot.slane %v1357, 5
        %v1360 = vsel %vm1000, %v1355, %v1359
        %v1362 = vshrl.u32 %v989, 16
        %v1364 = vrot.slane %v1362, 4
        %v1365 = vshll.u32 %v989, 16
        %v1367 = vrot.slane %v1365, 5
        %v1368 = vor.u32 %v1364, %v1367
        %v1369 = vrot.slane %v1368, 4
        %v1371 = vshll.u32 %v990, 16
        %v1373 = vrot.slane %v1371, 5
        %v1374 = vsel %vm1000, %v1369, %v1373
        %v1375 = vshrl.u32 %v990, 16
        %v1377 = vrot.slane %v1375, 4
        %v1378 = vor.u32 %v1377, %v1373
        %v1379 = vrot.slane %v1378, 4
        %v1381 = vshll.u32 %v991, 16
        %v1383 = vrot.slane %v1381, 5
        %v1384 = vsel %vm1000, %v1379, %v1383
        %v1386 = vshrl.u32 %v992, 16
        %v1388 = vrot.slane %v1386, 4
        %v1389 = vshll.u32 %v992, 16
        %v1391 = vrot.slane %v1389, 5
        %v1392 = vor.u32 %v1388, %v1391
        %v1393 = vrot.slane %v1392, 4
        %v1395 = vshll.u32 %v993, 16
        %v1397 = vrot.slane %v1395, 5
        %v1398 = vsel %vm1000, %v1393, %v1397
        %v1399 = vshrl.u32 %v993, 16
        %v1401 = vrot.slane %v1399, 4
        %v1402 = vor.u32 %v1401, %v1397
        %v1403 = vrot.slane %v1402, 4
        %v1405 = vshll.u32 %v994, 16
        %v1407 = vrot.slane %v1405, 5
        %v1408 = vsel %vm1000, %v1403, %v1407
        %v1410 = vshrl.u32 %v995, 16
        %v1412 = vrot.slane %v1410, 4
        %v1413 = vshll.u32 %v995, 16
        %v1415 = vrot.slane %v1413, 5
        %v1416 = vor.u32 %v1412, %v1415
        %v1417 = vrot.slane %v1416, 4
        %v1419 = vshll.u32 %v996, 16
        %v1421 = vrot.slane %v1419, 5
        %v1422 = vsel %vm1000, %v1417, %v1421
        %v1423 = vshrl.u32 %v996, 16
        %v1425 = vrot.slane %v1423, 4
        %v1426 = vor.u32 %v1425, %v1421
        %v1427 = vrot.slane %v1426, 4
        %v1429 = vshll.u32 %v997, 16
        %v1431 = vrot.slane %v1429, 5
        %v1432 = vsel %vm1000, %v1427, %v1431
        %1433 = vrot.lane.b32.xlu0 %v1014, 2
        %v1434 = vpop.permute.xlu0 %1433
        %1435 = vrot.lane.b32.xlu0 %v1024, 2
        %v1436 = vpop.permute.xlu0 %1435
        %1437 = vrot.lane.b32.xlu0 %v1038, 2
        %v1438 = vpop.permute.xlu0 %1437
        %1439 = vrot.lane.b32.xlu0 %v1048, 2
        %v1440 = vpop.permute.xlu0 %1439
        %1441 = vrot.lane.b32.xlu0 %v1062, 2
        %v1442 = vpop.permute.xlu0 %1441
        %1443 = vrot.lane.b32.xlu0 %v1072, 2
        %v1444 = vpop.permute.xlu0 %1443
        %1445 = vrot.lane.b32.xlu0 %v1086, 2
        %v1446 = vpop.permute.xlu0 %1445
        %1447 = vrot.lane.b32.xlu0 %v1096, 2
        %v1448 = vpop.permute.xlu0 %1447
        %1449 = vrot.lane.b32.xlu0 %v1110, 2
        %v1450 = vpop.permute.xlu0 %1449
        %1451 = vrot.lane.b32.xlu0 %v1120, 2
        %v1452 = vpop.permute.xlu0 %1451
        %1453 = vrot.lane.b32.xlu0 %v1134, 2
        %v1454 = vpop.permute.xlu0 %1453
        %1455 = vrot.lane.b32.xlu0 %v1144, 2
        %v1456 = vpop.permute.xlu0 %1455
        %1457 = vrot.lane.b32.xlu0 %v1158, 2
        %v1458 = vpop.permute.xlu0 %1457
        %1459 = vrot.lane.b32.xlu0 %v1168, 2
        %v1460 = vpop.permute.xlu0 %1459
        %1461 = vrot.lane.b32.xlu0 %v1182, 2
        %v1462 = vpop.permute.xlu0 %1461
        %1463 = vrot.lane.b32.xlu0 %v1192, 2
        %v1464 = vpop.permute.xlu0 %1463
        %1465 = vrot.lane.b32.xlu0 %v1206, 2
        %v1466 = vpop.permute.xlu0 %1465
        %1467 = vrot.lane.b32.xlu0 %v1216, 2
        %v1468 = vpop.permute.xlu0 %1467
        %1469 = vrot.lane.b32.xlu0 %v1230, 2
        %v1470 = vpop.permute.xlu0 %1469
        %1471 = vrot.lane.b32.xlu0 %v1240, 2
        %v1472 = vpop.permute.xlu0 %1471
        %1473 = vrot.lane.b32.xlu0 %v1254, 2
        %v1474 = vpop.permute.xlu0 %1473
        %1475 = vrot.lane.b32.xlu0 %v1264, 2
        %v1476 = vpop.permute.xlu0 %1475
        %1477 = vrot.lane.b32.xlu0 %v1278, 2
        %v1478 = vpop.permute.xlu0 %1477
        %1479 = vrot.lane.b32.xlu0 %v1288, 2
        %v1480 = vpop.permute.xlu0 %1479
        %1481 = vrot.lane.b32.xlu0 %v1302, 2
        %v1482 = vpop.permute.xlu0 %1481
        %1483 = vrot.lane.b32.xlu0 %v1312, 2
        %v1484 = vpop.permute.xlu0 %1483
        %1485 = vrot.lane.b32.xlu0 %v1326, 2
        %v1486 = vpop.permute.xlu0 %1485
        %1487 = vrot.lane.b32.xlu0 %v1336, 2
        %v1488 = vpop.permute.xlu0 %1487
        %1489 = vrot.lane.b32.xlu0 %v1350, 2
        %v1490 = vpop.permute.xlu0 %1489
        %1491 = vrot.lane.b32.xlu0 %v1360, 2
        %v1492 = vpop.permute.xlu0 %1491
        %1493 = vrot.lane.b32.xlu0 %v1374, 2
        %v1494 = vpop.permute.xlu0 %1493
        %1495 = vrot.lane.b32.xlu0 %v1384, 2
        %v1496 = vpop.permute.xlu0 %1495
        %1497 = vrot.lane.b32.xlu0 %v1398, 2
        %v1498 = vpop.permute.xlu0 %1497
        %1499 = vrot.lane.b32.xlu0 %v1408, 2
        %v1500 = vpop.permute.xlu0 %1499
        %1501 = vrot.lane.b32.xlu0 %v1422, 2
        %v1502 = vpop.permute.xlu0 %1501
        %1503 = vrot.lane.b32.xlu0 %v1432, 2
        %v1504 = vpop.permute.xlu0 %1503
        %vm1541 = vcmask 27664
        %1542 = vst.msk [vmem:[#allocation3] sm:$0xf] %vm1541, %v1434
        %1543 = vst.msk [vmem:[#allocation3 + $0x4] sm:$0xf] %vm1541, %v1436
        %1544 = vst.msk [vmem:[#allocation3 + $0x8] sm:$0xf] %vm1541, %v1438
        %1545 = vst.msk [vmem:[#allocation3 + $0xc] sm:$0xf] %vm1541, %v1440
        %1546 = vst.msk [vmem:[#allocation3 + $0x10] sm:$0xf] %vm1541, %v1442
        %1547 = vst.msk [vmem:[#allocation3 + $0x14] sm:$0xf] %vm1541, %v1444
        %1548 = vst.msk [vmem:[#allocation3 + $0x18] sm:$0xf] %vm1541, %v1446
        %1549 = vst.msk [vmem:[#allocation3 + $0x1c] sm:$0xf] %vm1541, %v1448
        %1550 = vst.msk [vmem:[#allocation3 + $0x20] sm:$0xf] %vm1541, %v1450
        %1551 = vst.msk [vmem:[#allocation3 + $0x24] sm:$0xf] %vm1541, %v1452
        %1552 = vst.msk [vmem:[#allocation3 + $0x28] sm:$0xf] %vm1541, %v1454
        %1553 = vst.msk [vmem:[#allocation3 + $0x2c] sm:$0xf] %vm1541, %v1456
        %1554 = vst.msk [vmem:[#allocation3 + $0x30] sm:$0xf] %vm1541, %v1458
        %1555 = vst.msk [vmem:[#allocation3 + $0x34] sm:$0xf] %vm1541, %v1460
        %1556 = vst.msk [vmem:[#allocation3 + $0x38] sm:$0xf] %vm1541, %v1462
        %1557 = vst.msk [vmem:[#allocation3 + $0x3c] sm:$0xf] %vm1541, %v1464
        %1558 = vst.msk [vmem:[#allocation3 + $0x40] sm:$0xf] %vm1541, %v1466
        %1559 = vst.msk [vmem:[#allocation3 + $0x44] sm:$0xf] %vm1541, %v1468
        %1560 = vst.msk [vmem:[#allocation3 + $0x48] sm:$0xf] %vm1541, %v1470
        %1561 = vst.msk [vmem:[#allocation3 + $0x4c] sm:$0xf] %vm1541, %v1472
        %1562 = vst.msk [vmem:[#allocation3 + $0x50] sm:$0xf] %vm1541, %v1474
        %1563 = vst.msk [vmem:[#allocation3 + $0x54] sm:$0xf] %vm1541, %v1476
        %1564 = vst.msk [vmem:[#allocation3 + $0x58] sm:$0xf] %vm1541, %v1478
        %1565 = vst.msk [vmem:[#allocation3 + $0x5c] sm:$0xf] %vm1541, %v1480
        %1566 = vst.msk [vmem:[#allocation3 + $0x60] sm:$0xf] %vm1541, %v1482
        %1567 = vst.msk [vmem:[#allocation3 + $0x64] sm:$0xf] %vm1541, %v1484
        %1568 = vst.msk [vmem:[#allocation3 + $0x68] sm:$0xf] %vm1541, %v1486
        %1569 = vst.msk [vmem:[#allocation3 + $0x6c] sm:$0xf] %vm1541, %v1488
        %1570 = vst.msk [vmem:[#allocation3 + $0x70] sm:$0xf] %vm1541, %v1490
        %1571 = vst.msk [vmem:[#allocation3 + $0x74] sm:$0xf] %vm1541, %v1492
        %1572 = vst.msk [vmem:[#allocation3 + $0x78] sm:$0xf] %vm1541, %v1494
        %1573 = vst.msk [vmem:[#allocation3 + $0x7c] sm:$0xf] %vm1541, %v1496
        %1574 = vst.msk [vmem:[#allocation3 + $0x80] sm:$0xf] %vm1541, %v1498
        %1575 = vst.msk [vmem:[#allocation3 + $0x84] sm:$0xf] %vm1541, %v1500
        %1576 = vst.msk [vmem:[#allocation3 + $0x88] sm:$0xf] %vm1541, %v1502
        %1577 = vst.msk [vmem:[#allocation3 + $0x8c] sm:$0xf] %vm1541, %v1504
        %v1578 = vld [vmem:[#allocation2] sm:$0xe]
        %v1579 = vld [vmem:[#allocation2 + $0x4] sm:$0xf]
        %v1580 = vld [vmem:[#allocation2 + $0x8] sm:$0x1]
        %v1581 = vld [vmem:[#allocation2 + $0xc] sm:$0xe]
        %v1582 = vld [vmem:[#allocation2 + $0x10] sm:$0xf]
        %v1583 = vld [vmem:[#allocation2 + $0x14] sm:$0x1]
        %v1584 = vld [vmem:[#allocation2 + $0x18] sm:$0xe]
        %v1585 = vld [vmem:[#allocation2 + $0x1c] sm:$0xf]
        %v1586 = vld [vmem:[#allocation2 + $0x20] sm:$0x1]
        %v1587 = vld [vmem:[#allocation2 + $0x24] sm:$0xe]
        %v1588 = vld [vmem:[#allocation2 + $0x28] sm:$0xf]
        %v1589 = vld [vmem:[#allocation2 + $0x2c] sm:$0x1]
        %v1590 = vld [vmem:[#allocation2 + $0x30] sm:$0xe]
        %v1591 = vld [vmem:[#allocation2 + $0x34] sm:$0xf]
        %v1592 = vld [vmem:[#allocation2 + $0x38] sm:$0x1]
        %v1593 = vld [vmem:[#allocation2 + $0x3c] sm:$0xe]
        %v1594 = vld [vmem:[#allocation2 + $0x40] sm:$0xf]
        %v1595 = vld [vmem:[#allocation2 + $0x44] sm:$0x1]
        %v1596 = vld [vmem:[#allocation2 + $0x48] sm:$0xe]
        %v1597 = vld [vmem:[#allocation2 + $0x4c] sm:$0xf]
        %v1598 = vld [vmem:[#allocation2 + $0x50] sm:$0x1]
        %v1599 = vld [vmem:[#allocation2 + $0x54] sm:$0xe]
        %v1600 = vld [vmem:[#allocation2 + $0x58] sm:$0xf]
        %v1601 = vld [vmem:[#allocation2 + $0x5c] sm:$0x1]
        %v1602 = vld [vmem:[#allocation2 + $0x60] sm:$0xe]
        %v1603 = vld [vmem:[#allocation2 + $0x64] sm:$0xf]
        %v1604 = vld [vmem:[#allocation2 + $0x68] sm:$0x1]
        %v1605 = vld [vmem:[#allocation2 + $0x6c] sm:$0xe]
        %v1606 = vld [vmem:[#allocation2 + $0x70] sm:$0xf]
        %v1607 = vld [vmem:[#allocation2 + $0x74] sm:$0x1]
        %v1608 = vld [vmem:[#allocation2 + $0x78] sm:$0xe]
        %v1609 = vld [vmem:[#allocation2 + $0x7c] sm:$0xf]
        %v1610 = vld [vmem:[#allocation2 + $0x80] sm:$0x1]
        %v1611 = vld [vmem:[#allocation2 + $0x84] sm:$0xe]
        %v1612 = vld [vmem:[#allocation2 + $0x88] sm:$0xf]
        %v1613 = vld [vmem:[#allocation2 + $0x8c] sm:$0x1]
        %v1614 = vld [vmem:[#allocation2 + $0x90] sm:$0xe]
        %v1615 = vld [vmem:[#allocation2 + $0x94] sm:$0xf]
        %v1616 = vld [vmem:[#allocation2 + $0x98] sm:$0x1]
        %v1617 = vld [vmem:[#allocation2 + $0x9c] sm:$0xe]
        %v1618 = vld [vmem:[#allocation2 + $0xa0] sm:$0xf]
        %v1619 = vld [vmem:[#allocation2 + $0xa4] sm:$0x1]
        %v1620 = vld [vmem:[#allocation2 + $0xa8] sm:$0xe]
        %v1621 = vld [vmem:[#allocation2 + $0xac] sm:$0xf]
        %v1622 = vld [vmem:[#allocation2 + $0xb0] sm:$0x1]
        %v1623 = vld [vmem:[#allocation2 + $0xb4] sm:$0xe]
        %v1624 = vld [vmem:[#allocation2 + $0xb8] sm:$0xf]
        %v1625 = vld [vmem:[#allocation2 + $0xbc] sm:$0x1]
        %v1626 = vld [vmem:[#allocation2 + $0xc0] sm:$0xe]
        %v1627 = vld [vmem:[#allocation2 + $0xc4] sm:$0xf]
        %v1628 = vld [vmem:[#allocation2 + $0xc8] sm:$0x1]
        %v1629 = vld [vmem:[#allocation2 + $0xcc] sm:$0xe]
        %v1630 = vld [vmem:[#allocation2 + $0xd0] sm:$0xf]
        %v1631 = vld [vmem:[#allocation2 + $0xd4] sm:$0x1]
        %vm1686 = vcmask 1042432
        %vm1687 = vcmask 1046532
        %vm1688 = vmor %vm1686, %vm1687
        %v1689 = vrot.slane %v1578, 5
        %v1690 = vrot.slane %v1689, 4
        %v1691 = vrot.slane %v1579, 5
        %v1692 = vsel %vm1688, %v1690, %v1691
        %v1693 = vrot.slane %v1691, 4
        %v1694 = vrot.slane %v1580, 5
        %v1695 = vsel %vm1688, %v1693, %v1694
        %v1696 = vrot.slane %v1581, 5
        %v1697 = vrot.slane %v1696, 4
        %v1698 = vrot.slane %v1582, 5
        %v1699 = vsel %vm1688, %v1697, %v1698
        %v1700 = vrot.slane %v1698, 4
        %v1701 = vrot.slane %v1583, 5
        %v1702 = vsel %vm1688, %v1700, %v1701
        %v1703 = vrot.slane %v1584, 5
        %v1704 = vrot.slane %v1703, 4
        %v1705 = vrot.slane %v1585, 5
        %v1706 = vsel %vm1688, %v1704, %v1705
        %v1707 = vrot.slane %v1705, 4
        %v1708 = vrot.slane %v1586, 5
        %v1709 = vsel %vm1688, %v1707, %v1708
        %v1710 = vrot.slane %v1587, 5
        %v1711 = vrot.slane %v1710, 4
        %v1712 = vrot.slane %v1588, 5
        %v1713 = vsel %vm1688, %v1711, %v1712
        %v1714 = vrot.slane %v1712, 4
        %v1715 = vrot.slane %v1589, 5
        %v1716 = vsel %vm1688, %v1714, %v1715
        %v1717 = vrot.slane %v1590, 5
        %v1718 = vrot.slane %v1717, 4
        %v1719 = vrot.slane %v1591, 5
        %v1720 = vsel %vm1688, %v1718, %v1719
        %v1721 = vrot.slane %v1719, 4
        %v1722 = vrot.slane %v1592, 5
        %v1723 = vsel %vm1688, %v1721, %v1722
        %v1724 = vrot.slane %v1593, 5
        %v1725 = vrot.slane %v1724, 4
        %v1726 = vrot.slane %v1594, 5
        %v1727 = vsel %vm1688, %v1725, %v1726
        %v1728 = vrot.slane %v1726, 4
        %v1729 = vrot.slane %v1595, 5
        %v1730 = vsel %vm1688, %v1728, %v1729
        %v1731 = vrot.slane %v1596, 5
        %v1732 = vrot.slane %v1731, 4
        %v1733 = vrot.slane %v1597, 5
        %v1734 = vsel %vm1688, %v1732, %v1733
        %v1735 = vrot.slane %v1733, 4
        %v1736 = vrot.slane %v1598, 5
        %v1737 = vsel %vm1688, %v1735, %v1736
        %v1738 = vrot.slane %v1599, 5
        %v1739 = vrot.slane %v1738, 4
        %v1740 = vrot.slane %v1600, 5
        %v1741 = vsel %vm1688, %v1739, %v1740
        %v1742 = vrot.slane %v1740, 4
        %v1743 = vrot.slane %v1601, 5
        %v1744 = vsel %vm1688, %v1742, %v1743
        %v1745 = vrot.slane %v1602, 5
        %v1746 = vrot.slane %v1745, 4
        %v1747 = vrot.slane %v1603, 5
        %v1748 = vsel %vm1688, %v1746, %v1747
        %v1749 = vrot.slane %v1747, 4
        %v1750 = vrot.slane %v1604, 5
        %v1751 = vsel %vm1688, %v1749, %v1750
        %v1752 = vrot.slane %v1605, 5
        %v1753 = vrot.slane %v1752, 4
        %v1754 = vrot.slane %v1606, 5
        %v1755 = vsel %vm1688, %v1753, %v1754
        %v1756 = vrot.slane %v1754, 4
        %v1757 = vrot.slane %v1607, 5
        %v1758 = vsel %vm1688, %v1756, %v1757
        %v1759 = vrot.slane %v1608, 5
        %v1760 = vrot.slane %v1759, 4
        %v1761 = vrot.slane %v1609, 5
        %v1762 = vsel %vm1688, %v1760, %v1761
        %v1763 = vrot.slane %v1761, 4
        %v1764 = vrot.slane %v1610, 5
        %v1765 = vsel %vm1688, %v1763, %v1764
        %v1766 = vrot.slane %v1611, 5
        %v1767 = vrot.slane %v1766, 4
        %v1768 = vrot.slane %v1612, 5
        %v1769 = vsel %vm1688, %v1767, %v1768
        %v1770 = vrot.slane %v1768, 4
        %v1771 = vrot.slane %v1613, 5
        %v1772 = vsel %vm1688, %v1770, %v1771
        %v1773 = vrot.slane %v1614, 5
        %v1774 = vrot.slane %v1773, 4
        %v1775 = vrot.slane %v1615, 5
        %v1776 = vsel %vm1688, %v1774, %v1775
        %v1777 = vrot.slane %v1775, 4
        %v1778 = vrot.slane %v1616, 5
        %v1779 = vsel %vm1688, %v1777, %v1778
        %v1780 = vrot.slane %v1617, 5
        %v1781 = vrot.slane %v1780, 4
        %v1782 = vrot.slane %v1618, 5
        %v1783 = vsel %vm1688, %v1781, %v1782
        %v1784 = vrot.slane %v1782, 4
        %v1785 = vrot.slane %v1619, 5
        %v1786 = vsel %vm1688, %v1784, %v1785
        %v1787 = vrot.slane %v1620, 5
        %v1788 = vrot.slane %v1787, 4
        %v1789 = vrot.slane %v1621, 5
        %v1790 = vsel %vm1688, %v1788, %v1789
        %v1791 = vrot.slane %v1789, 4
        %v1792 = vrot.slane %v1622, 5
        %v1793 = vsel %vm1688, %v1791, %v1792
        %v1794 = vrot.slane %v1623, 5
        %v1795 = vrot.slane %v1794, 4
        %v1796 = vrot.slane %v1624, 5
        %v1797 = vsel %vm1688, %v1795, %v1796
        %v1798 = vrot.slane %v1796, 4
        %v1799 = vrot.slane %v1625, 5
        %v1800 = vsel %vm1688, %v1798, %v1799
        %v1801 = vrot.slane %v1626, 5
        %v1802 = vrot.slane %v1801, 4
        %v1803 = vrot.slane %v1627, 5
        %v1804 = vsel %vm1688, %v1802, %v1803
        %v1805 = vrot.slane %v1803, 4
        %v1806 = vrot.slane %v1628, 5
        %v1807 = vsel %vm1688, %v1805, %v1806
        %v1808 = vrot.slane %v1629, 5
        %v1809 = vrot.slane %v1808, 4
        %v1810 = vrot.slane %v1630, 5
        %v1811 = vsel %vm1688, %v1809, %v1810
        %v1812 = vrot.slane %v1810, 4
        %v1813 = vrot.slane %v1631, 5
        %v1814 = vsel %vm1688, %v1812, %v1813
        %1815 = vrot.lane.b32.xlu0 %v1692, 4
        %v1816 = vpop.permute.xlu0 %1815
        %1817 = vrot.lane.b32.xlu0 %v1695, 4
        %v1818 = vpop.permute.xlu0 %1817
        %1819 = vrot.lane.b32.xlu0 %v1699, 4
        %v1820 = vpop.permute.xlu0 %1819
        %1821 = vrot.lane.b32.xlu0 %v1702, 4
        %v1822 = vpop.permute.xlu0 %1821
        %1823 = vrot.lane.b32.xlu0 %v1706, 4
        %v1824 = vpop.permute.xlu0 %1823
        %1825 = vrot.lane.b32.xlu0 %v1709, 4
        %v1826 = vpop.permute.xlu0 %1825
        %1827 = vrot.lane.b32.xlu0 %v1713, 4
        %v1828 = vpop.permute.xlu0 %1827
        %1829 = vrot.lane.b32.xlu0 %v1716, 4
        %v1830 = vpop.permute.xlu0 %1829
        %1831 = vrot.lane.b32.xlu0 %v1720, 4
        %v1832 = vpop.permute.xlu0 %1831
        %1833 = vrot.lane.b32.xlu0 %v1723, 4
        %v1834 = vpop.permute.xlu0 %1833
        %1835 = vrot.lane.b32.xlu0 %v1727, 4
        %v1836 = vpop.permute.xlu0 %1835
        %1837 = vrot.lane.b32.xlu0 %v1730, 4
        %v1838 = vpop.permute.xlu0 %1837
        %1839 = vrot.lane.b32.xlu0 %v1734, 4
        %v1840 = vpop.permute.xlu0 %1839
        %1841 = vrot.lane.b32.xlu0 %v1737, 4
        %v1842 = vpop.permute.xlu0 %1841
        %1843 = vrot.lane.b32.xlu0 %v1741, 4
        %v1844 = vpop.permute.xlu0 %1843
        %1845 = vrot.lane.b32.xlu0 %v1744, 4
        %v1846 = vpop.permute.xlu0 %1845
        %1847 = vrot.lane.b32.xlu0 %v1748, 4
        %v1848 = vpop.permute.xlu0 %1847
        %1849 = vrot.lane.b32.xlu0 %v1751, 4
        %v1850 = vpop.permute.xlu0 %1849
        %1851 = vrot.lane.b32.xlu0 %v1755, 4
        %v1852 = vpop.permute.xlu0 %1851
        %1853 = vrot.lane.b32.xlu0 %v1758, 4
        %v1854 = vpop.permute.xlu0 %1853
        %1855 = vrot.lane.b32.xlu0 %v1762, 4
        %v1856 = vpop.permute.xlu0 %1855
        %1857 = vrot.lane.b32.xlu0 %v1765, 4
        %v1858 = vpop.permute.xlu0 %1857
        %1859 = vrot.lane.b32.xlu0 %v1769, 4
        %v1860 = vpop.permute.xlu0 %1859
        %1861 = vrot.lane.b32.xlu0 %v1772, 4
        %v1862 = vpop.permute.xlu0 %1861
        %1863 = vrot.lane.b32.xlu0 %v1776, 4
        %v1864 = vpop.permute.xlu0 %1863
        %1865 = vrot.lane.b32.xlu0 %v1779, 4
        %v1866 = vpop.permute.xlu0 %1865
        %1867 = vrot.lane.b32.xlu0 %v1783, 4
        %v1868 = vpop.permute.xlu0 %1867
        %1869 = vrot.lane.b32.xlu0 %v1786, 4
        %v1870 = vpop.permute.xlu0 %1869
        %1871 = vrot.lane.b32.xlu0 %v1790, 4
        %v1872 = vpop.permute.xlu0 %1871
        %1873 = vrot.lane.b32.xlu0 %v1793, 4
        %v1874 = vpop.permute.xlu0 %1873
        %1875 = vrot.lane.b32.xlu0 %v1797, 4
        %v1876 = vpop.permute.xlu0 %1875
        %1877 = vrot.lane.b32.xlu0 %v1800, 4
        %v1878 = vpop.permute.xlu0 %1877
        %1879 = vrot.lane.b32.xlu0 %v1804, 4
        %v1880 = vpop.permute.xlu0 %1879
        %1881 = vrot.lane.b32.xlu0 %v1807, 4
        %v1882 = vpop.permute.xlu0 %1881
        %1883 = vrot.lane.b32.xlu0 %v1811, 4
        %v1884 = vpop.permute.xlu0 %1883
        %1885 = vrot.lane.b32.xlu0 %v1814, 4
        %v1886 = vpop.permute.xlu0 %1885
        %vm1923 = vcmask 44064
        %1924 = vst.msk [vmem:[#allocation3] sm:$0xf] %vm1923, %v1816
        %1925 = vst.msk [vmem:[#allocation3 + $0x4] sm:$0xf] %vm1923, %v1818
        %1926 = vst.msk [vmem:[#allocation3 + $0x8] sm:$0xf] %vm1923, %v1820
        %1927 = vst.msk [vmem:[#allocation3 + $0xc] sm:$0xf] %vm1923, %v1822
        %1928 = vst.msk [vmem:[#allocation3 + $0x10] sm:$0xf] %vm1923, %v1824
        %1929 = vst.msk [vmem:[#allocation3 + $0x14] sm:$0xf] %vm1923, %v1826
        %1930 = vst.msk [vmem:[#allocation3 + $0x18] sm:$0xf] %vm1923, %v1828
        %1931 = vst.msk [vmem:[#allocation3 + $0x1c] sm:$0xf] %vm1923, %v1830
        %1932 = vst.msk [vmem:[#allocation3 + $0x20] sm:$0xf] %vm1923, %v1832
        %1933 = vst.msk [vmem:[#allocation3 + $0x24] sm:$0xf] %vm1923, %v1834
        %1934 = vst.msk [vmem:[#allocation3 + $0x28] sm:$0xf] %vm1923, %v1836
        %1935 = vst.msk [vmem:[#allocation3 + $0x2c] sm:$0xf] %vm1923, %v1838
        %1936 = vst.msk [vmem:[#allocation3 + $0x30] sm:$0xf] %vm1923, %v1840
        %1937 = vst.msk [vmem:[#allocation3 + $0x34] sm:$0xf] %vm1923, %v1842
        %1938 = vst.msk [vmem:[#allocation3 + $0x38] sm:$0xf] %vm1923, %v1844
        %1939 = vst.msk [vmem:[#allocation3 + $0x3c] sm:$0xf] %vm1923, %v1846
        %1940 = vst.msk [vmem:[#allocation3 + $0x40] sm:$0xf] %vm1923, %v1848
        %1941 = vst.msk [vmem:[#allocation3 + $0x44] sm:$0xf] %vm1923, %v1850
        %1942 = vst.msk [vmem:[#allocation3 + $0x48] sm:$0xf] %vm1923, %v1852
        %1943 = vst.msk [vmem:[#allocation3 + $0x4c] sm:$0xf] %vm1923, %v1854
        %1944 = vst.msk [vmem:[#allocation3 + $0x50] sm:$0xf] %vm1923, %v1856
        %1945 = vst.msk [vmem:[#allocation3 + $0x54] sm:$0xf] %vm1923, %v1858
        %1946 = vst.msk [vmem:[#allocation3 + $0x58] sm:$0xf] %vm1923, %v1860
        %1947 = vst.msk [vmem:[#allocation3 + $0x5c] sm:$0xf] %vm1923, %v1862
        %1948 = vst.msk [vmem:[#allocation3 + $0x60] sm:$0xf] %vm1923, %v1864
        %1949 = vst.msk [vmem:[#allocation3 + $0x64] sm:$0xf] %vm1923, %v1866
        %1950 = vst.msk [vmem:[#allocation3 + $0x68] sm:$0xf] %vm1923, %v1868
        %1951 = vst.msk [vmem:[#allocation3 + $0x6c] sm:$0xf] %vm1923, %v1870
        %1952 = vst.msk [vmem:[#allocation3 + $0x70] sm:$0xf] %vm1923, %v1872
        %1953 = vst.msk [vmem:[#allocation3 + $0x74] sm:$0xf] %vm1923, %v1874
        %1954 = vst.msk [vmem:[#allocation3 + $0x78] sm:$0xf] %vm1923, %v1876
        %1955 = vst.msk [vmem:[#allocation3 + $0x7c] sm:$0xf] %vm1923, %v1878
        %1956 = vst.msk [vmem:[#allocation3 + $0x80] sm:$0xf] %vm1923, %v1880
        %1957 = vst.msk [vmem:[#allocation3 + $0x84] sm:$0xf] %vm1923, %v1882
        %1958 = vst.msk [vmem:[#allocation3 + $0x88] sm:$0xf] %vm1923, %v1884
        %1959 = vst.msk [vmem:[#allocation3 + $0x8c] sm:$0xf] %vm1923, %v1886
        %v1960 = vld [vmem:[#allocation3] sm:$0xf]
        %v1961 = vld [vmem:[#allocation3 + $0x4] sm:$0xf]
        %v1962 = vld [vmem:[#allocation3 + $0x8] sm:$0xf]
        %v1963 = vld [vmem:[#allocation3 + $0xc] sm:$0xf]
        %v1964 = vld [vmem:[#allocation3 + $0x10] sm:$0xf]
        %v1965 = vld [vmem:[#allocation3 + $0x14] sm:$0xf]
        %v1966 = vld [vmem:[#allocation3 + $0x18] sm:$0xf]
        %v1967 = vld [vmem:[#allocation3 + $0x1c] sm:$0xf]
        %v1968 = vld [vmem:[#allocation3 + $0x20] sm:$0xf]
        %v1969 = vld [vmem:[#allocation3 + $0x24] sm:$0xf]
        %v1970 = vld [vmem:[#allocation3 + $0x28] sm:$0xf]
        %v1971 = vld [vmem:[#allocation3 + $0x2c] sm:$0xf]
        %v1972 = vld [vmem:[#allocation3 + $0x30] sm:$0xf]
        %v1973 = vld [vmem:[#allocation3 + $0x34] sm:$0xf]
        %v1974 = vld [vmem:[#allocation3 + $0x38] sm:$0xf]
        %v1975 = vld [vmem:[#allocation3 + $0x3c] sm:$0xf]
        %v1976 = vld [vmem:[#allocation3 + $0x40] sm:$0xf]
        %v1977 = vld [vmem:[#allocation3 + $0x44] sm:$0xf]
        %v1978 = vld [vmem:[#allocation3 + $0x48] sm:$0xf]
        %v1979 = vld [vmem:[#allocation3 + $0x4c] sm:$0xf]
        %v1980 = vld [vmem:[#allocation3 + $0x50] sm:$0xf]
        %v1981 = vld [vmem:[#allocation3 + $0x54] sm:$0xf]
        %v1982 = vld [vmem:[#allocation3 + $0x58] sm:$0xf]
        %v1983 = vld [vmem:[#allocation3 + $0x5c] sm:$0xf]
        %v1984 = vld [vmem:[#allocation3 + $0x60] sm:$0xf]
        %v1985 = vld [vmem:[#allocation3 + $0x64] sm:$0xf]
        %v1986 = vld [vmem:[#allocation3 + $0x68] sm:$0xf]
        %v1987 = vld [vmem:[#allocation3 + $0x6c] sm:$0xf]
        %v1988 = vld [vmem:[#allocation3 + $0x70] sm:$0xf]
        %v1989 = vld [vmem:[#allocation3 + $0x74] sm:$0xf]
        %v1990 = vld [vmem:[#allocation3 + $0x78] sm:$0xf]
        %v1991 = vld [vmem:[#allocation3 + $0x7c] sm:$0xf]
        %s1992 = scalar_lea.vmem [#allocation3], 8
        %v1993 = vld [vmem:[%s1992] sm:$0xf]
        %v1994 = vld [vmem:[%s1992 + $0x4] sm:$0xf]
        %v1995 = vld [vmem:[%s1992 + $0x8] sm:$0xf]
        %v1996 = vld [vmem:[%s1992 + $0xc] sm:$0xf]
        %v1997 = vld [vmem:[%s1992 + $0x10] sm:$0xf]
        %v1998 = vld [vmem:[%s1992 + $0x14] sm:$0xf]
        %v1999 = vld [vmem:[%s1992 + $0x18] sm:$0xf]
        %v2000 = vld [vmem:[%s1992 + $0x1c] sm:$0xf]
        %v2001 = vld [vmem:[%s1992 + $0x20] sm:$0xf]
        %v2002 = vld [vmem:[%s1992 + $0x24] sm:$0xf]
        %v2003 = vld [vmem:[%s1992 + $0x28] sm:$0xf]
        %v2004 = vld [vmem:[%s1992 + $0x2c] sm:$0xf]
        %v2005 = vld [vmem:[%s1992 + $0x30] sm:$0xf]
        %v2006 = vld [vmem:[%s1992 + $0x34] sm:$0xf]
        %v2007 = vld [vmem:[%s1992 + $0x38] sm:$0xf]
        %v2008 = vld [vmem:[%s1992 + $0x3c] sm:$0xf]
        %v2009 = vld [vmem:[%s1992 + $0x40] sm:$0xf]
        %v2010 = vld [vmem:[%s1992 + $0x44] sm:$0xf]
        %v2011 = vld [vmem:[%s1992 + $0x48] sm:$0xf]
        %v2012 = vld [vmem:[%s1992 + $0x4c] sm:$0xf]
        %v2013 = vld [vmem:[%s1992 + $0x50] sm:$0xf]
        %v2014 = vld [vmem:[%s1992 + $0x54] sm:$0xf]
        %v2015 = vld [vmem:[%s1992 + $0x58] sm:$0xf]
        %v2016 = vld [vmem:[%s1992 + $0x5c] sm:$0xf]
        %v2017 = vld [vmem:[%s1992 + $0x60] sm:$0xf]
        %v2018 = vld [vmem:[%s1992 + $0x64] sm:$0xf]
        %v2019 = vld [vmem:[%s1992 + $0x68] sm:$0xf]
        %v2020 = vld [vmem:[%s1992 + $0x6c] sm:$0xf]
        %v2021 = vld [vmem:[%s1992 + $0x70] sm:$0xf]
        %v2022 = vld [vmem:[%s1992 + $0x74] sm:$0xf]
        %v2023 = vld [vmem:[%s1992 + $0x78] sm:$0xf]
        %v2024 = vld [vmem:[%s1992 + $0x7c] sm:$0xf]
        %s2025 = scalar_lea.vmem [#allocation3], 16
        %v2026 = vld [vmem:[%s2025] sm:$0xf]
        %v2027 = vld [vmem:[%s2025 + $0x4] sm:$0xf]
        %v2028 = vld [vmem:[%s2025 + $0x8] sm:$0xf]
        %v2029 = vld [vmem:[%s2025 + $0xc] sm:$0xf]
        %v2030 = vld [vmem:[%s2025 + $0x10] sm:$0xf]
        %v2031 = vld [vmem:[%s2025 + $0x14] sm:$0xf]
        %v2032 = vld [vmem:[%s2025 + $0x18] sm:$0xf]
        %v2033 = vld [vmem:[%s2025 + $0x1c] sm:$0xf]
        %v2034 = vld [vmem:[%s2025 + $0x20] sm:$0xf]
        %v2035 = vld [vmem:[%s2025 + $0x24] sm:$0xf]
        %v2036 = vld [vmem:[%s2025 + $0x28] sm:$0xf]
        %v2037 = vld [vmem:[%s2025 + $0x2c] sm:$0xf]
        %v2038 = vld [vmem:[%s2025 + $0x30] sm:$0xf]
        %v2039 = vld [vmem:[%s2025 + $0x34] sm:$0xf]
        %v2040 = vld [vmem:[%s2025 + $0x38] sm:$0xf]
        %v2041 = vld [vmem:[%s2025 + $0x3c] sm:$0xf]
        %v2042 = vld [vmem:[%s2025 + $0x40] sm:$0xf]
        %v2043 = vld [vmem:[%s2025 + $0x44] sm:$0xf]
        %v2044 = vld [vmem:[%s2025 + $0x48] sm:$0xf]
        %v2045 = vld [vmem:[%s2025 + $0x4c] sm:$0xf]
        %v2046 = vld [vmem:[%s2025 + $0x50] sm:$0xf]
        %v2047 = vld [vmem:[%s2025 + $0x54] sm:$0xf]
        %v2048 = vld [vmem:[%s2025 + $0x58] sm:$0xf]
        %v2049 = vld [vmem:[%s2025 + $0x5c] sm:$0xf]
        %v2050 = vld [vmem:[%s2025 + $0x60] sm:$0xf]
        %v2051 = vld [vmem:[%s2025 + $0x64] sm:$0xf]
        %v2052 = vld [vmem:[%s2025 + $0x68] sm:$0xf]
        %v2053 = vld [vmem:[%s2025 + $0x6c] sm:$0xf]
        %v2054 = vld [vmem:[%s2025 + $0x70] sm:$0xf]
        %v2055 = vld [vmem:[%s2025 + $0x74] sm:$0xf]
        %v2056 = vld [vmem:[%s2025 + $0x78] sm:$0xf]
        %v2057 = vld [vmem:[%s2025 + $0x7c] sm:$0xf]
        %v2090 = vunpack.c.l.b16 %v1960
        %v2091 = vunpack.c.l.b16 %v1961
        %v2092 = vunpack.c.l.b16 %v1962
        %v2093 = vunpack.c.l.b16 %v1963
        %v2094 = vunpack.c.l.b16 %v1964
        %v2095 = vunpack.c.l.b16 %v1965
        %v2096 = vunpack.c.l.b16 %v1966
        %v2097 = vunpack.c.l.b16 %v1967
        %v2098 = vunpack.c.l.b16 %v1968
        %v2099 = vunpack.c.l.b16 %v1969
        %v2100 = vunpack.c.l.b16 %v1970
        %v2101 = vunpack.c.l.b16 %v1971
        %v2102 = vunpack.c.l.b16 %v1972
        %v2103 = vunpack.c.l.b16 %v1973
        %v2104 = vunpack.c.l.b16 %v1974
        %v2105 = vunpack.c.l.b16 %v1975
        %v2106 = vunpack.c.l.b16 %v1976
        %v2107 = vunpack.c.l.b16 %v1977
        %v2108 = vunpack.c.l.b16 %v1978
        %v2109 = vunpack.c.l.b16 %v1979
        %v2110 = vunpack.c.l.b16 %v1980
        %v2111 = vunpack.c.l.b16 %v1981
        %v2112 = vunpack.c.l.b16 %v1982
        %v2113 = vunpack.c.l.b16 %v1983
        %v2114 = vunpack.c.l.b16 %v1984
        %v2115 = vunpack.c.l.b16 %v1985
        %v2116 = vunpack.c.l.b16 %v1986
        %v2117 = vunpack.c.l.b16 %v1987
        %v2118 = vunpack.c.l.b16 %v1988
        %v2119 = vunpack.c.l.b16 %v1989
        %v2120 = vunpack.c.l.b16 %v1990
        %v2121 = vunpack.c.l.b16 %v1991
        %v2122 = vpack.c.b16 %v2091, %v2090
        %v2123 = vpack.c.b16 %v2093, %v2092
        %v2124 = vpack.c.b16 %v2095, %v2094
        %v2125 = vpack.c.b16 %v2097, %v2096
        %v2126 = vpack.c.b16 %v2099, %v2098
        %v2127 = vpack.c.b16 %v2101, %v2100
        %v2128 = vpack.c.b16 %v2103, %v2102
        %v2129 = vpack.c.b16 %v2105, %v2104
        %v2130 = vpack.c.b16 %v2107, %v2106
        %v2131 = vpack.c.b16 %v2109, %v2108
        %v2132 = vpack.c.b16 %v2111, %v2110
        %v2133 = vpack.c.b16 %v2113, %v2112
        %v2134 = vpack.c.b16 %v2115, %v2114
        %v2135 = vpack.c.b16 %v2117, %v2116
        %v2136 = vpack.c.b16 %v2119, %v2118
        %v2137 = vpack.c.b16 %v2121, %v2120
        %v2170 = vunpack.c.l.b16 %v1993
        %v2171 = vunpack.c.l.b16 %v1994
        %v2172 = vunpack.c.l.b16 %v1995
        %v2173 = vunpack.c.l.b16 %v1996
        %v2174 = vunpack.c.l.b16 %v1997
        %v2175 = vunpack.c.l.b16 %v1998
        %v2176 = vunpack.c.l.b16 %v1999
        %v2177 = vunpack.c.l.b16 %v2000
        %v2178 = vunpack.c.l.b16 %v2001
        %v2179 = vunpack.c.l.b16 %v2002
        %v2180 = vunpack.c.l.b16 %v2003
        %v2181 = vunpack.c.l.b16 %v2004
        %v2182 = vunpack.c.l.b16 %v2005
        %v2183 = vunpack.c.l.b16 %v2006
        %v2184 = vunpack.c.l.b16 %v2007
        %v2185 = vunpack.c.l.b16 %v2008
        %v2186 = vunpack.c.l.b16 %v2009
        %v2187 = vunpack.c.l.b16 %v2010
        %v2188 = vunpack.c.l.b16 %v2011
        %v2189 = vunpack.c.l.b16 %v2012
        %v2190 = vunpack.c.l.b16 %v2013
        %v2191 = vunpack.c.l.b16 %v2014
        %v2192 = vunpack.c.l.b16 %v2015
        %v2193 = vunpack.c.l.b16 %v2016
        %v2194 = vunpack.c.l.b16 %v2017
        %v2195 = vunpack.c.l.b16 %v2018
        %v2196 = vunpack.c.l.b16 %v2019
        %v2197 = vunpack.c.l.b16 %v2020
        %v2198 = vunpack.c.l.b16 %v2021
        %v2199 = vunpack.c.l.b16 %v2022
        %v2200 = vunpack.c.l.b16 %v2023
        %v2201 = vunpack.c.l.b16 %v2024
        %v2202 = vpack.c.b16 %v2171, %v2170
        %v2203 = vpack.c.b16 %v2173, %v2172
        %v2204 = vpack.c.b16 %v2175, %v2174
        %v2205 = vpack.c.b16 %v2177, %v2176
        %v2206 = vpack.c.b16 %v2179, %v2178
        %v2207 = vpack.c.b16 %v2181, %v2180
        %v2208 = vpack.c.b16 %v2183, %v2182
        %v2209 = vpack.c.b16 %v2185, %v2184
        %v2210 = vpack.c.b16 %v2187, %v2186
        %v2211 = vpack.c.b16 %v2189, %v2188
        %v2212 = vpack.c.b16 %v2191, %v2190
        %v2213 = vpack.c.b16 %v2193, %v2192
        %v2214 = vpack.c.b16 %v2195, %v2194
        %v2215 = vpack.c.b16 %v2197, %v2196
        %v2216 = vpack.c.b16 %v2199, %v2198
        %v2217 = vpack.c.b16 %v2201, %v2200
        %2218 = vrot.lane.b32.xlu0 %v2202, 6
        %v2219 = vpop.permute.xlu0 %2218
        %2220 = vrot.lane.b32.xlu0 %v2203, 6
        %v2221 = vpop.permute.xlu0 %2220
        %2222 = vrot.lane.b32.xlu0 %v2204, 6
        %v2223 = vpop.permute.xlu0 %2222
        %2224 = vrot.lane.b32.xlu0 %v2205, 6
        %v2225 = vpop.permute.xlu0 %2224
        %2226 = vrot.lane.b32.xlu0 %v2206, 6
        %v2227 = vpop.permute.xlu0 %2226
        %2228 = vrot.lane.b32.xlu0 %v2207, 6
        %v2229 = vpop.permute.xlu0 %2228
        %2230 = vrot.lane.b32.xlu0 %v2208, 6
        %v2231 = vpop.permute.xlu0 %2230
        %2232 = vrot.lane.b32.xlu0 %v2209, 6
        %v2233 = vpop.permute.xlu0 %2232
        %2234 = vrot.lane.b32.xlu0 %v2210, 6
        %v2235 = vpop.permute.xlu0 %2234
        %2236 = vrot.lane.b32.xlu0 %v2211, 6
        %v2237 = vpop.permute.xlu0 %2236
        %2238 = vrot.lane.b32.xlu0 %v2212, 6
        %v2239 = vpop.permute.xlu0 %2238
        %2240 = vrot.lane.b32.xlu0 %v2213, 6
        %v2241 = vpop.permute.xlu0 %2240
        %2242 = vrot.lane.b32.xlu0 %v2214, 6
        %v2243 = vpop.permute.xlu0 %2242
        %2244 = vrot.lane.b32.xlu0 %v2215, 6
        %v2245 = vpop.permute.xlu0 %2244
        %2246 = vrot.lane.b32.xlu0 %v2216, 6
        %v2247 = vpop.permute.xlu0 %2246
        %2248 = vrot.lane.b32.xlu0 %v2217, 6
        %v2249 = vpop.permute.xlu0 %2248
        %v2282 = vunpack.c.l.b16 %v2026
        %v2283 = vunpack.c.l.b16 %v2027
        %v2284 = vunpack.c.l.b16 %v2028
        %v2285 = vunpack.c.l.b16 %v2029
        %v2286 = vunpack.c.l.b16 %v2030
        %v2287 = vunpack.c.l.b16 %v2031
        %v2288 = vunpack.c.l.b16 %v2032
        %v2289 = vunpack.c.l.b16 %v2033
        %v2290 = vunpack.c.l.b16 %v2034
        %v2291 = vunpack.c.l.b16 %v2035
        %v2292 = vunpack.c.l.b16 %v2036
        %v2293 = vunpack.c.l.b16 %v2037
        %v2294 = vunpack.c.l.b16 %v2038
        %v2295 = vunpack.c.l.b16 %v2039
        %v2296 = vunpack.c.l.b16 %v2040
        %v2297 = vunpack.c.l.b16 %v2041
        %v2298 = vunpack.c.l.b16 %v2042
        %v2299 = vunpack.c.l.b16 %v2043
        %v2300 = vunpack.c.l.b16 %v2044
        %v2301 = vunpack.c.l.b16 %v2045
        %v2302 = vunpack.c.l.b16 %v2046
        %v2303 = vunpack.c.l.b16 %v2047
        %v2304 = vunpack.c.l.b16 %v2048
        %v2305 = vunpack.c.l.b16 %v2049
        %v2306 = vunpack.c.l.b16 %v2050
        %v2307 = vunpack.c.l.b16 %v2051
        %v2308 = vunpack.c.l.b16 %v2052
        %v2309 = vunpack.c.l.b16 %v2053
        %v2310 = vunpack.c.l.b16 %v2054
        %v2311 = vunpack.c.l.b16 %v2055
        %v2312 = vunpack.c.l.b16 %v2056
        %v2313 = vunpack.c.l.b16 %v2057
        %v2314 = vpack.c.b16 %v2283, %v2282
        %v2315 = vpack.c.b16 %v2285, %v2284
        %v2316 = vpack.c.b16 %v2287, %v2286
        %v2317 = vpack.c.b16 %v2289, %v2288
        %v2318 = vpack.c.b16 %v2291, %v2290
        %v2319 = vpack.c.b16 %v2293, %v2292
        %v2320 = vpack.c.b16 %v2295, %v2294
        %v2321 = vpack.c.b16 %v2297, %v2296
        %v2322 = vpack.c.b16 %v2299, %v2298
        %v2323 = vpack.c.b16 %v2301, %v2300
        %v2324 = vpack.c.b16 %v2303, %v2302
        %v2325 = vpack.c.b16 %v2305, %v2304
        %v2326 = vpack.c.b16 %v2307, %v2306
        %v2327 = vpack.c.b16 %v2309, %v2308
        %v2328 = vpack.c.b16 %v2311, %v2310
        %v2329 = vpack.c.b16 %v2313, %v2312
        %2330 = vrot.lane.b32.xlu0 %v2314, 12
        %v2331 = vpop.permute.xlu0 %2330
        %2332 = vrot.lane.b32.xlu0 %v2315, 12
        %v2333 = vpop.permute.xlu0 %2332
        %2334 = vrot.lane.b32.xlu0 %v2316, 12
        %v2335 = vpop.permute.xlu0 %2334
        %2336 = vrot.lane.b32.xlu0 %v2317, 12
        %v2337 = vpop.permute.xlu0 %2336
        %2338 = vrot.lane.b32.xlu0 %v2318, 12
        %v2339 = vpop.permute.xlu0 %2338
        %2340 = vrot.lane.b32.xlu0 %v2319, 12
        %v2341 = vpop.permute.xlu0 %2340
        %2342 = vrot.lane.b32.xlu0 %v2320, 12
        %v2343 = vpop.permute.xlu0 %2342
        %2344 = vrot.lane.b32.xlu0 %v2321, 12
        %v2345 = vpop.permute.xlu0 %2344
        %2346 = vrot.lane.b32.xlu0 %v2322, 12
        %v2347 = vpop.permute.xlu0 %2346
        %2348 = vrot.lane.b32.xlu0 %v2323, 12
        %v2349 = vpop.permute.xlu0 %2348
        %2350 = vrot.lane.b32.xlu0 %v2324, 12
        %v2351 = vpop.permute.xlu0 %2350
        %2352 = vrot.lane.b32.xlu0 %v2325, 12
        %v2353 = vpop.permute.xlu0 %2352
        %2354 = vrot.lane.b32.xlu0 %v2326, 12
        %v2355 = vpop.permute.xlu0 %2354
        %2356 = vrot.lane.b32.xlu0 %v2327, 12
        %v2357 = vpop.permute.xlu0 %2356
        %2358 = vrot.lane.b32.xlu0 %v2328, 12
        %v2359 = vpop.permute.xlu0 %2358
        %2360 = vrot.lane.b32.xlu0 %v2329, 12
        %v2361 = vpop.permute.xlu0 %2360
        %vm2362 = vcmask 48128
        %v2365 = vsel %vm2362, %v2122, %v2219
        %v2368 = vsel %vm2362, %v2123, %v2221
        %v2371 = vsel %vm2362, %v2124, %v2223
        %v2374 = vsel %vm2362, %v2125, %v2225
        %v2377 = vsel %vm2362, %v2126, %v2227
        %v2380 = vsel %vm2362, %v2127, %v2229
        %v2383 = vsel %vm2362, %v2128, %v2231
        %v2386 = vsel %vm2362, %v2129, %v2233
        %v2389 = vsel %vm2362, %v2130, %v2235
        %v2392 = vsel %vm2362, %v2131, %v2237
        %v2395 = vsel %vm2362, %v2132, %v2239
        %v2398 = vsel %vm2362, %v2133, %v2241
        %v2401 = vsel %vm2362, %v2134, %v2243
        %v2404 = vsel %vm2362, %v2135, %v2245
        %v2407 = vsel %vm2362, %v2136, %v2247
        %v2410 = vsel %vm2362, %v2137, %v2249
        %vm2411 = vcmask 97280
        %v2413 = vsel %vm2411, %v2365, %v2331
        %v2415 = vsel %vm2411, %v2368, %v2333
        %v2417 = vsel %vm2411, %v2371, %v2335
        %v2419 = vsel %vm2411, %v2374, %v2337
        %v2421 = vsel %vm2411, %v2377, %v2339
        %v2423 = vsel %vm2411, %v2380, %v2341
        %v2425 = vsel %vm2411, %v2383, %v2343
        %v2427 = vsel %vm2411, %v2386, %v2345
        %v2429 = vsel %vm2411, %v2389, %v2347
        %v2431 = vsel %vm2411, %v2392, %v2349
        %v2433 = vsel %vm2411, %v2395, %v2351
        %v2435 = vsel %vm2411, %v2398, %v2353
        %v2437 = vsel %vm2411, %v2401, %v2355
        %v2439 = vsel %vm2411, %v2404, %v2357
        %v2441 = vsel %vm2411, %v2407, %v2359
        %v2443 = vsel %vm2411, %v2410, %v2361
        %v2444 = vld [vmem:[%s1] sm:$0xf]
        %v2445 = vld [vmem:[%s1 + $0x4] sm:$0xf]
        %v2446 = vld [vmem:[%s1 + $0x8] sm:$0x1]
        %v2450 = vunpack.c.l.b16 %v2444
        %v2451 = vunpack.c.l.b16 %v2445
        %v2452 = vunpack.c.l.b16 %v2446
        %v2453 = vpack.c.b16 %v2451, %v2450
        %v2454 = vpack.c.b16 %v2452, %v2452
        %vm2456 = vcmask 146432
        %v2457 = vsel %vm2456, %v2413, 0
        %v2459 = vsel %vm2456, %v2415, 0
        %v2461 = vsel %vm2456, %v2417, 0
        %v2463 = vsel %vm2456, %v2419, 0
        %v2465 = vsel %vm2456, %v2421, 0
        %v2467 = vsel %vm2456, %v2423, 0
        %v2469 = vsel %vm2456, %v2425, 0
        %v2471 = vsel %vm2456, %v2427, 0
        %v2473 = vsel %vm2456, %v2429, 0
        %v2475 = vsel %vm2456, %v2431, 0
        %v2477 = vsel %vm2456, %v2433, 0
        %v2479 = vsel %vm2456, %v2435, 0
        %v2481 = vsel %vm2456, %v2437, 0
        %v2483 = vsel %vm2456, %v2439, 0
        %v2485 = vsel %vm2456, %v2441, 0
        %v2487 = vsel %vm2456, %v2443, 0
        %vm2489 = vcmask 1040384
        %v2491 = vsel %vm2489, %v2454, 0
        %2493 = vmatpush.bf16.msra.mxu0 0
        %2494 = vmatpush.bf16.msra.mxu0 0
        %2495 = vmatpush.bf16.msra.mxu0 0
        %2496 = vmatpush.bf16.msra.mxu0 0
        %2497 = vmatpush.bf16.msra.mxu0 0
        %2498 = vmatpush.bf16.msra.mxu0 0
        %2499 = vmatpush.bf16.msra.mxu0 %v2491
        %2500 = vmatpush.bf16.msra.mxu0 %v2453
        %2501 = vmatmul.bf16.gmra.mxu0 %v2457
        %v2502 = vpop.f32.mrf.mxu0
        %v2503 = vadd.f32 0.0, %v2502
        %v2504 = vpop.f32.mrf.mxu0
        %v2505 = vadd.f32 0.0, %v2504
        %2506 = vmatmul.bf16.gmra.mxu0 %v2459
        %v2507 = vpop.f32.mrf.mxu0
        %v2508 = vadd.f32 0.0, %v2507
        %v2509 = vpop.f32.mrf.mxu0
        %v2510 = vadd.f32 0.0, %v2509
        %2511 = vmatmul.bf16.gmra.mxu0 %v2461
        %v2512 = vpop.f32.mrf.mxu0
        %v2513 = vadd.f32 0.0, %v2512
        %v2514 = vpop.f32.mrf.mxu0
        %v2515 = vadd.f32 0.0, %v2514
        %2516 = vmatmul.bf16.gmra.mxu0 %v2463
        %v2517 = vpop.f32.mrf.mxu0
        %v2518 = vadd.f32 0.0, %v2517
        %v2519 = vpop.f32.mrf.mxu0
        %v2520 = vadd.f32 0.0, %v2519
        %2521 = vmatmul.bf16.gmra.mxu0 %v2465
        %v2522 = vpop.f32.mrf.mxu0
        %v2523 = vadd.f32 0.0, %v2522
        %v2524 = vpop.f32.mrf.mxu0
        %v2525 = vadd.f32 0.0, %v2524
        %2526 = vmatmul.bf16.gmra.mxu0 %v2467
        %v2527 = vpop.f32.mrf.mxu0
        %v2528 = vadd.f32 0.0, %v2527
        %v2529 = vpop.f32.mrf.mxu0
        %v2530 = vadd.f32 0.0, %v2529
        %2531 = vmatmul.bf16.gmra.mxu0 %v2469
        %v2532 = vpop.f32.mrf.mxu0
        %v2533 = vadd.f32 0.0, %v2532
        %v2534 = vpop.f32.mrf.mxu0
        %v2535 = vadd.f32 0.0, %v2534
        %2536 = vmatmul.bf16.gmra.mxu0 %v2471
        %v2537 = vpop.f32.mrf.mxu0
        %v2538 = vadd.f32 0.0, %v2537
        %v2539 = vpop.f32.mrf.mxu0
        %v2540 = vadd.f32 0.0, %v2539
        %2541 = vmatmul.bf16.gmra.mxu0 %v2473
        %v2542 = vpop.f32.mrf.mxu0
        %v2543 = vadd.f32 0.0, %v2542
        %v2544 = vpop.f32.mrf.mxu0
        %v2545 = vadd.f32 0.0, %v2544
        %2546 = vmatmul.bf16.gmra.mxu0 %v2475
        %v2547 = vpop.f32.mrf.mxu0
        %v2548 = vadd.f32 0.0, %v2547
        %v2549 = vpop.f32.mrf.mxu0
        %v2550 = vadd.f32 0.0, %v2549
        %2551 = vmatmul.bf16.gmra.mxu0 %v2477
        %v2552 = vpop.f32.mrf.mxu0
        %v2553 = vadd.f32 0.0, %v2552
        %v2554 = vpop.f32.mrf.mxu0
        %v2555 = vadd.f32 0.0, %v2554
        %2556 = vmatmul.bf16.gmra.mxu0 %v2479
        %v2557 = vpop.f32.mrf.mxu0
        %v2558 = vadd.f32 0.0, %v2557
        %v2559 = vpop.f32.mrf.mxu0
        %v2560 = vadd.f32 0.0, %v2559
        %2561 = vmatmul.bf16.gmra.mxu0 %v2481
        %v2562 = vpop.f32.mrf.mxu0
        %v2563 = vadd.f32 0.0, %v2562
        %v2564 = vpop.f32.mrf.mxu0
        %v2565 = vadd.f32 0.0, %v2564
        %2566 = vmatmul.bf16.gmra.mxu0 %v2483
        %v2567 = vpop.f32.mrf.mxu0
        %v2568 = vadd.f32 0.0, %v2567
        %v2569 = vpop.f32.mrf.mxu0
        %v2570 = vadd.f32 0.0, %v2569
        %2571 = vmatmul.bf16.gmra.mxu0 %v2485
        %v2572 = vpop.f32.mrf.mxu0
        %v2573 = vadd.f32 0.0, %v2572
        %v2574 = vpop.f32.mrf.mxu0
        %v2575 = vadd.f32 0.0, %v2574
        %2576 = vmatmul.bf16.gmra.mxu0 %v2487
        %v2577 = vpop.f32.mrf.mxu0
        %v2578 = vadd.f32 0.0, %v2577
        %v2579 = vpop.f32.mrf.mxu0
        %v2580 = vadd.f32 0.0, %v2579
        %2581 = vdwg.mxu0
        %v2582 = vld [vmem:[%s2] sm:$0x1]
        %v2584 = vperm.slane %v2582, 0
        %v2586 = vmul.f32 %v2503, %v2584
        %v2587 = vmul.f32 %v2505, %v2584
        %v2588 = vmul.f32 %v2508, %v2584
        %v2589 = vmul.f32 %v2510, %v2584
        %v2590 = vmul.f32 %v2513, %v2584
        %v2591 = vmul.f32 %v2515, %v2584
        %v2592 = vmul.f32 %v2518, %v2584
        %v2593 = vmul.f32 %v2520, %v2584
        %v2594 = vmul.f32 %v2523, %v2584
        %v2595 = vmul.f32 %v2525, %v2584
        %v2596 = vmul.f32 %v2528, %v2584
        %v2597 = vmul.f32 %v2530, %v2584
        %v2598 = vmul.f32 %v2533, %v2584
        %v2599 = vmul.f32 %v2535, %v2584
        %v2600 = vmul.f32 %v2538, %v2584
        %v2601 = vmul.f32 %v2540, %v2584
        %v2602 = vmul.f32 %v2543, %v2584
        %v2603 = vmul.f32 %v2545, %v2584
        %v2604 = vmul.f32 %v2548, %v2584
        %v2605 = vmul.f32 %v2550, %v2584
        %v2606 = vmul.f32 %v2553, %v2584
        %v2607 = vmul.f32 %v2555, %v2584
        %v2608 = vmul.f32 %v2558, %v2584
        %v2609 = vmul.f32 %v2560, %v2584
        %v2610 = vmul.f32 %v2563, %v2584
        %v2611 = vmul.f32 %v2565, %v2584
        %v2612 = vmul.f32 %v2568, %v2584
        %v2613 = vmul.f32 %v2570, %v2584
        %v2614 = vmul.f32 %v2573, %v2584
        %v2615 = vmul.f32 %v2575, %v2584
        %v2616 = vmul.f32 %v2578, %v2584
        %v2617 = vmul.f32 %v2580, %v2584
        %v2618 = vld [vmem:[%s3] sm:$0x1]
        %v2620 = vperm.slane %v2618, 0
        %v2622 = vadd.f32 %v2586, %v2620
        %v2623 = vadd.f32 %v2587, %v2620
        %v2624 = vadd.f32 %v2588, %v2620
        %v2625 = vadd.f32 %v2589, %v2620
        %v2626 = vadd.f32 %v2590, %v2620
        %v2627 = vadd.f32 %v2591, %v2620
        %v2628 = vadd.f32 %v2592, %v2620
        %v2629 = vadd.f32 %v2593, %v2620
        %v2630 = vadd.f32 %v2594, %v2620
        %v2631 = vadd.f32 %v2595, %v2620
        %v2632 = vadd.f32 %v2596, %v2620
        %v2633 = vadd.f32 %v2597, %v2620
        %v2634 = vadd.f32 %v2598, %v2620
        %v2635 = vadd.f32 %v2599, %v2620
        %v2636 = vadd.f32 %v2600, %v2620
        %v2637 = vadd.f32 %v2601, %v2620
        %v2638 = vadd.f32 %v2602, %v2620
        %v2639 = vadd.f32 %v2603, %v2620
        %v2640 = vadd.f32 %v2604, %v2620
        %v2641 = vadd.f32 %v2605, %v2620
        %v2642 = vadd.f32 %v2606, %v2620
        %v2643 = vadd.f32 %v2607, %v2620
        %v2644 = vadd.f32 %v2608, %v2620
        %v2645 = vadd.f32 %v2609, %v2620
        %v2646 = vadd.f32 %v2610, %v2620
        %v2647 = vadd.f32 %v2611, %v2620
        %v2648 = vadd.f32 %v2612, %v2620
        %v2649 = vadd.f32 %v2613, %v2620
        %v2650 = vadd.f32 %v2614, %v2620
        %v2651 = vadd.f32 %v2615, %v2620
        %v2652 = vadd.f32 %v2616, %v2620
        %v2653 = vadd.f32 %v2617, %v2620
        %vm2654 = vcmp.ge.f32.partialorder %v2622, 0.0
        %vm2655 = vcmp.ge.f32.partialorder %v2623, 0.0
        %vm2656 = vcmp.ge.f32.partialorder %v2624, 0.0
        %vm2657 = vcmp.ge.f32.partialorder %v2625, 0.0
        %vm2658 = vcmp.ge.f32.partialorder %v2626, 0.0
        %vm2659 = vcmp.ge.f32.partialorder %v2627, 0.0
        %vm2660 = vcmp.ge.f32.partialorder %v2628, 0.0
        %vm2661 = vcmp.ge.f32.partialorder %v2629, 0.0
        %vm2662 = vcmp.ge.f32.partialorder %v2630, 0.0
        %vm2663 = vcmp.ge.f32.partialorder %v2631, 0.0
        %vm2664 = vcmp.ge.f32.partialorder %v2632, 0.0
        %vm2665 = vcmp.ge.f32.partialorder %v2633, 0.0
        %vm2666 = vcmp.ge.f32.partialorder %v2634, 0.0
        %vm2667 = vcmp.ge.f32.partialorder %v2635, 0.0
        %vm2668 = vcmp.ge.f32.partialorder %v2636, 0.0
        %vm2669 = vcmp.ge.f32.partialorder %v2637, 0.0
        %vm2670 = vcmp.ge.f32.partialorder %v2638, 0.0
        %vm2671 = vcmp.ge.f32.partialorder %v2639, 0.0
        %vm2672 = vcmp.ge.f32.partialorder %v2640, 0.0
        %vm2673 = vcmp.ge.f32.partialorder %v2641, 0.0
        %vm2674 = vcmp.ge.f32.partialorder %v2642, 0.0
        %vm2675 = vcmp.ge.f32.partialorder %v2643, 0.0
        %vm2676 = vcmp.ge.f32.partialorder %v2644, 0.0
        %vm2677 = vcmp.ge.f32.partialorder %v2645, 0.0
        %vm2678 = vcmp.ge.f32.partialorder %v2646, 0.0
        %vm2679 = vcmp.ge.f32.partialorder %v2647, 0.0
        %vm2680 = vcmp.ge.f32.partialorder %v2648, 0.0
        %vm2681 = vcmp.ge.f32.partialorder %v2649, 0.0
        %vm2682 = vcmp.ge.f32.partialorder %v2650, 0.0
        %vm2683 = vcmp.ge.f32.partialorder %v2651, 0.0
        %vm2684 = vcmp.ge.f32.partialorder %v2652, 0.0
        %vm2685 = vcmp.ge.f32.partialorder %v2653, 0.0
        %v2686 = vmul.f32 %v2622, 0.01
        %v2687 = vmul.f32 %v2623, 0.01
        %v2688 = vmul.f32 %v2624, 0.01
        %v2689 = vmul.f32 %v2625, 0.01
        %v2690 = vmul.f32 %v2626, 0.01
        %v2691 = vmul.f32 %v2627, 0.01
        %v2692 = vmul.f32 %v2628, 0.01
        %v2693 = vmul.f32 %v2629, 0.01
        %v2694 = vmul.f32 %v2630, 0.01
        %v2695 = vmul.f32 %v2631, 0.01
        %v2696 = vmul.f32 %v2632, 0.01
        %v2697 = vmul.f32 %v2633, 0.01
        %v2698 = vmul.f32 %v2634, 0.01
        %v2699 = vmul.f32 %v2635, 0.01
        %v2700 = vmul.f32 %v2636, 0.01
        %v2701 = vmul.f32 %v2637, 0.01
        %v2702 = vmul.f32 %v2638, 0.01
        %v2703 = vmul.f32 %v2639, 0.01
        %v2704 = vmul.f32 %v2640, 0.01
        %v2705 = vmul.f32 %v2641, 0.01
        %v2706 = vmul.f32 %v2642, 0.01
        %v2707 = vmul.f32 %v2643, 0.01
        %v2708 = vmul.f32 %v2644, 0.01
        %v2709 = vmul.f32 %v2645, 0.01
        %v2710 = vmul.f32 %v2646, 0.01
        %v2711 = vmul.f32 %v2647, 0.01
        %v2712 = vmul.f32 %v2648, 0.01
        %v2713 = vmul.f32 %v2649, 0.01
        %v2714 = vmul.f32 %v2650, 0.01
        %v2715 = vmul.f32 %v2651, 0.01
        %v2716 = vmul.f32 %v2652, 0.01
        %v2717 = vmul.f32 %v2653, 0.01
        %v2718 = vsel %vm2654, %v2622, %v2686
        %v2719 = vsel %vm2655, %v2623, %v2687
        %v2720 = vsel %vm2656, %v2624, %v2688
        %v2721 = vsel %vm2657, %v2625, %v2689
        %v2722 = vsel %vm2658, %v2626, %v2690
        %v2723 = vsel %vm2659, %v2627, %v2691
        %v2724 = vsel %vm2660, %v2628, %v2692
        %v2725 = vsel %vm2661, %v2629, %v2693
        %v2726 = vsel %vm2662, %v2630, %v2694
        %v2727 = vsel %vm2663, %v2631, %v2695
        %v2728 = vsel %vm2664, %v2632, %v2696
        %v2729 = vsel %vm2665, %v2633, %v2697
        %v2730 = vsel %vm2666, %v2634, %v2698
        %v2731 = vsel %vm2667, %v2635, %v2699
        %v2732 = vsel %vm2668, %v2636, %v2700
        %v2733 = vsel %vm2669, %v2637, %v2701
        %v2734 = vsel %vm2670, %v2638, %v2702
        %v2735 = vsel %vm2671, %v2639, %v2703
        %v2736 = vsel %vm2672, %v2640, %v2704
        %v2737 = vsel %vm2673, %v2641, %v2705
        %v2738 = vsel %vm2674, %v2642, %v2706
        %v2739 = vsel %vm2675, %v2643, %v2707
        %v2740 = vsel %vm2676, %v2644, %v2708
        %v2741 = vsel %vm2677, %v2645, %v2709
        %v2742 = vsel %vm2678, %v2646, %v2710
        %v2743 = vsel %vm2679, %v2647, %v2711
        %v2744 = vsel %vm2680, %v2648, %v2712
        %v2745 = vsel %vm2681, %v2649, %v2713
        %v2746 = vsel %vm2682, %v2650, %v2714
        %v2747 = vsel %vm2683, %v2651, %v2715
        %v2748 = vsel %vm2684, %v2652, %v2716
        %v2749 = vsel %vm2685, %v2653, %v2717
        %v2750 = vpack.c.bf16 %v2718, %v2718
        %v2751 = vpack.c.bf16 %v2719, %v2719
        %v2752 = vpack.c.bf16 %v2720, %v2720
        %v2753 = vpack.c.bf16 %v2721, %v2721
        %v2754 = vpack.c.bf16 %v2722, %v2722
        %v2755 = vpack.c.bf16 %v2723, %v2723
        %v2756 = vpack.c.bf16 %v2724, %v2724
        %v2757 = vpack.c.bf16 %v2725, %v2725
        %v2758 = vpack.c.bf16 %v2726, %v2726
        %v2759 = vpack.c.bf16 %v2727, %v2727
        %v2760 = vpack.c.bf16 %v2728, %v2728
        %v2761 = vpack.c.bf16 %v2729, %v2729
        %v2762 = vpack.c.bf16 %v2730, %v2730
        %v2763 = vpack.c.bf16 %v2731, %v2731
        %v2764 = vpack.c.bf16 %v2732, %v2732
        %v2765 = vpack.c.bf16 %v2733, %v2733
        %v2766 = vpack.c.bf16 %v2734, %v2734
        %v2767 = vpack.c.bf16 %v2735, %v2735
        %v2768 = vpack.c.bf16 %v2736, %v2736
        %v2769 = vpack.c.bf16 %v2737, %v2737
        %v2770 = vpack.c.bf16 %v2738, %v2738
        %v2771 = vpack.c.bf16 %v2739, %v2739
        %v2772 = vpack.c.bf16 %v2740, %v2740
        %v2773 = vpack.c.bf16 %v2741, %v2741
        %v2774 = vpack.c.bf16 %v2742, %v2742
        %v2775 = vpack.c.bf16 %v2743, %v2743
        %v2776 = vpack.c.bf16 %v2744, %v2744
        %v2777 = vpack.c.bf16 %v2745, %v2745
        %v2778 = vpack.c.bf16 %v2746, %v2746
        %v2779 = vpack.c.bf16 %v2747, %v2747
        %v2780 = vpack.c.bf16 %v2748, %v2748
        %v2781 = vpack.c.bf16 %v2749, %v2749
        %v2783 = vshrl.u32 %v2750, 16
        %v2785 = vrot.slane %v2783, 7
        %v2786 = vshll.u32 %v2750, 16
        %v2788 = vor.u32 %v2785, %v2786
        %v2789 = vrot.slane %v2785, 4
        %v2791 = vshrl.u32 %v2751, 16
        %v2793 = vrot.slane %v2791, 7
        %v2794 = vshll.u32 %v2751, 16
        %v2796 = vor.u32 %v2793, %v2794
        %v2797 = vsel %vm433, %v2789, %v2796
        %v2798 = vrot.slane %v2793, 4
        %v2800 = vshrl.u32 %v2752, 16
        %v2802 = vrot.slane %v2800, 7
        %v2803 = vshll.u32 %v2752, 16
        %v2805 = vor.u32 %v2802, %v2803
        %v2806 = vrot.slane %v2802, 4
        %v2808 = vshrl.u32 %v2753, 16
        %v2810 = vrot.slane %v2808, 7
        %v2811 = vshll.u32 %v2753, 16
        %v2813 = vor.u32 %v2810, %v2811
        %v2814 = vsel %vm433, %v2806, %v2813
        %v2815 = vrot.slane %v2810, 4
        %v2817 = vshrl.u32 %v2754, 16
        %v2819 = vrot.slane %v2817, 7
        %v2820 = vshll.u32 %v2754, 16
        %v2822 = vor.u32 %v2819, %v2820
        %v2823 = vrot.slane %v2819, 4
        %v2825 = vshrl.u32 %v2755, 16
        %v2827 = vrot.slane %v2825, 7
        %v2828 = vshll.u32 %v2755, 16
        %v2830 = vor.u32 %v2827, %v2828
        %v2831 = vsel %vm433, %v2823, %v2830
        %v2832 = vrot.slane %v2827, 4
        %v2834 = vshrl.u32 %v2756, 16
        %v2836 = vrot.slane %v2834, 7
        %v2837 = vshll.u32 %v2756, 16
        %v2839 = vor.u32 %v2836, %v2837
        %v2840 = vrot.slane %v2836, 4
        %v2842 = vshrl.u32 %v2757, 16
        %v2844 = vrot.slane %v2842, 7
        %v2845 = vshll.u32 %v2757, 16
        %v2847 = vor.u32 %v2844, %v2845
        %v2848 = vsel %vm433, %v2840, %v2847
        %v2849 = vrot.slane %v2844, 4
        %v2851 = vshrl.u32 %v2758, 16
        %v2853 = vrot.slane %v2851, 7
        %v2854 = vshll.u32 %v2758, 16
        %v2856 = vor.u32 %v2853, %v2854
        %v2857 = vrot.slane %v2853, 4
        %v2859 = vshrl.u32 %v2759, 16
        %v2861 = vrot.slane %v2859, 7
        %v2862 = vshll.u32 %v2759, 16
        %v2864 = vor.u32 %v2861, %v2862
        %v2865 = vsel %vm433, %v2857, %v2864
        %v2866 = vrot.slane %v2861, 4
        %v2868 = vshrl.u32 %v2760, 16
        %v2870 = vrot.slane %v2868, 7
        %v2871 = vshll.u32 %v2760, 16
        %v2873 = vor.u32 %v2870, %v2871
        %v2874 = vrot.slane %v2870, 4
        %v2876 = vshrl.u32 %v2761, 16
        %v2878 = vrot.slane %v2876, 7
        %v2879 = vshll.u32 %v2761, 16
        %v2881 = vor.u32 %v2878, %v2879
        %v2882 = vsel %vm433, %v2874, %v2881
        %v2883 = vrot.slane %v2878, 4
        %v2885 = vshrl.u32 %v2762, 16
        %v2887 = vrot.slane %v2885, 7
        %v2888 = vshll.u32 %v2762, 16
        %v2890 = vor.u32 %v2887, %v2888
        %v2891 = vrot.slane %v2887, 4
        %v2893 = vshrl.u32 %v2763, 16
        %v2895 = vrot.slane %v2893, 7
        %v2896 = vshll.u32 %v2763, 16
        %v2898 = vor.u32 %v2895, %v2896
        %v2899 = vsel %vm433, %v2891, %v2898
        %v2900 = vrot.slane %v2895, 4
        %v2902 = vshrl.u32 %v2764, 16
        %v2904 = vrot.slane %v2902, 7
        %v2905 = vshll.u32 %v2764, 16
        %v2907 = vor.u32 %v2904, %v2905
        %v2908 = vrot.slane %v2904, 4
        %v2910 = vshrl.u32 %v2765, 16
        %v2912 = vrot.slane %v2910, 7
        %v2913 = vshll.u32 %v2765, 16
        %v2915 = vor.u32 %v2912, %v2913
        %v2916 = vsel %vm433, %v2908, %v2915
        %v2917 = vrot.slane %v2912, 4
        %v2919 = vshrl.u32 %v2766, 16
        %v2921 = vrot.slane %v2919, 7
        %v2922 = vshll.u32 %v2766, 16
        %v2924 = vor.u32 %v2921, %v2922
        %v2925 = vrot.slane %v2921, 4
        %v2927 = vshrl.u32 %v2767, 16
        %v2929 = vrot.slane %v2927, 7
        %v2930 = vshll.u32 %v2767, 16
        %v2932 = vor.u32 %v2929, %v2930
        %v2933 = vsel %vm433, %v2925, %v2932
        %v2934 = vrot.slane %v2929, 4
        %v2936 = vshrl.u32 %v2768, 16
        %v2938 = vrot.slane %v2936, 7
        %v2939 = vshll.u32 %v2768, 16
        %v2941 = vor.u32 %v2938, %v2939
        %v2942 = vrot.slane %v2938, 4
        %v2944 = vshrl.u32 %v2769, 16
        %v2946 = vrot.slane %v2944, 7
        %v2947 = vshll.u32 %v2769, 16
        %v2949 = vor.u32 %v2946, %v2947
        %v2950 = vsel %vm433, %v2942, %v2949
        %v2951 = vrot.slane %v2946, 4
        %v2953 = vshrl.u32 %v2770, 16
        %v2955 = vrot.slane %v2953, 7
        %v2956 = vshll.u32 %v2770, 16
        %v2958 = vor.u32 %v2955, %v2956
        %v2959 = vrot.slane %v2955, 4
        %v2961 = vshrl.u32 %v2771, 16
        %v2963 = vrot.slane %v2961, 7
        %v2964 = vshll.u32 %v2771, 16
        %v2966 = vor.u32 %v2963, %v2964
        %v2967 = vsel %vm433, %v2959, %v2966
        %v2968 = vrot.slane %v2963, 4
        %v2970 = vshrl.u32 %v2772, 16
        %v2972 = vrot.slane %v2970, 7
        %v2973 = vshll.u32 %v2772, 16
        %v2975 = vor.u32 %v2972, %v2973
        %v2976 = vrot.slane %v2972, 4
        %v2978 = vshrl.u32 %v2773, 16
        %v2980 = vrot.slane %v2978, 7
        %v2981 = vshll.u32 %v2773, 16
        %v2983 = vor.u32 %v2980, %v2981
        %v2984 = vsel %vm433, %v2976, %v2983
        %v2985 = vrot.slane %v2980, 4
        %v2987 = vshrl.u32 %v2774, 16
        %v2989 = vrot.slane %v2987, 7
        %v2990 = vshll.u32 %v2774, 16
        %v2992 = vor.u32 %v2989, %v2990
        %v2993 = vrot.slane %v2989, 4
        %v2995 = vshrl.u32 %v2775, 16
        %v2997 = vrot.slane %v2995, 7
        %v2998 = vshll.u32 %v2775, 16
        %v3000 = vor.u32 %v2997, %v2998
        %v3001 = vsel %vm433, %v2993, %v3000
        %v3002 = vrot.slane %v2997, 4
        %v3004 = vshrl.u32 %v2776, 16
        %v3006 = vrot.slane %v3004, 7
        %v3007 = vshll.u32 %v2776, 16
        %v3009 = vor.u32 %v3006, %v3007
        %v3010 = vrot.slane %v3006, 4
        %v3012 = vshrl.u32 %v2777, 16
        %v3014 = vrot.slane %v3012, 7
        %v3015 = vshll.u32 %v2777, 16
        %v3017 = vor.u32 %v3014, %v3015
        %v3018 = vsel %vm433, %v3010, %v3017
        %v3019 = vrot.slane %v3014, 4
        %v3021 = vshrl.u32 %v2778, 16
        %v3023 = vrot.slane %v3021, 7
        %v3024 = vshll.u32 %v2778, 16
        %v3026 = vor.u32 %v3023, %v3024
        %v3027 = vrot.slane %v3023, 4
        %v3029 = vshrl.u32 %v2779, 16
        %v3031 = vrot.slane %v3029, 7
        %v3032 = vshll.u32 %v2779, 16
        %v3034 = vor.u32 %v3031, %v3032
        %v3035 = vsel %vm433, %v3027, %v3034
        %v3036 = vrot.slane %v3031, 4
        %v3038 = vshrl.u32 %v2780, 16
        %v3040 = vrot.slane %v3038, 7
        %v3041 = vshll.u32 %v2780, 16
        %v3043 = vor.u32 %v3040, %v3041
        %v3044 = vrot.slane %v3040, 4
        %v3046 = vshrl.u32 %v2781, 16
        %v3048 = vrot.slane %v3046, 7
        %v3049 = vshll.u32 %v2781, 16
        %v3051 = vor.u32 %v3048, %v3049
        %v3052 = vsel %vm433, %v3044, %v3051
        %v3053 = vrot.slane %v3048, 4
        %vm3102 = vcmask 60416
        %vm3103 = vmand %vm3102, %vm344
        %v3104 = vld [vmem:[%s754] sm:$0xf]
        %v3105 = vsel %vm3103, %v2788, %v3104
        %3106 = vst [vmem:[%s754] sm:$0xf] %v3105
        %3107 = vst.msk [vmem:[%s754 + $0x4] sm:$0xf] %vm278, %v2797
        %v3108 = vld [vmem:[%s754 + $0x8] sm:$0x1]
        %v3109 = vsel %vm289, %v2798, %v3108
        %3110 = vst [vmem:[%s754 + $0x8] sm:$0x1] %v3109
        %v3111 = vld [vmem:[%s754 + $0xc] sm:$0xf]
        %v3112 = vsel %vm3103, %v2805, %v3111
        %3113 = vst [vmem:[%s754 + $0xc] sm:$0xf] %v3112
        %3114 = vst.msk [vmem:[%s754 + $0x10] sm:$0xf] %vm278, %v2814
        %v3115 = vld [vmem:[%s754 + $0x14] sm:$0x1]
        %v3116 = vsel %vm289, %v2815, %v3115
        %3117 = vst [vmem:[%s754 + $0x14] sm:$0x1] %v3116
        %v3118 = vld [vmem:[%s754 + $0x18] sm:$0xf]
        %v3119 = vsel %vm3103, %v2822, %v3118
        %3120 = vst [vmem:[%s754 + $0x18] sm:$0xf] %v3119
        %3121 = vst.msk [vmem:[%s754 + $0x1c] sm:$0xf] %vm278, %v2831
        %v3122 = vld [vmem:[%s754 + $0x20] sm:$0x1]
        %v3123 = vsel %vm289, %v2832, %v3122
        %3124 = vst [vmem:[%s754 + $0x20] sm:$0x1] %v3123
        %v3125 = vld [vmem:[%s754 + $0x24] sm:$0xf]
        %v3126 = vsel %vm3103, %v2839, %v3125
        %3127 = vst [vmem:[%s754 + $0x24] sm:$0xf] %v3126
        %3128 = vst.msk [vmem:[%s754 + $0x28] sm:$0xf] %vm278, %v2848
        %v3129 = vld [vmem:[%s754 + $0x2c] sm:$0x1]
        %v3130 = vsel %vm289, %v2849, %v3129
        %3131 = vst [vmem:[%s754 + $0x2c] sm:$0x1] %v3130
        %v3132 = vld [vmem:[%s754 + $0x30] sm:$0xf]
        %v3133 = vsel %vm3103, %v2856, %v3132
        %3134 = vst [vmem:[%s754 + $0x30] sm:$0xf] %v3133
        %3135 = vst.msk [vmem:[%s754 + $0x34] sm:$0xf] %vm278, %v2865
        %v3136 = vld [vmem:[%s754 + $0x38] sm:$0x1]
        %v3137 = vsel %vm289, %v2866, %v3136
        %3138 = vst [vmem:[%s754 + $0x38] sm:$0x1] %v3137
        %v3139 = vld [vmem:[%s754 + $0x3c] sm:$0xf]
        %v3140 = vsel %vm3103, %v2873, %v3139
        %3141 = vst [vmem:[%s754 + $0x3c] sm:$0xf] %v3140
        %3142 = vst.msk [vmem:[%s754 + $0x40] sm:$0xf] %vm278, %v2882
        %v3143 = vld [vmem:[%s754 + $0x44] sm:$0x1]
        %v3144 = vsel %vm289, %v2883, %v3143
        %3145 = vst [vmem:[%s754 + $0x44] sm:$0x1] %v3144
        %v3146 = vld [vmem:[%s754 + $0x48] sm:$0xf]
        %v3147 = vsel %vm3103, %v2890, %v3146
        %3148 = vst [vmem:[%s754 + $0x48] sm:$0xf] %v3147
        %3149 = vst.msk [vmem:[%s754 + $0x4c] sm:$0xf] %vm278, %v2899
        %v3150 = vld [vmem:[%s754 + $0x50] sm:$0x1]
        %v3151 = vsel %vm289, %v2900, %v3150
        %3152 = vst [vmem:[%s754 + $0x50] sm:$0x1] %v3151
        %v3153 = vld [vmem:[%s754 + $0x54] sm:$0xf]
        %v3154 = vsel %vm3103, %v2907, %v3153
        %3155 = vst [vmem:[%s754 + $0x54] sm:$0xf] %v3154
        %3156 = vst.msk [vmem:[%s754 + $0x58] sm:$0xf] %vm278, %v2916
        %v3157 = vld [vmem:[%s754 + $0x5c] sm:$0x1]
        %v3158 = vsel %vm289, %v2917, %v3157
        %3159 = vst [vmem:[%s754 + $0x5c] sm:$0x1] %v3158
        %v3160 = vld [vmem:[%s754 + $0x60] sm:$0xf]
        %v3161 = vsel %vm3103, %v2924, %v3160
        %3162 = vst [vmem:[%s754 + $0x60] sm:$0xf] %v3161
        %3163 = vst.msk [vmem:[%s754 + $0x64] sm:$0xf] %vm278, %v2933
        %v3164 = vld [vmem:[%s754 + $0x68] sm:$0x1]
        %v3165 = vsel %vm289, %v2934, %v3164
        %3166 = vst [vmem:[%s754 + $0x68] sm:$0x1] %v3165
        %v3167 = vld [vmem:[%s754 + $0x6c] sm:$0xf]
        %v3168 = vsel %vm3103, %v2941, %v3167
        %3169 = vst [vmem:[%s754 + $0x6c] sm:$0xf] %v3168
        %3170 = vst.msk [vmem:[%s754 + $0x70] sm:$0xf] %vm278, %v2950
        %v3171 = vld [vmem:[%s754 + $0x74] sm:$0x1]
        %v3172 = vsel %vm289, %v2951, %v3171
        %3173 = vst [vmem:[%s754 + $0x74] sm:$0x1] %v3172
        %v3174 = vld [vmem:[%s754 + $0x78] sm:$0xf]
        %v3175 = vsel %vm3103, %v2958, %v3174
        %3176 = vst [vmem:[%s754 + $0x78] sm:$0xf] %v3175
        %3177 = vst.msk [vmem:[%s754 + $0x7c] sm:$0xf] %vm278, %v2967
        %v3178 = vld [vmem:[%s754 + $0x80] sm:$0x1]
        %v3179 = vsel %vm289, %v2968, %v3178
        %3180 = vst [vmem:[%s754 + $0x80] sm:$0x1] %v3179
        %v3181 = vld [vmem:[%s754 + $0x84] sm:$0xf]
        %v3182 = vsel %vm3103, %v2975, %v3181
        %3183 = vst [vmem:[%s754 + $0x84] sm:$0xf] %v3182
        %3184 = vst.msk [vmem:[%s754 + $0x88] sm:$0xf] %vm278, %v2984
        %v3185 = vld [vmem:[%s754 + $0x8c] sm:$0x1]
        %v3186 = vsel %vm289, %v2985, %v3185
        %3187 = vst [vmem:[%s754 + $0x8c] sm:$0x1] %v3186
        %v3188 = vld [vmem:[%s754 + $0x90] sm:$0xf]
        %v3189 = vsel %vm3103, %v2992, %v3188
        %3190 = vst [vmem:[%s754 + $0x90] sm:$0xf] %v3189
        %3191 = vst.msk [vmem:[%s754 + $0x94] sm:$0xf] %vm278, %v3001
        %v3192 = vld [vmem:[%s754 + $0x98] sm:$0x1]
        %v3193 = vsel %vm289, %v3002, %v3192
        %3194 = vst [vmem:[%s754 + $0x98] sm:$0x1] %v3193
        %v3195 = vld [vmem:[%s754 + $0x9c] sm:$0xf]
        %v3196 = vsel %vm3103, %v3009, %v3195
        %3197 = vst [vmem:[%s754 + $0x9c] sm:$0xf] %v3196
        %3198 = vst.msk [vmem:[%s754 + $0xa0] sm:$0xf] %vm278, %v3018
        %v3199 = vld [vmem:[%s754 + $0xa4] sm:$0x1]
        %v3200 = vsel %vm289, %v3019, %v3199
        %3201 = vst [vmem:[%s754 + $0xa4] sm:$0x1] %v3200
        %v3202 = vld [vmem:[%s754 + $0xa8] sm:$0xf]
        %v3203 = vsel %vm3103, %v3026, %v3202
        %3204 = vst [vmem:[%s754 + $0xa8] sm:$0xf] %v3203
        %3205 = vst.msk [vmem:[%s754 + $0xac] sm:$0xf] %vm278, %v3035
        %v3206 = vld [vmem:[%s754 + $0xb0] sm:$0x1]
        %v3207 = vsel %vm289, %v3036, %v3206
        %3208 = vst [vmem:[%s754 + $0xb0] sm:$0x1] %v3207
        %v3209 = vld [vmem:[%s754 + $0xb4] sm:$0xf]
        %v3210 = vsel %vm3103, %v3043, %v3209
        %3211 = vst [vmem:[%s754 + $0xb4] sm:$0xf] %v3210
        %3212 = vst.msk [vmem:[%s754 + $0xb8] sm:$0xf] %vm278, %v3052
        %v3213 = vld [vmem:[%s754 + $0xbc] sm:$0x1]
        %v3214 = vsel %vm289, %v3053, %v3213
        %3215 = vst [vmem:[%s754 + $0xbc] sm:$0x1] %v3214
        %v3216 = vld [vmem:[#allocation2] sm:$0xf]
        %v3217 = vld [vmem:[#allocation2 + $0x4] sm:$0xf]
        %v3218 = vld [vmem:[#allocation2 + $0xc] sm:$0xf]
        %v3219 = vld [vmem:[#allocation2 + $0x10] sm:$0xf]
        %v3220 = vld [vmem:[#allocation2 + $0x18] sm:$0xf]
        %v3221 = vld [vmem:[#allocation2 + $0x1c] sm:$0xf]
        %v3222 = vld [vmem:[#allocation2 + $0x24] sm:$0xf]
        %v3223 = vld [vmem:[#allocation2 + $0x28] sm:$0xf]
        %v3224 = vld [vmem:[#allocation2 + $0x30] sm:$0xf]
        %v3225 = vld [vmem:[#allocation2 + $0x34] sm:$0xf]
        %v3226 = vld [vmem:[#allocation2 + $0x3c] sm:$0xf]
        %v3227 = vld [vmem:[#allocation2 + $0x40] sm:$0xf]
        %v3228 = vld [vmem:[#allocation2 + $0x48] sm:$0xf]
        %v3229 = vld [vmem:[#allocation2 + $0x4c] sm:$0xf]
        %v3230 = vld [vmem:[#allocation2 + $0x54] sm:$0xf]
        %v3231 = vld [vmem:[#allocation2 + $0x58] sm:$0xf]
        %v3232 = vld [vmem:[#allocation2 + $0x60] sm:$0xf]
        %v3233 = vld [vmem:[#allocation2 + $0x64] sm:$0xf]
        %v3234 = vld [vmem:[#allocation2 + $0x6c] sm:$0xf]
        %v3235 = vld [vmem:[#allocation2 + $0x70] sm:$0xf]
        %v3236 = vld [vmem:[#allocation2 + $0x78] sm:$0xf]
        %v3237 = vld [vmem:[#allocation2 + $0x7c] sm:$0xf]
        %v3238 = vld [vmem:[#allocation2 + $0x84] sm:$0xf]
        %v3239 = vld [vmem:[#allocation2 + $0x88] sm:$0xf]
        %v3240 = vld [vmem:[#allocation2 + $0x90] sm:$0xf]
        %v3241 = vld [vmem:[#allocation2 + $0x94] sm:$0xf]
        %v3242 = vld [vmem:[#allocation2 + $0x9c] sm:$0xf]
        %v3243 = vld [vmem:[#allocation2 + $0xa0] sm:$0xf]
        %v3244 = vld [vmem:[#allocation2 + $0xa8] sm:$0xf]
        %v3245 = vld [vmem:[#allocation2 + $0xac] sm:$0xf]
        %v3246 = vld [vmem:[#allocation2 + $0xb4] sm:$0xf]
        %v3247 = vld [vmem:[#allocation2 + $0xb8] sm:$0xf]
        %v3248 = vld [vmem:[#allocation2 + $0xc0] sm:$0xf]
        %v3249 = vld [vmem:[#allocation2 + $0xc4] sm:$0xf]
        %v3250 = vld [vmem:[#allocation2 + $0xcc] sm:$0xf]
        %v3251 = vld [vmem:[#allocation2 + $0xd0] sm:$0xf]
        %3252 = vst.msk [vmem:[#allocation3] sm:$0xf] %vm278, %v3216
        %3253 = vst.msk [vmem:[#allocation3 + $0x4] sm:$0xf] %vm278, %v3217
        %3254 = vst.msk [vmem:[#allocation3 + $0x8] sm:$0xf] %vm278, %v3218
        %3255 = vst.msk [vmem:[#allocation3 + $0xc] sm:$0xf] %vm278, %v3219
        %3256 = vst.msk [vmem:[#allocation3 + $0x10] sm:$0xf] %vm278, %v3220
        %3257 = vst.msk [vmem:[#allocation3 + $0x14] sm:$0xf] %vm278, %v3221
        %3258 = vst.msk [vmem:[#allocation3 + $0x18] sm:$0xf] %vm278, %v3222
        %3259 = vst.msk [vmem:[#allocation3 + $0x1c] sm:$0xf] %vm278, %v3223
        %3260 = vst.msk [vmem:[#allocation3 + $0x20] sm:$0xf] %vm278, %v3224
        %3261 = vst.msk [vmem:[#allocation3 + $0x24] sm:$0xf] %vm278, %v3225
        %3262 = vst.msk [vmem:[#allocation3 + $0x28] sm:$0xf] %vm278, %v3226
        %3263 = vst.msk [vmem:[#allocation3 + $0x2c] sm:$0xf] %vm278, %v3227
        %3264 = vst.msk [vmem:[#allocation3 + $0x30] sm:$0xf] %vm278, %v3228
        %3265 = vst.msk [vmem:[#allocation3 + $0x34] sm:$0xf] %vm278, %v3229
        %3266 = vst.msk [vmem:[#allocation3 + $0x38] sm:$0xf] %vm278, %v3230
        %3267 = vst.msk [vmem:[#allocation3 + $0x3c] sm:$0xf] %vm278, %v3231
        %3268 = vst.msk [vmem:[#allocation3 + $0x40] sm:$0xf] %vm278, %v3232
        %3269 = vst.msk [vmem:[#allocation3 + $0x44] sm:$0xf] %vm278, %v3233
        %3270 = vst.msk [vmem:[#allocation3 + $0x48] sm:$0xf] %vm278, %v3234
        %3271 = vst.msk [vmem:[#allocation3 + $0x4c] sm:$0xf] %vm278, %v3235
        %3272 = vst.msk [vmem:[#allocation3 + $0x50] sm:$0xf] %vm278, %v3236
        %3273 = vst.msk [vmem:[#allocation3 + $0x54] sm:$0xf] %vm278, %v3237
        %3274 = vst.msk [vmem:[#allocation3 + $0x58] sm:$0xf] %vm278, %v3238
        %3275 = vst.msk [vmem:[#allocation3 + $0x5c] sm:$0xf] %vm278, %v3239
        %3276 = vst.msk [vmem:[#allocation3 + $0x60] sm:$0xf] %vm278, %v3240
        %3277 = vst.msk [vmem:[#allocation3 + $0x64] sm:$0xf] %vm278, %v3241
        %3278 = vst.msk [vmem:[#allocation3 + $0x68] sm:$0xf] %vm278, %v3242
        %3279 = vst.msk [vmem:[#allocation3 + $0x6c] sm:$0xf] %vm278, %v3243
        %3280 = vst.msk [vmem:[#allocation3 + $0x70] sm:$0xf] %vm278, %v3244
        %3281 = vst.msk [vmem:[#allocation3 + $0x74] sm:$0xf] %vm278, %v3245
        %3282 = vst.msk [vmem:[#allocation3 + $0x78] sm:$0xf] %vm278, %v3246
        %3283 = vst.msk [vmem:[#allocation3 + $0x7c] sm:$0xf] %vm278, %v3247
        %3284 = vst.msk [vmem:[#allocation3 + $0x80] sm:$0xf] %vm278, %v3248
        %3285 = vst.msk [vmem:[#allocation3 + $0x84] sm:$0xf] %vm278, %v3249
        %3286 = vst.msk [vmem:[#allocation3 + $0x88] sm:$0xf] %vm278, %v3250
        %3287 = vst.msk [vmem:[#allocation3 + $0x8c] sm:$0xf] %vm278, %v3251
        %v3288 = vld [vmem:[#allocation2] sm:$0xf]
        %v3289 = vld [vmem:[#allocation2 + $0x4] sm:$0xf]
        %v3290 = vld [vmem:[#allocation2 + $0x8] sm:$0x1]
        %v3291 = vld [vmem:[#allocation2 + $0xc] sm:$0xf]
        %v3292 = vld [vmem:[#allocation2 + $0x10] sm:$0xf]
        %v3293 = vld [vmem:[#allocation2 + $0x14] sm:$0x1]
        %v3294 = vld [vmem:[#allocation2 + $0x18] sm:$0xf]
        %v3295 = vld [vmem:[#allocation2 + $0x1c] sm:$0xf]
        %v3296 = vld [vmem:[#allocation2 + $0x20] sm:$0x1]
        %v3297 = vld [vmem:[#allocation2 + $0x24] sm:$0xf]
        %v3298 = vld [vmem:[#allocation2 + $0x28] sm:$0xf]
        %v3299 = vld [vmem:[#allocation2 + $0x2c] sm:$0x1]
        %v3300 = vld [vmem:[#allocation2 + $0x30] sm:$0xf]
        %v3301 = vld [vmem:[#allocation2 + $0x34] sm:$0xf]
        %v3302 = vld [vmem:[#allocation2 + $0x38] sm:$0x1]
        %v3303 = vld [vmem:[#allocation2 + $0x3c] sm:$0xf]
        %v3304 = vld [vmem:[#allocation2 + $0x40] sm:$0xf]
        %v3305 = vld [vmem:[#allocation2 + $0x44] sm:$0x1]
        %v3306 = vld [vmem:[#allocation2 + $0x48] sm:$0xf]
        %v3307 = vld [vmem:[#allocation2 + $0x4c] sm:$0xf]
        %v3308 = vld [vmem:[#allocation2 + $0x50] sm:$0x1]
        %v3309 = vld [vmem:[#allocation2 + $0x54] sm:$0xf]
        %v3310 = vld [vmem:[#allocation2 + $0x58] sm:$0xf]
        %v3311 = vld [vmem:[#allocation2 + $0x5c] sm:$0x1]
        %v3312 = vld [vmem:[#allocation2 + $0x60] sm:$0xf]
        %v3313 = vld [vmem:[#allocation2 + $0x64] sm:$0xf]
        %v3314 = vld [vmem:[#allocation2 + $0x68] sm:$0x1]
        %v3315 = vld [vmem:[#allocation2 + $0x6c] sm:$0xf]
        %v3316 = vld [vmem:[#allocation2 + $0x70] sm:$0xf]
        %v3317 = vld [vmem:[#allocation2 + $0x74] sm:$0x1]
        %v3318 = vld [vmem:[#allocation2 + $0x78] sm:$0xf]
        %v3319 = vld [vmem:[#allocation2 + $0x7c] sm:$0xf]
        %v3320 = vld [vmem:[#allocation2 + $0x80] sm:$0x1]
        %v3321 = vld [vmem:[#allocation2 + $0x84] sm:$0xf]
        %v3322 = vld [vmem:[#allocation2 + $0x88] sm:$0xf]
        %v3323 = vld [vmem:[#allocation2 + $0x8c] sm:$0x1]
        %v3324 = vld [vmem:[#allocation2 + $0x90] sm:$0xf]
        %v3325 = vld [vmem:[#allocation2 + $0x94] sm:$0xf]
        %v3326 = vld [vmem:[#allocation2 + $0x98] sm:$0x1]
        %v3327 = vld [vmem:[#allocation2 + $0x9c] sm:$0xf]
        %v3328 = vld [vmem:[#allocation2 + $0xa0] sm:$0xf]
        %v3329 = vld [vmem:[#allocation2 + $0xa4] sm:$0x1]
        %v3330 = vld [vmem:[#allocation2 + $0xa8] sm:$0xf]
        %v3331 = vld [vmem:[#allocation2 + $0xac] sm:$0xf]
        %v3332 = vld [vmem:[#allocation2 + $0xb0] sm:$0x1]
        %v3333 = vld [vmem:[#allocation2 + $0xb4] sm:$0xf]
        %v3334 = vld [vmem:[#allocation2 + $0xb8] sm:$0xf]
        %v3335 = vld [vmem:[#allocation2 + $0xbc] sm:$0x1]
        %v3336 = vld [vmem:[#allocation2 + $0xc0] sm:$0xf]
        %v3337 = vld [vmem:[#allocation2 + $0xc4] sm:$0xf]
        %v3338 = vld [vmem:[#allocation2 + $0xc8] sm:$0x1]
        %v3339 = vld [vmem:[#allocation2 + $0xcc] sm:$0xf]
        %v3340 = vld [vmem:[#allocation2 + $0xd0] sm:$0xf]
        %v3341 = vld [vmem:[#allocation2 + $0xd4] sm:$0x1]
        %v3343 = vshrl.u32 %v3288, 16
        %v3345 = vrot.slane %v3343, 4
        %v3346 = vshll.u32 %v3288, 16
        %v3348 = vrot.slane %v3346, 5
        %v3349 = vor.u32 %v3345, %v3348
        %v3350 = vrot.slane %v3349, 4
        %v3352 = vshll.u32 %v3289, 16
        %v3354 = vrot.slane %v3352, 5
        %v3355 = vsel %vm1000, %v3350, %v3354
        %v3356 = vshrl.u32 %v3289, 16
        %v3358 = vrot.slane %v3356, 4
        %v3359 = vor.u32 %v3358, %v3354
        %v3360 = vrot.slane %v3359, 4
        %v3362 = vshll.u32 %v3290, 16
        %v3364 = vrot.slane %v3362, 5
        %v3365 = vsel %vm1000, %v3360, %v3364
        %v3367 = vshrl.u32 %v3291, 16
        %v3369 = vrot.slane %v3367, 4
        %v3370 = vshll.u32 %v3291, 16
        %v3372 = vrot.slane %v3370, 5
        %v3373 = vor.u32 %v3369, %v3372
        %v3374 = vrot.slane %v3373, 4
        %v3376 = vshll.u32 %v3292, 16
        %v3378 = vrot.slane %v3376, 5
        %v3379 = vsel %vm1000, %v3374, %v3378
        %v3380 = vshrl.u32 %v3292, 16
        %v3382 = vrot.slane %v3380, 4
        %v3383 = vor.u32 %v3382, %v3378
        %v3384 = vrot.slane %v3383, 4
        %v3386 = vshll.u32 %v3293, 16
        %v3388 = vrot.slane %v3386, 5
        %v3389 = vsel %vm1000, %v3384, %v3388
        %v3391 = vshrl.u32 %v3294, 16
        %v3393 = vrot.slane %v3391, 4
        %v3394 = vshll.u32 %v3294, 16
        %v3396 = vrot.slane %v3394, 5
        %v3397 = vor.u32 %v3393, %v3396
        %v3398 = vrot.slane %v3397, 4
        %v3400 = vshll.u32 %v3295, 16
        %v3402 = vrot.slane %v3400, 5
        %v3403 = vsel %vm1000, %v3398, %v3402
        %v3404 = vshrl.u32 %v3295, 16
        %v3406 = vrot.slane %v3404, 4
        %v3407 = vor.u32 %v3406, %v3402
        %v3408 = vrot.slane %v3407, 4
        %v3410 = vshll.u32 %v3296, 16
        %v3412 = vrot.slane %v3410, 5
        %v3413 = vsel %vm1000, %v3408, %v3412
        %v3415 = vshrl.u32 %v3297, 16
        %v3417 = vrot.slane %v3415, 4
        %v3418 = vshll.u32 %v3297, 16
        %v3420 = vrot.slane %v3418, 5
        %v3421 = vor.u32 %v3417, %v3420
        %v3422 = vrot.slane %v3421, 4
        %v3424 = vshll.u32 %v3298, 16
        %v3426 = vrot.slane %v3424, 5
        %v3427 = vsel %vm1000, %v3422, %v3426
        %v3428 = vshrl.u32 %v3298, 16
        %v3430 = vrot.slane %v3428, 4
        %v3431 = vor.u32 %v3430, %v3426
        %v3432 = vrot.slane %v3431, 4
        %v3434 = vshll.u32 %v3299, 16
        %v3436 = vrot.slane %v3434, 5
        %v3437 = vsel %vm1000, %v3432, %v3436
        %v3439 = vshrl.u32 %v3300, 16
        %v3441 = vrot.slane %v3439, 4
        %v3442 = vshll.u32 %v3300, 16
        %v3444 = vrot.slane %v3442, 5
        %v3445 = vor.u32 %v3441, %v3444
        %v3446 = vrot.slane %v3445, 4
        %v3448 = vshll.u32 %v3301, 16
        %v3450 = vrot.slane %v3448, 5
        %v3451 = vsel %vm1000, %v3446, %v3450
        %v3452 = vshrl.u32 %v3301, 16
        %v3454 = vrot.slane %v3452, 4
        %v3455 = vor.u32 %v3454, %v3450
        %v3456 = vrot.slane %v3455, 4
        %v3458 = vshll.u32 %v3302, 16
        %v3460 = vrot.slane %v3458, 5
        %v3461 = vsel %vm1000, %v3456, %v3460
        %v3463 = vshrl.u32 %v3303, 16
        %v3465 = vrot.slane %v3463, 4
        %v3466 = vshll.u32 %v3303, 16
        %v3468 = vrot.slane %v3466, 5
        %v3469 = vor.u32 %v3465, %v3468
        %v3470 = vrot.slane %v3469, 4
        %v3472 = vshll.u32 %v3304, 16
        %v3474 = vrot.slane %v3472, 5
        %v3475 = vsel %vm1000, %v3470, %v3474
        %v3476 = vshrl.u32 %v3304, 16
        %v3478 = vrot.slane %v3476, 4
        %v3479 = vor.u32 %v3478, %v3474
        %v3480 = vrot.slane %v3479, 4
        %v3482 = vshll.u32 %v3305, 16
        %v3484 = vrot.slane %v3482, 5
        %v3485 = vsel %vm1000, %v3480, %v3484
        %v3487 = vshrl.u32 %v3306, 16
        %v3489 = vrot.slane %v3487, 4
        %v3490 = vshll.u32 %v3306, 16
        %v3492 = vrot.slane %v3490, 5
        %v3493 = vor.u32 %v3489, %v3492
        %v3494 = vrot.slane %v3493, 4
        %v3496 = vshll.u32 %v3307, 16
        %v3498 = vrot.slane %v3496, 5
        %v3499 = vsel %vm1000, %v3494, %v3498
        %v3500 = vshrl.u32 %v3307, 16
        %v3502 = vrot.slane %v3500, 4
        %v3503 = vor.u32 %v3502, %v3498
        %v3504 = vrot.slane %v3503, 4
        %v3506 = vshll.u32 %v3308, 16
        %v3508 = vrot.slane %v3506, 5
        %v3509 = vsel %vm1000, %v3504, %v3508
        %v3511 = vshrl.u32 %v3309, 16
        %v3513 = vrot.slane %v3511, 4
        %v3514 = vshll.u32 %v3309, 16
        %v3516 = vrot.slane %v3514, 5
        %v3517 = vor.u32 %v3513, %v3516
        %v3518 = vrot.slane %v3517, 4
        %v3520 = vshll.u32 %v3310, 16
        %v3522 = vrot.slane %v3520, 5
        %v3523 = vsel %vm1000, %v3518, %v3522
        %v3524 = vshrl.u32 %v3310, 16
        %v3526 = vrot.slane %v3524, 4
        %v3527 = vor.u32 %v3526, %v3522
        %v3528 = vrot.slane %v3527, 4
        %v3530 = vshll.u32 %v3311, 16
        %v3532 = vrot.slane %v3530, 5
        %v3533 = vsel %vm1000, %v3528, %v3532
        %v3535 = vshrl.u32 %v3312, 16
        %v3537 = vrot.slane %v3535, 4
        %v3538 = vshll.u32 %v3312, 16
        %v3540 = vrot.slane %v3538, 5
        %v3541 = vor.u32 %v3537, %v3540
        %v3542 = vrot.slane %v3541, 4
        %v3544 = vshll.u32 %v3313, 16
        %v3546 = vrot.slane %v3544, 5
        %v3547 = vsel %vm1000, %v3542, %v3546
        %v3548 = vshrl.u32 %v3313, 16
        %v3550 = vrot.slane %v3548, 4
        %v3551 = vor.u32 %v3550, %v3546
        %v3552 = vrot.slane %v3551, 4
        %v3554 = vshll.u32 %v3314, 16
        %v3556 = vrot.slane %v3554, 5
        %v3557 = vsel %vm1000, %v3552, %v3556
        %v3559 = vshrl.u32 %v3315, 16
        %v3561 = vrot.slane %v3559, 4
        %v3562 = vshll.u32 %v3315, 16
        %v3564 = vrot.slane %v3562, 5
        %v3565 = vor.u32 %v3561, %v3564
        %v3566 = vrot.slane %v3565, 4
        %v3568 = vshll.u32 %v3316, 16
        %v3570 = vrot.slane %v3568, 5
        %v3571 = vsel %vm1000, %v3566, %v3570
        %v3572 = vshrl.u32 %v3316, 16
        %v3574 = vrot.slane %v3572, 4
        %v3575 = vor.u32 %v3574, %v3570
        %v3576 = vrot.slane %v3575, 4
        %v3578 = vshll.u32 %v3317, 16
        %v3580 = vrot.slane %v3578, 5
        %v3581 = vsel %vm1000, %v3576, %v3580
        %v3583 = vshrl.u32 %v3318, 16
        %v3585 = vrot.slane %v3583, 4
        %v3586 = vshll.u32 %v3318, 16
        %v3588 = vrot.slane %v3586, 5
        %v3589 = vor.u32 %v3585, %v3588
        %v3590 = vrot.slane %v3589, 4
        %v3592 = vshll.u32 %v3319, 16
        %v3594 = vrot.slane %v3592, 5
        %v3595 = vsel %vm1000, %v3590, %v3594
        %v3596 = vshrl.u32 %v3319, 16
        %v3598 = vrot.slane %v3596, 4
        %v3599 = vor.u32 %v3598, %v3594
        %v3600 = vrot.slane %v3599, 4
        %v3602 = vshll.u32 %v3320, 16
        %v3604 = vrot.slane %v3602, 5
        %v3605 = vsel %vm1000, %v3600, %v3604
        %v3607 = vshrl.u32 %v3321, 16
        %v3609 = vrot.slane %v3607, 4
        %v3610 = vshll.u32 %v3321, 16
        %v3612 = vrot.slane %v3610, 5
        %v3613 = vor.u32 %v3609, %v3612
        %v3614 = vrot.slane %v3613, 4
        %v3616 = vshll.u32 %v3322, 16
        %v3618 = vrot.slane %v3616, 5
        %v3619 = vsel %vm1000, %v3614, %v3618
        %v3620 = vshrl.u32 %v3322, 16
        %v3622 = vrot.slane %v3620, 4
        %v3623 = vor.u32 %v3622, %v3618
        %v3624 = vrot.slane %v3623, 4
        %v3626 = vshll.u32 %v3323, 16
        %v3628 = vrot.slane %v3626, 5
        %v3629 = vsel %vm1000, %v3624, %v3628
        %v3631 = vshrl.u32 %v3324, 16
        %v3633 = vrot.slane %v3631, 4
        %v3634 = vshll.u32 %v3324, 16
        %v3636 = vrot.slane %v3634, 5
        %v3637 = vor.u32 %v3633, %v3636
        %v3638 = vrot.slane %v3637, 4
        %v3640 = vshll.u32 %v3325, 16
        %v3642 = vrot.slane %v3640, 5
        %v3643 = vsel %vm1000, %v3638, %v3642
        %v3644 = vshrl.u32 %v3325, 16
        %v3646 = vrot.slane %v3644, 4
        %v3647 = vor.u32 %v3646, %v3642
        %v3648 = vrot.slane %v3647, 4
        %v3650 = vshll.u32 %v3326, 16
        %v3652 = vrot.slane %v3650, 5
        %v3653 = vsel %vm1000, %v3648, %v3652
        %v3655 = vshrl.u32 %v3327, 16
        %v3657 = vrot.slane %v3655, 4
        %v3658 = vshll.u32 %v3327, 16
        %v3660 = vrot.slane %v3658, 5
        %v3661 = vor.u32 %v3657, %v3660
        %v3662 = vrot.slane %v3661, 4
        %v3664 = vshll.u32 %v3328, 16
        %v3666 = vrot.slane %v3664, 5
        %v3667 = vsel %vm1000, %v3662, %v3666
        %v3668 = vshrl.u32 %v3328, 16
        %v3670 = vrot.slane %v3668, 4
        %v3671 = vor.u32 %v3670, %v3666
        %v3672 = vrot.slane %v3671, 4
        %v3674 = vshll.u32 %v3329, 16
        %v3676 = vrot.slane %v3674, 5
        %v3677 = vsel %vm1000, %v3672, %v3676
        %v3679 = vshrl.u32 %v3330, 16
        %v3681 = vrot.slane %v3679, 4
        %v3682 = vshll.u32 %v3330, 16
        %v3684 = vrot.slane %v3682, 5
        %v3685 = vor.u32 %v3681, %v3684
        %v3686 = vrot.slane %v3685, 4
        %v3688 = vshll.u32 %v3331, 16
        %v3690 = vrot.slane %v3688, 5
        %v3691 = vsel %vm1000, %v3686, %v3690
        %v3692 = vshrl.u32 %v3331, 16
        %v3694 = vrot.slane %v3692, 4
        %v3695 = vor.u32 %v3694, %v3690
        %v3696 = vrot.slane %v3695, 4
        %v3698 = vshll.u32 %v3332, 16
        %v3700 = vrot.slane %v3698, 5
        %v3701 = vsel %vm1000, %v3696, %v3700
        %v3703 = vshrl.u32 %v3333, 16
        %v3705 = vrot.slane %v3703, 4
        %v3706 = vshll.u32 %v3333, 16
        %v3708 = vrot.slane %v3706, 5
        %v3709 = vor.u32 %v3705, %v3708
        %v3710 = vrot.slane %v3709, 4
        %v3712 = vshll.u32 %v3334, 16
        %v3714 = vrot.slane %v3712, 5
        %v3715 = vsel %vm1000, %v3710, %v3714
        %v3716 = vshrl.u32 %v3334, 16
        %v3718 = vrot.slane %v3716, 4
        %v3719 = vor.u32 %v3718, %v3714
        %v3720 = vrot.slane %v3719, 4
        %v3722 = vshll.u32 %v3335, 16
        %v3724 = vrot.slane %v3722, 5
        %v3725 = vsel %vm1000, %v3720, %v3724
        %v3727 = vshrl.u32 %v3336, 16
        %v3729 = vrot.slane %v3727, 4
        %v3730 = vshll.u32 %v3336, 16
        %v3732 = vrot.slane %v3730, 5
        %v3733 = vor.u32 %v3729, %v3732
        %v3734 = vrot.slane %v3733, 4
        %v3736 = vshll.u32 %v3337, 16
        %v3738 = vrot.slane %v3736, 5
        %v3739 = vsel %vm1000, %v3734, %v3738
        %v3740 = vshrl.u32 %v3337, 16
        %v3742 = vrot.slane %v3740, 4
        %v3743 = vor.u32 %v3742, %v3738
        %v3744 = vrot.slane %v3743, 4
        %v3746 = vshll.u32 %v3338, 16
        %v3748 = vrot.slane %v3746, 5
        %v3749 = vsel %vm1000, %v3744, %v3748
        %v3751 = vshrl.u32 %v3339, 16
        %v3753 = vrot.slane %v3751, 4
        %v3754 = vshll.u32 %v3339, 16
        %v3756 = vrot.slane %v3754, 5
        %v3757 = vor.u32 %v3753, %v3756
        %v3758 = vrot.slane %v3757, 4
        %v3760 = vshll.u32 %v3340, 16
        %v3762 = vrot.slane %v3760, 5
        %v3763 = vsel %vm1000, %v3758, %v3762
        %v3764 = vshrl.u32 %v3340, 16
        %v3766 = vrot.slane %v3764, 4
        %v3767 = vor.u32 %v3766, %v3762
        %v3768 = vrot.slane %v3767, 4
        %v3770 = vshll.u32 %v3341, 16
        %v3772 = vrot.slane %v3770, 5
        %v3773 = vsel %vm1000, %v3768, %v3772
        %3774 = vrot.lane.b32.xlu0 %v3355, 8
        %v3775 = vpop.permute.xlu0 %3774
        %3776 = vrot.lane.b32.xlu0 %v3365, 8
        %v3777 = vpop.permute.xlu0 %3776
        %3778 = vrot.lane.b32.xlu0 %v3379, 8
        %v3779 = vpop.permute.xlu0 %3778
        %3780 = vrot.lane.b32.xlu0 %v3389, 8
        %v3781 = vpop.permute.xlu0 %3780
        %3782 = vrot.lane.b32.xlu0 %v3403, 8
        %v3783 = vpop.permute.xlu0 %3782
        %3784 = vrot.lane.b32.xlu0 %v3413, 8
        %v3785 = vpop.permute.xlu0 %3784
        %3786 = vrot.lane.b32.xlu0 %v3427, 8
        %v3787 = vpop.permute.xlu0 %3786
        %3788 = vrot.lane.b32.xlu0 %v3437, 8
        %v3789 = vpop.permute.xlu0 %3788
        %3790 = vrot.lane.b32.xlu0 %v3451, 8
        %v3791 = vpop.permute.xlu0 %3790
        %3792 = vrot.lane.b32.xlu0 %v3461, 8
        %v3793 = vpop.permute.xlu0 %3792
        %3794 = vrot.lane.b32.xlu0 %v3475, 8
        %v3795 = vpop.permute.xlu0 %3794
        %3796 = vrot.lane.b32.xlu0 %v3485, 8
        %v3797 = vpop.permute.xlu0 %3796
        %3798 = vrot.lane.b32.xlu0 %v3499, 8
        %v3799 = vpop.permute.xlu0 %3798
        %3800 = vrot.lane.b32.xlu0 %v3509, 8
        %v3801 = vpop.permute.xlu0 %3800
        %3802 = vrot.lane.b32.xlu0 %v3523, 8
        %v3803 = vpop.permute.xlu0 %3802
        %3804 = vrot.lane.b32.xlu0 %v3533, 8
        %v3805 = vpop.permute.xlu0 %3804
        %3806 = vrot.lane.b32.xlu0 %v3547, 8
        %v3807 = vpop.permute.xlu0 %3806
        %3808 = vrot.lane.b32.xlu0 %v3557, 8
        %v3809 = vpop.permute.xlu0 %3808
        %3810 = vrot.lane.b32.xlu0 %v3571, 8
        %v3811 = vpop.permute.xlu0 %3810
        %3812 = vrot.lane.b32.xlu0 %v3581, 8
        %v3813 = vpop.permute.xlu0 %3812
        %3814 = vrot.lane.b32.xlu0 %v3595, 8
        %v3815 = vpop.permute.xlu0 %3814
        %3816 = vrot.lane.b32.xlu0 %v3605, 8
        %v3817 = vpop.permute.xlu0 %3816
        %3818 = vrot.lane.b32.xlu0 %v3619, 8
        %v3819 = vpop.permute.xlu0 %3818
        %3820 = vrot.lane.b32.xlu0 %v3629, 8
        %v3821 = vpop.permute.xlu0 %3820
        %3822 = vrot.lane.b32.xlu0 %v3643, 8
        %v3823 = vpop.permute.xlu0 %3822
        %3824 = vrot.lane.b32.xlu0 %v3653, 8
        %v3825 = vpop.permute.xlu0 %3824
        %3826 = vrot.lane.b32.xlu0 %v3667, 8
        %v3827 = vpop.permute.xlu0 %3826
        %3828 = vrot.lane.b32.xlu0 %v3677, 8
        %v3829 = vpop.permute.xlu0 %3828
        %3830 = vrot.lane.b32.xlu0 %v3691, 8
        %v3831 = vpop.permute.xlu0 %3830
        %3832 = vrot.lane.b32.xlu0 %v3701, 8
        %v3833 = vpop.permute.xlu0 %3832
        %3834 = vrot.lane.b32.xlu0 %v3715, 8
        %v3835 = vpop.permute.xlu0 %3834
        %3836 = vrot.lane.b32.xlu0 %v3725, 8
        %v3837 = vpop.permute.xlu0 %3836
        %3838 = vrot.lane.b32.xlu0 %v3739, 8
        %v3839 = vpop.permute.xlu0 %3838
        %3840 = vrot.lane.b32.xlu0 %v3749, 8
        %v3841 = vpop.permute.xlu0 %3840
        %3842 = vrot.lane.b32.xlu0 %v3763, 8
        %v3843 = vpop.permute.xlu0 %3842
        %3844 = vrot.lane.b32.xlu0 %v3773, 8
        %v3845 = vpop.permute.xlu0 %3844
        %vm3882 = vcmask 126016
        %3883 = vst.msk [vmem:[#allocation3] sm:$0xf] %vm3882, %v3775
        %3884 = vst.msk [vmem:[#allocation3 + $0x4] sm:$0xf] %vm3882, %v3777
        %3885 = vst.msk [vmem:[#allocation3 + $0x8] sm:$0xf] %vm3882, %v3779
        %3886 = vst.msk [vmem:[#allocation3 + $0xc] sm:$0xf] %vm3882, %v3781
        %3887 = vst.msk [vmem:[#allocation3 + $0x10] sm:$0xf] %vm3882, %v3783
        %3888 = vst.msk [vmem:[#allocation3 + $0x14] sm:$0xf] %vm3882, %v3785
        %3889 = vst.msk [vmem:[#allocation3 + $0x18] sm:$0xf] %vm3882, %v3787
        %3890 = vst.msk [vmem:[#allocation3 + $0x1c] sm:$0xf] %vm3882, %v3789
        %3891 = vst.msk [vmem:[#allocation3 + $0x20] sm:$0xf] %vm3882, %v3791
        %3892 = vst.msk [vmem:[#allocation3 + $0x24] sm:$0xf] %vm3882, %v3793
        %3893 = vst.msk [vmem:[#allocation3 + $0x28] sm:$0xf] %vm3882, %v3795
        %3894 = vst.msk [vmem:[#allocation3 + $0x2c] sm:$0xf] %vm3882, %v3797
        %3895 = vst.msk [vmem:[#allocation3 + $0x30] sm:$0xf] %vm3882, %v3799
        %3896 = vst.msk [vmem:[#allocation3 + $0x34] sm:$0xf] %vm3882, %v3801
        %3897 = vst.msk [vmem:[#allocation3 + $0x38] sm:$0xf] %vm3882, %v3803
        %3898 = vst.msk [vmem:[#allocation3 + $0x3c] sm:$0xf] %vm3882, %v3805
        %3899 = vst.msk [vmem:[#allocation3 + $0x40] sm:$0xf] %vm3882, %v3807
        %3900 = vst.msk [vmem:[#allocation3 + $0x44] sm:$0xf] %vm3882, %v3809
        %3901 = vst.msk [vmem:[#allocation3 + $0x48] sm:$0xf] %vm3882, %v3811
        %3902 = vst.msk [vmem:[#allocation3 + $0x4c] sm:$0xf] %vm3882, %v3813
        %3903 = vst.msk [vmem:[#allocation3 + $0x50] sm:$0xf] %vm3882, %v3815
        %3904 = vst.msk [vmem:[#allocation3 + $0x54] sm:$0xf] %vm3882, %v3817
        %3905 = vst.msk [vmem:[#allocation3 + $0x58] sm:$0xf] %vm3882, %v3819
        %3906 = vst.msk [vmem:[#allocation3 + $0x5c] sm:$0xf] %vm3882, %v3821
        %3907 = vst.msk [vmem:[#allocation3 + $0x60] sm:$0xf] %vm3882, %v3823
        %3908 = vst.msk [vmem:[#allocation3 + $0x64] sm:$0xf] %vm3882, %v3825
        %3909 = vst.msk [vmem:[#allocation3 + $0x68] sm:$0xf] %vm3882, %v3827
        %3910 = vst.msk [vmem:[#allocation3 + $0x6c] sm:$0xf] %vm3882, %v3829
        %3911 = vst.msk [vmem:[#allocation3 + $0x70] sm:$0xf] %vm3882, %v3831
        %3912 = vst.msk [vmem:[#allocation3 + $0x74] sm:$0xf] %vm3882, %v3833
        %3913 = vst.msk [vmem:[#allocation3 + $0x78] sm:$0xf] %vm3882, %v3835
        %3914 = vst.msk [vmem:[#allocation3 + $0x7c] sm:$0xf] %vm3882, %v3837
        %3915 = vst.msk [vmem:[#allocation3 + $0x80] sm:$0xf] %vm3882, %v3839
        %3916 = vst.msk [vmem:[#allocation3 + $0x84] sm:$0xf] %vm3882, %v3841
        %3917 = vst.msk [vmem:[#allocation3 + $0x88] sm:$0xf] %vm3882, %v3843
        %3918 = vst.msk [vmem:[#allocation3 + $0x8c] sm:$0xf] %vm3882, %v3845
        %v3919 = vld [vmem:[#allocation2] sm:$0xe]
        %v3920 = vld [vmem:[#allocation2 + $0x4] sm:$0xf]
        %v3921 = vld [vmem:[#allocation2 + $0x8] sm:$0x1]
        %v3922 = vld [vmem:[#allocation2 + $0xc] sm:$0xe]
        %v3923 = vld [vmem:[#allocation2 + $0x10] sm:$0xf]
        %v3924 = vld [vmem:[#allocation2 + $0x14] sm:$0x1]
        %v3925 = vld [vmem:[#allocation2 + $0x18] sm:$0xe]
        %v3926 = vld [vmem:[#allocation2 + $0x1c] sm:$0xf]
        %v3927 = vld [vmem:[#allocation2 + $0x20] sm:$0x1]
        %v3928 = vld [vmem:[#allocation2 + $0x24] sm:$0xe]
        %v3929 = vld [vmem:[#allocation2 + $0x28] sm:$0xf]
        %v3930 = vld [vmem:[#allocation2 + $0x2c] sm:$0x1]
        %v3931 = vld [vmem:[#allocation2 + $0x30] sm:$0xe]
        %v3932 = vld [vmem:[#allocation2 + $0x34] sm:$0xf]
        %v3933 = vld [vmem:[#allocation2 + $0x38] sm:$0x1]
        %v3934 = vld [vmem:[#allocation2 + $0x3c] sm:$0xe]
        %v3935 = vld [vmem:[#allocation2 + $0x40] sm:$0xf]
        %v3936 = vld [vmem:[#allocation2 + $0x44] sm:$0x1]
        %v3937 = vld [vmem:[#allocation2 + $0x48] sm:$0xe]
        %v3938 = vld [vmem:[#allocation2 + $0x4c] sm:$0xf]
        %v3939 = vld [vmem:[#allocation2 + $0x50] sm:$0x1]
        %v3940 = vld [vmem:[#allocation2 + $0x54] sm:$0xe]
        %v3941 = vld [vmem:[#allocation2 + $0x58] sm:$0xf]
        %v3942 = vld [vmem:[#allocation2 + $0x5c] sm:$0x1]
        %v3943 = vld [vmem:[#allocation2 + $0x60] sm:$0xe]
        %v3944 = vld [vmem:[#allocation2 + $0x64] sm:$0xf]
        %v3945 = vld [vmem:[#allocation2 + $0x68] sm:$0x1]
        %v3946 = vld [vmem:[#allocation2 + $0x6c] sm:$0xe]
        %v3947 = vld [vmem:[#allocation2 + $0x70] sm:$0xf]
        %v3948 = vld [vmem:[#allocation2 + $0x74] sm:$0x1]
        %v3949 = vld [vmem:[#allocation2 + $0x78] sm:$0xe]
        %v3950 = vld [vmem:[#allocation2 + $0x7c] sm:$0xf]
        %v3951 = vld [vmem:[#allocation2 + $0x80] sm:$0x1]
        %v3952 = vld [vmem:[#allocation2 + $0x84] sm:$0xe]
        %v3953 = vld [vmem:[#allocation2 + $0x88] sm:$0xf]
        %v3954 = vld [vmem:[#allocation2 + $0x8c] sm:$0x1]
        %v3955 = vld [vmem:[#allocation2 + $0x90] sm:$0xe]
        %v3956 = vld [vmem:[#allocation2 + $0x94] sm:$0xf]
        %v3957 = vld [vmem:[#allocation2 + $0x98] sm:$0x1]
        %v3958 = vld [vmem:[#allocation2 + $0x9c] sm:$0xe]
        %v3959 = vld [vmem:[#allocation2 + $0xa0] sm:$0xf]
        %v3960 = vld [vmem:[#allocation2 + $0xa4] sm:$0x1]
        %v3961 = vld [vmem:[#allocation2 + $0xa8] sm:$0xe]
        %v3962 = vld [vmem:[#allocation2 + $0xac] sm:$0xf]
        %v3963 = vld [vmem:[#allocation2 + $0xb0] sm:$0x1]
        %v3964 = vld [vmem:[#allocation2 + $0xb4] sm:$0xe]
        %v3965 = vld [vmem:[#allocation2 + $0xb8] sm:$0xf]
        %v3966 = vld [vmem:[#allocation2 + $0xbc] sm:$0x1]
        %v3967 = vld [vmem:[#allocation2 + $0xc0] sm:$0xe]
        %v3968 = vld [vmem:[#allocation2 + $0xc4] sm:$0xf]
        %v3969 = vld [vmem:[#allocation2 + $0xc8] sm:$0x1]
        %v3970 = vld [vmem:[#allocation2 + $0xcc] sm:$0xe]
        %v3971 = vld [vmem:[#allocation2 + $0xd0] sm:$0xf]
        %v3972 = vld [vmem:[#allocation2 + $0xd4] sm:$0x1]
        %v4027 = vrot.slane %v3919, 5
        %v4028 = vrot.slane %v4027, 4
        %v4029 = vrot.slane %v3920, 5
        %v4030 = vsel %vm1688, %v4028, %v4029
        %v4031 = vrot.slane %v4029, 4
        %v4032 = vrot.slane %v3921, 5
        %v4033 = vsel %vm1688, %v4031, %v4032
        %v4034 = vrot.slane %v3922, 5
        %v4035 = vrot.slane %v4034, 4
        %v4036 = vrot.slane %v3923, 5
        %v4037 = vsel %vm1688, %v4035, %v4036
        %v4038 = vrot.slane %v4036, 4
        %v4039 = vrot.slane %v3924, 5
        %v4040 = vsel %vm1688, %v4038, %v4039
        %v4041 = vrot.slane %v3925, 5
        %v4042 = vrot.slane %v4041, 4
        %v4043 = vrot.slane %v3926, 5
        %v4044 = vsel %vm1688, %v4042, %v4043
        %v4045 = vrot.slane %v4043, 4
        %v4046 = vrot.slane %v3927, 5
        %v4047 = vsel %vm1688, %v4045, %v4046
        %v4048 = vrot.slane %v3928, 5
        %v4049 = vrot.slane %v4048, 4
        %v4050 = vrot.slane %v3929, 5
        %v4051 = vsel %vm1688, %v4049, %v4050
        %v4052 = vrot.slane %v4050, 4
        %v4053 = vrot.slane %v3930, 5
        %v4054 = vsel %vm1688, %v4052, %v4053
        %v4055 = vrot.slane %v3931, 5
        %v4056 = vrot.slane %v4055, 4
        %v4057 = vrot.slane %v3932, 5
        %v4058 = vsel %vm1688, %v4056, %v4057
        %v4059 = vrot.slane %v4057, 4
        %v4060 = vrot.slane %v3933, 5
        %v4061 = vsel %vm1688, %v4059, %v4060
        %v4062 = vrot.slane %v3934, 5
        %v4063 = vrot.slane %v4062, 4
        %v4064 = vrot.slane %v3935, 5
        %v4065 = vsel %vm1688, %v4063, %v4064
        %v4066 = vrot.slane %v4064, 4
        %v4067 = vrot.slane %v3936, 5
        %v4068 = vsel %vm1688, %v4066, %v4067
        %v4069 = vrot.slane %v3937, 5
        %v4070 = vrot.slane %v4069, 4
        %v4071 = vrot.slane %v3938, 5
        %v4072 = vsel %vm1688, %v4070, %v4071
        %v4073 = vrot.slane %v4071, 4
        %v4074 = vrot.slane %v3939, 5
        %v4075 = vsel %vm1688, %v4073, %v4074
        %v4076 = vrot.slane %v3940, 5
        %v4077 = vrot.slane %v4076, 4
        %v4078 = vrot.slane %v3941, 5
        %v4079 = vsel %vm1688, %v4077, %v4078
        %v4080 = vrot.slane %v4078, 4
        %v4081 = vrot.slane %v3942, 5
        %v4082 = vsel %vm1688, %v4080, %v4081
        %v4083 = vrot.slane %v3943, 5
        %v4084 = vrot.slane %v4083, 4
        %v4085 = vrot.slane %v3944, 5
        %v4086 = vsel %vm1688, %v4084, %v4085
        %v4087 = vrot.slane %v4085, 4
        %v4088 = vrot.slane %v3945, 5
        %v4089 = vsel %vm1688, %v4087, %v4088
        %v4090 = vrot.slane %v3946, 5
        %v4091 = vrot.slane %v4090, 4
        %v4092 = vrot.slane %v3947, 5
        %v4093 = vsel %vm1688, %v4091, %v4092
        %v4094 = vrot.slane %v4092, 4
        %v4095 = vrot.slane %v3948, 5
        %v4096 = vsel %vm1688, %v4094, %v4095
        %v4097 = vrot.slane %v3949, 5
        %v4098 = vrot.slane %v4097, 4
        %v4099 = vrot.slane %v3950, 5
        %v4100 = vsel %vm1688, %v4098, %v4099
        %v4101 = vrot.slane %v4099, 4
        %v4102 = vrot.slane %v3951, 5
        %v4103 = vsel %vm1688, %v4101, %v4102
        %v4104 = vrot.slane %v3952, 5
        %v4105 = vrot.slane %v4104, 4
        %v4106 = vrot.slane %v3953, 5
        %v4107 = vsel %vm1688, %v4105, %v4106
        %v4108 = vrot.slane %v4106, 4
        %v4109 = vrot.slane %v3954, 5
        %v4110 = vsel %vm1688, %v4108, %v4109
        %v4111 = vrot.slane %v3955, 5
        %v4112 = vrot.slane %v4111, 4
        %v4113 = vrot.slane %v3956, 5
        %v4114 = vsel %vm1688, %v4112, %v4113
        %v4115 = vrot.slane %v4113, 4
        %v4116 = vrot.slane %v3957, 5
        %v4117 = vsel %vm1688, %v4115, %v4116
        %v4118 = vrot.slane %v3958, 5
        %v4119 = vrot.slane %v4118, 4
        %v4120 = vrot.slane %v3959, 5
        %v4121 = vsel %vm1688, %v4119, %v4120
        %v4122 = vrot.slane %v4120, 4
        %v4123 = vrot.slane %v3960, 5
        %v4124 = vsel %vm1688, %v4122, %v4123
        %v4125 = vrot.slane %v3961, 5
        %v4126 = vrot.slane %v4125, 4
        %v4127 = vrot.slane %v3962, 5
        %v4128 = vsel %vm1688, %v4126, %v4127
        %v4129 = vrot.slane %v4127, 4
        %v4130 = vrot.slane %v3963, 5
        %v4131 = vsel %vm1688, %v4129, %v4130
        %v4132 = vrot.slane %v3964, 5
        %v4133 = vrot.slane %v4132, 4
        %v4134 = vrot.slane %v3965, 5
        %v4135 = vsel %vm1688, %v4133, %v4134
        %v4136 = vrot.slane %v4134, 4
        %v4137 = vrot.slane %v3966, 5
        %v4138 = vsel %vm1688, %v4136, %v4137
        %v4139 = vrot.slane %v3967, 5
        %v4140 = vrot.slane %v4139, 4
        %v4141 = vrot.slane %v3968, 5
        %v4142 = vsel %vm1688, %v4140, %v4141
        %v4143 = vrot.slane %v4141, 4
        %v4144 = vrot.slane %v3969, 5
        %v4145 = vsel %vm1688, %v4143, %v4144
        %v4146 = vrot.slane %v3970, 5
        %v4147 = vrot.slane %v4146, 4
        %v4148 = vrot.slane %v3971, 5
        %v4149 = vsel %vm1688, %v4147, %v4148
        %v4150 = vrot.slane %v4148, 4
        %v4151 = vrot.slane %v3972, 5
        %v4152 = vsel %vm1688, %v4150, %v4151
        %4153 = vrot.lane.b32.xlu0 %v4030, 16
        %v4154 = vpop.permute.xlu0 %4153
        %4155 = vrot.lane.b32.xlu0 %v4033, 16
        %v4156 = vpop.permute.xlu0 %4155
        %4157 = vrot.lane.b32.xlu0 %v4037, 16
        %v4158 = vpop.permute.xlu0 %4157
        %4159 = vrot.lane.b32.xlu0 %v4040, 16
        %v4160 = vpop.permute.xlu0 %4159
        %4161 = vrot.lane.b32.xlu0 %v4044, 16
        %v4162 = vpop.permute.xlu0 %4161
        %4163 = vrot.lane.b32.xlu0 %v4047, 16
        %v4164 = vpop.permute.xlu0 %4163
        %4165 = vrot.lane.b32.xlu0 %v4051, 16
        %v4166 = vpop.permute.xlu0 %4165
        %4167 = vrot.lane.b32.xlu0 %v4054, 16
        %v4168 = vpop.permute.xlu0 %4167
        %4169 = vrot.lane.b32.xlu0 %v4058, 16
        %v4170 = vpop.permute.xlu0 %4169
        %4171 = vrot.lane.b32.xlu0 %v4061, 16
        %v4172 = vpop.permute.xlu0 %4171
        %4173 = vrot.lane.b32.xlu0 %v4065, 16
        %v4174 = vpop.permute.xlu0 %4173
        %4175 = vrot.lane.b32.xlu0 %v4068, 16
        %v4176 = vpop.permute.xlu0 %4175
        %4177 = vrot.lane.b32.xlu0 %v4072, 16
        %v4178 = vpop.permute.xlu0 %4177
        %4179 = vrot.lane.b32.xlu0 %v4075, 16
        %v4180 = vpop.permute.xlu0 %4179
        %4181 = vrot.lane.b32.xlu0 %v4079, 16
        %v4182 = vpop.permute.xlu0 %4181
        %4183 = vrot.lane.b32.xlu0 %v4082, 16
        %v4184 = vpop.permute.xlu0 %4183
        %4185 = vrot.lane.b32.xlu0 %v4086, 16
        %v4186 = vpop.permute.xlu0 %4185
        %4187 = vrot.lane.b32.xlu0 %v4089, 16
        %v4188 = vpop.permute.xlu0 %4187
        %4189 = vrot.lane.b32.xlu0 %v4093, 16
        %v4190 = vpop.permute.xlu0 %4189
        %4191 = vrot.lane.b32.xlu0 %v4096, 16
        %v4192 = vpop.permute.xlu0 %4191
        %4193 = vrot.lane.b32.xlu0 %v4100, 16
        %v4194 = vpop.permute.xlu0 %4193
        %4195 = vrot.lane.b32.xlu0 %v4103, 16
        %v4196 = vpop.permute.xlu0 %4195
        %4197 = vrot.lane.b32.xlu0 %v4107, 16
        %v4198 = vpop.permute.xlu0 %4197
        %4199 = vrot.lane.b32.xlu0 %v4110, 16
        %v4200 = vpop.permute.xlu0 %4199
        %4201 = vrot.lane.b32.xlu0 %v4114, 16
        %v4202 = vpop.permute.xlu0 %4201
        %4203 = vrot.lane.b32.xlu0 %v4117, 16
        %v4204 = vpop.permute.xlu0 %4203
        %4205 = vrot.lane.b32.xlu0 %v4121, 16
        %v4206 = vpop.permute.xlu0 %4205
        %4207 = vrot.lane.b32.xlu0 %v4124, 16
        %v4208 = vpop.permute.xlu0 %4207
        %4209 = vrot.lane.b32.xlu0 %v4128, 16
        %v4210 = vpop.permute.xlu0 %4209
        %4211 = vrot.lane.b32.xlu0 %v4131, 16
        %v4212 = vpop.permute.xlu0 %4211
        %4213 = vrot.lane.b32.xlu0 %v4135, 16
        %v4214 = vpop.permute.xlu0 %4213
        %4215 = vrot.lane.b32.xlu0 %v4138, 16
        %v4216 = vpop.permute.xlu0 %4215
        %4217 = vrot.lane.b32.xlu0 %v4142, 16
        %v4218 = vpop.permute.xlu0 %4217
        %4219 = vrot.lane.b32.xlu0 %v4145, 16
        %v4220 = vpop.permute.xlu0 %4219
        %4221 = vrot.lane.b32.xlu0 %v4149, 16
        %v4222 = vpop.permute.xlu0 %4221
        %4223 = vrot.lane.b32.xlu0 %v4152, 16
        %v4224 = vpop.permute.xlu0 %4223
        %vm4261 = vcmask 191616
        %4262 = vst.msk [vmem:[#allocation3] sm:$0xf] %vm4261, %v4154
        %4263 = vst.msk [vmem:[#allocation3 + $0x4] sm:$0xf] %vm4261, %v4156
        %4264 = vst.msk [vmem:[#allocation3 + $0x8] sm:$0xf] %vm4261, %v4158
        %4265 = vst.msk [vmem:[#allocation3 + $0xc] sm:$0xf] %vm4261, %v4160
        %4266 = vst.msk [vmem:[#allocation3 + $0x10] sm:$0xf] %vm4261, %v4162
        %4267 = vst.msk [vmem:[#allocation3 + $0x14] sm:$0xf] %vm4261, %v4164
        %4268 = vst.msk [vmem:[#allocation3 + $0x18] sm:$0xf] %vm4261, %v4166
        %4269 = vst.msk [vmem:[#allocation3 + $0x1c] sm:$0xf] %vm4261, %v4168
        %4270 = vst.msk [vmem:[#allocation3 + $0x20] sm:$0xf] %vm4261, %v4170
        %4271 = vst.msk [vmem:[#allocation3 + $0x24] sm:$0xf] %vm4261, %v4172
        %4272 = vst.msk [vmem:[#allocation3 + $0x28] sm:$0xf] %vm4261, %v4174
        %4273 = vst.msk [vmem:[#allocation3 + $0x2c] sm:$0xf] %vm4261, %v4176
        %4274 = vst.msk [vmem:[#allocation3 + $0x30] sm:$0xf] %vm4261, %v4178
        %4275 = vst.msk [vmem:[#allocation3 + $0x34] sm:$0xf] %vm4261, %v4180
        %4276 = vst.msk [vmem:[#allocation3 + $0x38] sm:$0xf] %vm4261, %v4182
        %4277 = vst.msk [vmem:[#allocation3 + $0x3c] sm:$0xf] %vm4261, %v4184
        %4278 = vst.msk [vmem:[#allocation3 + $0x40] sm:$0xf] %vm4261, %v4186
        %4279 = vst.msk [vmem:[#allocation3 + $0x44] sm:$0xf] %vm4261, %v4188
        %4280 = vst.msk [vmem:[#allocation3 + $0x48] sm:$0xf] %vm4261, %v4190
        %4281 = vst.msk [vmem:[#allocation3 + $0x4c] sm:$0xf] %vm4261, %v4192
        %4282 = vst.msk [vmem:[#allocation3 + $0x50] sm:$0xf] %vm4261, %v4194
        %4283 = vst.msk [vmem:[#allocation3 + $0x54] sm:$0xf] %vm4261, %v4196
        %4284 = vst.msk [vmem:[#allocation3 + $0x58] sm:$0xf] %vm4261, %v4198
        %4285 = vst.msk [vmem:[#allocation3 + $0x5c] sm:$0xf] %vm4261, %v4200
        %4286 = vst.msk [vmem:[#allocation3 + $0x60] sm:$0xf] %vm4261, %v4202
        %4287 = vst.msk [vmem:[#allocation3 + $0x64] sm:$0xf] %vm4261, %v4204
        %4288 = vst.msk [vmem:[#allocation3 + $0x68] sm:$0xf] %vm4261, %v4206
        %4289 = vst.msk [vmem:[#allocation3 + $0x6c] sm:$0xf] %vm4261, %v4208
        %4290 = vst.msk [vmem:[#allocation3 + $0x70] sm:$0xf] %vm4261, %v4210
        %4291 = vst.msk [vmem:[#allocation3 + $0x74] sm:$0xf] %vm4261, %v4212
        %4292 = vst.msk [vmem:[#allocation3 + $0x78] sm:$0xf] %vm4261, %v4214
        %4293 = vst.msk [vmem:[#allocation3 + $0x7c] sm:$0xf] %vm4261, %v4216
        %4294 = vst.msk [vmem:[#allocation3 + $0x80] sm:$0xf] %vm4261, %v4218
        %4295 = vst.msk [vmem:[#allocation3 + $0x84] sm:$0xf] %vm4261, %v4220
        %4296 = vst.msk [vmem:[#allocation3 + $0x88] sm:$0xf] %vm4261, %v4222
        %4297 = vst.msk [vmem:[#allocation3 + $0x8c] sm:$0xf] %vm4261, %v4224
        %v4298 = vld [vmem:[#allocation3] sm:$0xf]
        %v4299 = vld [vmem:[#allocation3 + $0x4] sm:$0xf]
        %v4300 = vld [vmem:[#allocation3 + $0x8] sm:$0xf]
        %v4301 = vld [vmem:[#allocation3 + $0xc] sm:$0xf]
        %v4302 = vld [vmem:[#allocation3 + $0x10] sm:$0xf]
        %v4303 = vld [vmem:[#allocation3 + $0x14] sm:$0xf]
        %v4304 = vld [vmem:[#allocation3 + $0x18] sm:$0xf]
        %v4305 = vld [vmem:[#allocation3 + $0x1c] sm:$0xf]
        %v4306 = vld [vmem:[#allocation3 + $0x20] sm:$0xf]
        %v4307 = vld [vmem:[#allocation3 + $0x24] sm:$0xf]
        %v4308 = vld [vmem:[#allocation3 + $0x28] sm:$0xf]
        %v4309 = vld [vmem:[#allocation3 + $0x2c] sm:$0xf]
        %v4310 = vld [vmem:[#allocation3 + $0x30] sm:$0xf]
        %v4311 = vld [vmem:[#allocation3 + $0x34] sm:$0xf]
        %v4312 = vld [vmem:[#allocation3 + $0x38] sm:$0xf]
        %v4313 = vld [vmem:[#allocation3 + $0x3c] sm:$0xf]
        %v4314 = vld [vmem:[#allocation3 + $0x40] sm:$0xf]
        %v4315 = vld [vmem:[#allocation3 + $0x44] sm:$0xf]
        %v4316 = vld [vmem:[#allocation3 + $0x48] sm:$0xf]
        %v4317 = vld [vmem:[#allocation3 + $0x4c] sm:$0xf]
        %v4318 = vld [vmem:[#allocation3 + $0x50] sm:$0xf]
        %v4319 = vld [vmem:[#allocation3 + $0x54] sm:$0xf]
        %v4320 = vld [vmem:[#allocation3 + $0x58] sm:$0xf]
        %v4321 = vld [vmem:[#allocation3 + $0x5c] sm:$0xf]
        %v4322 = vld [vmem:[#allocation3 + $0x60] sm:$0xf]
        %v4323 = vld [vmem:[#allocation3 + $0x64] sm:$0xf]
        %v4324 = vld [vmem:[#allocation3 + $0x68] sm:$0xf]
        %v4325 = vld [vmem:[#allocation3 + $0x6c] sm:$0xf]
        %v4326 = vld [vmem:[#allocation3 + $0x70] sm:$0xf]
        %v4327 = vld [vmem:[#allocation3 + $0x74] sm:$0xf]
        %v4328 = vld [vmem:[#allocation3 + $0x78] sm:$0xf]
        %v4329 = vld [vmem:[#allocation3 + $0x7c] sm:$0xf]
        %v4330 = vld [vmem:[%s1992] sm:$0xf]
        %v4331 = vld [vmem:[%s1992 + $0x4] sm:$0xf]
        %v4332 = vld [vmem:[%s1992 + $0x8] sm:$0xf]
        %v4333 = vld [vmem:[%s1992 + $0xc] sm:$0xf]
        %v4334 = vld [vmem:[%s1992 + $0x10] sm:$0xf]
        %v4335 = vld [vmem:[%s1992 + $0x14] sm:$0xf]
        %v4336 = vld [vmem:[%s1992 + $0x18] sm:$0xf]
        %v4337 = vld [vmem:[%s1992 + $0x1c] sm:$0xf]
        %v4338 = vld [vmem:[%s1992 + $0x20] sm:$0xf]
        %v4339 = vld [vmem:[%s1992 + $0x24] sm:$0xf]
        %v4340 = vld [vmem:[%s1992 + $0x28] sm:$0xf]
        %v4341 = vld [vmem:[%s1992 + $0x2c] sm:$0xf]
        %v4342 = vld [vmem:[%s1992 + $0x30] sm:$0xf]
        %v4343 = vld [vmem:[%s1992 + $0x34] sm:$0xf]
        %v4344 = vld [vmem:[%s1992 + $0x38] sm:$0xf]
        %v4345 = vld [vmem:[%s1992 + $0x3c] sm:$0xf]
        %v4346 = vld [vmem:[%s1992 + $0x40] sm:$0xf]
        %v4347 = vld [vmem:[%s1992 + $0x44] sm:$0xf]
        %v4348 = vld [vmem:[%s1992 + $0x48] sm:$0xf]
        %v4349 = vld [vmem:[%s1992 + $0x4c] sm:$0xf]
        %v4350 = vld [vmem:[%s1992 + $0x50] sm:$0xf]
        %v4351 = vld [vmem:[%s1992 + $0x54] sm:$0xf]
        %v4352 = vld [vmem:[%s1992 + $0x58] sm:$0xf]
        %v4353 = vld [vmem:[%s1992 + $0x5c] sm:$0xf]
        %v4354 = vld [vmem:[%s1992 + $0x60] sm:$0xf]
        %v4355 = vld [vmem:[%s1992 + $0x64] sm:$0xf]
        %v4356 = vld [vmem:[%s1992 + $0x68] sm:$0xf]
        %v4357 = vld [vmem:[%s1992 + $0x6c] sm:$0xf]
        %v4358 = vld [vmem:[%s1992 + $0x70] sm:$0xf]
        %v4359 = vld [vmem:[%s1992 + $0x74] sm:$0xf]
        %v4360 = vld [vmem:[%s1992 + $0x78] sm:$0xf]
        %v4361 = vld [vmem:[%s1992 + $0x7c] sm:$0xf]
        %v4362 = vld [vmem:[%s2025] sm:$0xf]
        %v4363 = vld [vmem:[%s2025 + $0x4] sm:$0xf]
        %v4364 = vld [vmem:[%s2025 + $0x8] sm:$0xf]
        %v4365 = vld [vmem:[%s2025 + $0xc] sm:$0xf]
        %v4366 = vld [vmem:[%s2025 + $0x10] sm:$0xf]
        %v4367 = vld [vmem:[%s2025 + $0x14] sm:$0xf]
        %v4368 = vld [vmem:[%s2025 + $0x18] sm:$0xf]
        %v4369 = vld [vmem:[%s2025 + $0x1c] sm:$0xf]
        %v4370 = vld [vmem:[%s2025 + $0x20] sm:$0xf]
        %v4371 = vld [vmem:[%s2025 + $0x24] sm:$0xf]
        %v4372 = vld [vmem:[%s2025 + $0x28] sm:$0xf]
        %v4373 = vld [vmem:[%s2025 + $0x2c] sm:$0xf]
        %v4374 = vld [vmem:[%s2025 + $0x30] sm:$0xf]
        %v4375 = vld [vmem:[%s2025 + $0x34] sm:$0xf]
        %v4376 = vld [vmem:[%s2025 + $0x38] sm:$0xf]
        %v4377 = vld [vmem:[%s2025 + $0x3c] sm:$0xf]
        %v4378 = vld [vmem:[%s2025 + $0x40] sm:$0xf]
        %v4379 = vld [vmem:[%s2025 + $0x44] sm:$0xf]
        %v4380 = vld [vmem:[%s2025 + $0x48] sm:$0xf]
        %v4381 = vld [vmem:[%s2025 + $0x4c] sm:$0xf]
        %v4382 = vld [vmem:[%s2025 + $0x50] sm:$0xf]
        %v4383 = vld [vmem:[%s2025 + $0x54] sm:$0xf]
        %v4384 = vld [vmem:[%s2025 + $0x58] sm:$0xf]
        %v4385 = vld [vmem:[%s2025 + $0x5c] sm:$0xf]
        %v4386 = vld [vmem:[%s2025 + $0x60] sm:$0xf]
        %v4387 = vld [vmem:[%s2025 + $0x64] sm:$0xf]
        %v4388 = vld [vmem:[%s2025 + $0x68] sm:$0xf]
        %v4389 = vld [vmem:[%s2025 + $0x6c] sm:$0xf]
        %v4390 = vld [vmem:[%s2025 + $0x70] sm:$0xf]
        %v4391 = vld [vmem:[%s2025 + $0x74] sm:$0xf]
        %v4392 = vld [vmem:[%s2025 + $0x78] sm:$0xf]
        %v4393 = vld [vmem:[%s2025 + $0x7c] sm:$0xf]
        %v4426 = vunpack.c.l.b16 %v4298
        %v4427 = vunpack.c.l.b16 %v4299
        %v4428 = vunpack.c.l.b16 %v4300
        %v4429 = vunpack.c.l.b16 %v4301
        %v4430 = vunpack.c.l.b16 %v4302
        %v4431 = vunpack.c.l.b16 %v4303
        %v4432 = vunpack.c.l.b16 %v4304
        %v4433 = vunpack.c.l.b16 %v4305
        %v4434 = vunpack.c.l.b16 %v4306
        %v4435 = vunpack.c.l.b16 %v4307
        %v4436 = vunpack.c.l.b16 %v4308
        %v4437 = vunpack.c.l.b16 %v4309
        %v4438 = vunpack.c.l.b16 %v4310
        %v4439 = vunpack.c.l.b16 %v4311
        %v4440 = vunpack.c.l.b16 %v4312
        %v4441 = vunpack.c.l.b16 %v4313
        %v4442 = vunpack.c.l.b16 %v4314
        %v4443 = vunpack.c.l.b16 %v4315
        %v4444 = vunpack.c.l.b16 %v4316
        %v4445 = vunpack.c.l.b16 %v4317
        %v4446 = vunpack.c.l.b16 %v4318
        %v4447 = vunpack.c.l.b16 %v4319
        %v4448 = vunpack.c.l.b16 %v4320
        %v4449 = vunpack.c.l.b16 %v4321
        %v4450 = vunpack.c.l.b16 %v4322
        %v4451 = vunpack.c.l.b16 %v4323
        %v4452 = vunpack.c.l.b16 %v4324
        %v4453 = vunpack.c.l.b16 %v4325
        %v4454 = vunpack.c.l.b16 %v4326
        %v4455 = vunpack.c.l.b16 %v4327
        %v4456 = vunpack.c.l.b16 %v4328
        %v4457 = vunpack.c.l.b16 %v4329
        %v4458 = vpack.c.b16 %v4427, %v4426
        %v4459 = vpack.c.b16 %v4429, %v4428
        %v4460 = vpack.c.b16 %v4431, %v4430
        %v4461 = vpack.c.b16 %v4433, %v4432
        %v4462 = vpack.c.b16 %v4435, %v4434
        %v4463 = vpack.c.b16 %v4437, %v4436
        %v4464 = vpack.c.b16 %v4439, %v4438
        %v4465 = vpack.c.b16 %v4441, %v4440
        %v4466 = vpack.c.b16 %v4443, %v4442
        %v4467 = vpack.c.b16 %v4445, %v4444
        %v4468 = vpack.c.b16 %v4447, %v4446
        %v4469 = vpack.c.b16 %v4449, %v4448
        %v4470 = vpack.c.b16 %v4451, %v4450
        %v4471 = vpack.c.b16 %v4453, %v4452
        %v4472 = vpack.c.b16 %v4455, %v4454
        %v4473 = vpack.c.b16 %v4457, %v4456
        %v4506 = vunpack.c.l.b16 %v4330
        %v4507 = vunpack.c.l.b16 %v4331
        %v4508 = vunpack.c.l.b16 %v4332
        %v4509 = vunpack.c.l.b16 %v4333
        %v4510 = vunpack.c.l.b16 %v4334
        %v4511 = vunpack.c.l.b16 %v4335
        %v4512 = vunpack.c.l.b16 %v4336
        %v4513 = vunpack.c.l.b16 %v4337
        %v4514 = vunpack.c.l.b16 %v4338
        %v4515 = vunpack.c.l.b16 %v4339
        %v4516 = vunpack.c.l.b16 %v4340
        %v4517 = vunpack.c.l.b16 %v4341
        %v4518 = vunpack.c.l.b16 %v4342
        %v4519 = vunpack.c.l.b16 %v4343
        %v4520 = vunpack.c.l.b16 %v4344
        %v4521 = vunpack.c.l.b16 %v4345
        %v4522 = vunpack.c.l.b16 %v4346
        %v4523 = vunpack.c.l.b16 %v4347
        %v4524 = vunpack.c.l.b16 %v4348
        %v4525 = vunpack.c.l.b16 %v4349
        %v4526 = vunpack.c.l.b16 %v4350
        %v4527 = vunpack.c.l.b16 %v4351
        %v4528 = vunpack.c.l.b16 %v4352
        %v4529 = vunpack.c.l.b16 %v4353
        %v4530 = vunpack.c.l.b16 %v4354
        %v4531 = vunpack.c.l.b16 %v4355
        %v4532 = vunpack.c.l.b16 %v4356
        %v4533 = vunpack.c.l.b16 %v4357
        %v4534 = vunpack.c.l.b16 %v4358
        %v4535 = vunpack.c.l.b16 %v4359
        %v4536 = vunpack.c.l.b16 %v4360
        %v4537 = vunpack.c.l.b16 %v4361
        %v4538 = vpack.c.b16 %v4507, %v4506
        %v4539 = vpack.c.b16 %v4509, %v4508
        %v4540 = vpack.c.b16 %v4511, %v4510
        %v4541 = vpack.c.b16 %v4513, %v4512
        %v4542 = vpack.c.b16 %v4515, %v4514
        %v4543 = vpack.c.b16 %v4517, %v4516
        %v4544 = vpack.c.b16 %v4519, %v4518
        %v4545 = vpack.c.b16 %v4521, %v4520
        %v4546 = vpack.c.b16 %v4523, %v4522
        %v4547 = vpack.c.b16 %v4525, %v4524
        %v4548 = vpack.c.b16 %v4527, %v4526
        %v4549 = vpack.c.b16 %v4529, %v4528
        %v4550 = vpack.c.b16 %v4531, %v4530
        %v4551 = vpack.c.b16 %v4533, %v4532
        %v4552 = vpack.c.b16 %v4535, %v4534
        %v4553 = vpack.c.b16 %v4537, %v4536
        %4554 = vrot.lane.b32.xlu0 %v4538, 24
        %v4555 = vpop.permute.xlu0 %4554
        %4556 = vrot.lane.b32.xlu0 %v4539, 24
        %v4557 = vpop.permute.xlu0 %4556
        %4558 = vrot.lane.b32.xlu0 %v4540, 24
        %v4559 = vpop.permute.xlu0 %4558
        %4560 = vrot.lane.b32.xlu0 %v4541, 24
        %v4561 = vpop.permute.xlu0 %4560
        %4562 = vrot.lane.b32.xlu0 %v4542, 24
        %v4563 = vpop.permute.xlu0 %4562
        %4564 = vrot.lane.b32.xlu0 %v4543, 24
        %v4565 = vpop.permute.xlu0 %4564
        %4566 = vrot.lane.b32.xlu0 %v4544, 24
        %v4567 = vpop.permute.xlu0 %4566
        %4568 = vrot.lane.b32.xlu0 %v4545, 24
        %v4569 = vpop.permute.xlu0 %4568
        %4570 = vrot.lane.b32.xlu0 %v4546, 24
        %v4571 = vpop.permute.xlu0 %4570
        %4572 = vrot.lane.b32.xlu0 %v4547, 24
        %v4573 = vpop.permute.xlu0 %4572
        %4574 = vrot.lane.b32.xlu0 %v4548, 24
        %v4575 = vpop.permute.xlu0 %4574
        %4576 = vrot.lane.b32.xlu0 %v4549, 24
        %v4577 = vpop.permute.xlu0 %4576
        %4578 = vrot.lane.b32.xlu0 %v4550, 24
        %v4579 = vpop.permute.xlu0 %4578
        %4580 = vrot.lane.b32.xlu0 %v4551, 24
        %v4581 = vpop.permute.xlu0 %4580
        %4582 = vrot.lane.b32.xlu0 %v4552, 24
        %v4583 = vpop.permute.xlu0 %4582
        %4584 = vrot.lane.b32.xlu0 %v4553, 24
        %v4585 = vpop.permute.xlu0 %4584
        %v4618 = vunpack.c.l.b16 %v4362
        %v4619 = vunpack.c.l.b16 %v4363
        %v4620 = vunpack.c.l.b16 %v4364
        %v4621 = vunpack.c.l.b16 %v4365
        %v4622 = vunpack.c.l.b16 %v4366
        %v4623 = vunpack.c.l.b16 %v4367
        %v4624 = vunpack.c.l.b16 %v4368
        %v4625 = vunpack.c.l.b16 %v4369
        %v4626 = vunpack.c.l.b16 %v4370
        %v4627 = vunpack.c.l.b16 %v4371
        %v4628 = vunpack.c.l.b16 %v4372
        %v4629 = vunpack.c.l.b16 %v4373
        %v4630 = vunpack.c.l.b16 %v4374
        %v4631 = vunpack.c.l.b16 %v4375
        %v4632 = vunpack.c.l.b16 %v4376
        %v4633 = vunpack.c.l.b16 %v4377
        %v4634 = vunpack.c.l.b16 %v4378
        %v4635 = vunpack.c.l.b16 %v4379
        %v4636 = vunpack.c.l.b16 %v4380
        %v4637 = vunpack.c.l.b16 %v4381
        %v4638 = vunpack.c.l.b16 %v4382
        %v4639 = vunpack.c.l.b16 %v4383
        %v4640 = vunpack.c.l.b16 %v4384
        %v4641 = vunpack.c.l.b16 %v4385
        %v4642 = vunpack.c.l.b16 %v4386
        %v4643 = vunpack.c.l.b16 %v4387
        %v4644 = vunpack.c.l.b16 %v4388
        %v4645 = vunpack.c.l.b16 %v4389
        %v4646 = vunpack.c.l.b16 %v4390
        %v4647 = vunpack.c.l.b16 %v4391
        %v4648 = vunpack.c.l.b16 %v4392
        %v4649 = vunpack.c.l.b16 %v4393
        %v4650 = vpack.c.b16 %v4619, %v4618
        %v4651 = vpack.c.b16 %v4621, %v4620
        %v4652 = vpack.c.b16 %v4623, %v4622
        %v4653 = vpack.c.b16 %v4625, %v4624
        %v4654 = vpack.c.b16 %v4627, %v4626
        %v4655 = vpack.c.b16 %v4629, %v4628
        %v4656 = vpack.c.b16 %v4631, %v4630
        %v4657 = vpack.c.b16 %v4633, %v4632
        %v4658 = vpack.c.b16 %v4635, %v4634
        %v4659 = vpack.c.b16 %v4637, %v4636
        %v4660 = vpack.c.b16 %v4639, %v4638
        %v4661 = vpack.c.b16 %v4641, %v4640
        %v4662 = vpack.c.b16 %v4643, %v4642
        %v4663 = vpack.c.b16 %v4645, %v4644
        %v4664 = vpack.c.b16 %v4647, %v4646
        %v4665 = vpack.c.b16 %v4649, %v4648
        %4666 = vrot.lane.b32.xlu0 %v4650, 48
        %v4667 = vpop.permute.xlu0 %4666
        %4668 = vrot.lane.b32.xlu0 %v4651, 48
        %v4669 = vpop.permute.xlu0 %4668
        %4670 = vrot.lane.b32.xlu0 %v4652, 48
        %v4671 = vpop.permute.xlu0 %4670
        %4672 = vrot.lane.b32.xlu0 %v4653, 48
        %v4673 = vpop.permute.xlu0 %4672
        %4674 = vrot.lane.b32.xlu0 %v4654, 48
        %v4675 = vpop.permute.xlu0 %4674
        %4676 = vrot.lane.b32.xlu0 %v4655, 48
        %v4677 = vpop.permute.xlu0 %4676
        %4678 = vrot.lane.b32.xlu0 %v4656, 48
        %v4679 = vpop.permute.xlu0 %4678
        %4680 = vrot.lane.b32.xlu0 %v4657, 48
        %v4681 = vpop.permute.xlu0 %4680
        %4682 = vrot.lane.b32.xlu0 %v4658, 48
        %v4683 = vpop.permute.xlu0 %4682
        %4684 = vrot.lane.b32.xlu0 %v4659, 48
        %v4685 = vpop.permute.xlu0 %4684
        %4686 = vrot.lane.b32.xlu0 %v4660, 48
        %v4687 = vpop.permute.xlu0 %4686
        %4688 = vrot.lane.b32.xlu0 %v4661, 48
        %v4689 = vpop.permute.xlu0 %4688
        %4690 = vrot.lane.b32.xlu0 %v4662, 48
        %v4691 = vpop.permute.xlu0 %4690
        %4692 = vrot.lane.b32.xlu0 %v4663, 48
        %v4693 = vpop.permute.xlu0 %4692
        %4694 = vrot.lane.b32.xlu0 %v4664, 48
        %v4695 = vpop.permute.xlu0 %4694
        %4696 = vrot.lane.b32.xlu0 %v4665, 48
        %v4697 = vpop.permute.xlu0 %4696
        %vm4698 = vcmask 195584
        %v4701 = vsel %vm4698, %v4458, %v4555
        %v4704 = vsel %vm4698, %v4459, %v4557
        %v4707 = vsel %vm4698, %v4460, %v4559
        %v4710 = vsel %vm4698, %v4461, %v4561
        %v4713 = vsel %vm4698, %v4462, %v4563
        %v4716 = vsel %vm4698, %v4463, %v4565
        %v4719 = vsel %vm4698, %v4464, %v4567
        %v4722 = vsel %vm4698, %v4465, %v4569
        %v4725 = vsel %vm4698, %v4466, %v4571
        %v4728 = vsel %vm4698, %v4467, %v4573
        %v4731 = vsel %vm4698, %v4468, %v4575
        %v4734 = vsel %vm4698, %v4469, %v4577
        %v4737 = vsel %vm4698, %v4470, %v4579
        %v4740 = vsel %vm4698, %v4471, %v4581
        %v4743 = vsel %vm4698, %v4472, %v4583
        %v4746 = vsel %vm4698, %v4473, %v4585
        %vm4747 = vcmask 392192
        %v4749 = vsel %vm4747, %v4701, %v4667
        %v4751 = vsel %vm4747, %v4704, %v4669
        %v4753 = vsel %vm4747, %v4707, %v4671
        %v4755 = vsel %vm4747, %v4710, %v4673
        %v4757 = vsel %vm4747, %v4713, %v4675
        %v4759 = vsel %vm4747, %v4716, %v4677
        %v4761 = vsel %vm4747, %v4719, %v4679
        %v4763 = vsel %vm4747, %v4722, %v4681
        %v4765 = vsel %vm4747, %v4725, %v4683
        %v4767 = vsel %vm4747, %v4728, %v4685
        %v4769 = vsel %vm4747, %v4731, %v4687
        %v4771 = vsel %vm4747, %v4734, %v4689
        %v4773 = vsel %vm4747, %v4737, %v4691
        %v4775 = vsel %vm4747, %v4740, %v4693
        %v4777 = vsel %vm4747, %v4743, %v4695
        %v4779 = vsel %vm4747, %v4746, %v4697
        %v4780 = vld [vmem:[%s4] sm:$0xf]
        %v4781 = vld [vmem:[%s4 + $0x4] sm:$0xf]
        %v4782 = vld [vmem:[%s4 + $0x8] sm:$0xf]
        %v4783 = vld [vmem:[%s4 + $0xc] sm:$0xf]
        %v4784 = vld [vmem:[%s4 + $0x10] sm:$0xf]
        %v4785 = vld [vmem:[%s4 + $0x14] sm:$0xf]
        %v4786 = vld [vmem:[%s4 + $0x18] sm:$0xf]
        %v4787 = vld [vmem:[%s4 + $0x1c] sm:$0xf]
        %v4788 = vld [vmem:[%s4 + $0x20] sm:$0xf]
        %v4798 = vunpack.c.l.b16 %v4780
        %v4799 = vunpack.c.l.b16 %v4781
        %v4800 = vunpack.c.l.b16 %v4782
        %v4801 = vunpack.c.l.b16 %v4783
        %v4802 = vunpack.c.l.b16 %v4784
        %v4803 = vunpack.c.l.b16 %v4785
        %v4804 = vunpack.c.l.b16 %v4786
        %v4805 = vunpack.c.l.b16 %v4787
        %v4806 = vunpack.c.l.b16 %v4788
        %v4807 = vpack.c.b16 %v4799, %v4798
        %v4808 = vpack.c.b16 %v4801, %v4800
        %v4809 = vpack.c.b16 %v4803, %v4802
        %v4810 = vpack.c.b16 %v4805, %v4804
        %v4811 = vpack.c.b16 %v4806, %v4806
        %vm4816 = vcmask 588800
        %v4817 = vsel %vm4816, %v4749, 0
        %v4819 = vsel %vm4816, %v4751, 0
        %v4821 = vsel %vm4816, %v4753, 0
        %v4823 = vsel %vm4816, %v4755, 0
        %v4825 = vsel %vm4816, %v4757, 0
        %v4827 = vsel %vm4816, %v4759, 0
        %v4829 = vsel %vm4816, %v4761, 0
        %v4831 = vsel %vm4816, %v4763, 0
        %v4833 = vsel %vm4816, %v4765, 0
        %v4835 = vsel %vm4816, %v4767, 0
        %v4837 = vsel %vm4816, %v4769, 0
        %v4839 = vsel %vm4816, %v4771, 0
        %v4841 = vsel %vm4816, %v4773, 0
        %v4843 = vsel %vm4816, %v4775, 0
        %v4845 = vsel %vm4816, %v4777, 0
        %v4847 = vsel %vm4816, %v4779, 0
        %vm4849 = vcmask 1043456
        %v4851 = vsel %vm4849, %v4811, 0
        %4853 = vmatpush.bf16.msra.mxu0 0
        %4854 = vmatpush.bf16.msra.mxu0 0
        %4855 = vmatpush.bf16.msra.mxu0 0
        %4856 = vmatpush.bf16.msra.mxu0 %v4851
        %4857 = vmatpush.bf16.msra.mxu0 %v4810
        %4858 = vmatpush.bf16.msra.mxu0 %v4809
        %4859 = vmatpush.bf16.msra.mxu0 %v4808
        %4860 = vmatpush.bf16.msra.mxu0 %v4807
        %4861 = vmatmul.bf16.gmra.mxu0 %v4817
        %v4862 = vpop.f32.mrf.mxu0
        %v4863 = vadd.f32 0.0, %v4862
        %v4864 = vpop.f32.mrf.mxu0
        %v4865 = vadd.f32 0.0, %v4864
        %4866 = vmatmul.bf16.gmra.mxu0 %v4819
        %v4867 = vpop.f32.mrf.mxu0
        %v4868 = vadd.f32 0.0, %v4867
        %v4869 = vpop.f32.mrf.mxu0
        %v4870 = vadd.f32 0.0, %v4869
        %4871 = vmatmul.bf16.gmra.mxu0 %v4821
        %v4872 = vpop.f32.mrf.mxu0
        %v4873 = vadd.f32 0.0, %v4872
        %v4874 = vpop.f32.mrf.mxu0
        %v4875 = vadd.f32 0.0, %v4874
        %4876 = vmatmul.bf16.gmra.mxu0 %v4823
        %v4877 = vpop.f32.mrf.mxu0
        %v4878 = vadd.f32 0.0, %v4877
        %v4879 = vpop.f32.mrf.mxu0
        %v4880 = vadd.f32 0.0, %v4879
        %4881 = vmatmul.bf16.gmra.mxu0 %v4825
        %v4882 = vpop.f32.mrf.mxu0
        %v4883 = vadd.f32 0.0, %v4882
        %v4884 = vpop.f32.mrf.mxu0
        %v4885 = vadd.f32 0.0, %v4884
        %4886 = vmatmul.bf16.gmra.mxu0 %v4827
        %v4887 = vpop.f32.mrf.mxu0
        %v4888 = vadd.f32 0.0, %v4887
        %v4889 = vpop.f32.mrf.mxu0
        %v4890 = vadd.f32 0.0, %v4889
        %4891 = vmatmul.bf16.gmra.mxu0 %v4829
        %v4892 = vpop.f32.mrf.mxu0
        %v4893 = vadd.f32 0.0, %v4892
        %v4894 = vpop.f32.mrf.mxu0
        %v4895 = vadd.f32 0.0, %v4894
        %4896 = vmatmul.bf16.gmra.mxu0 %v4831
        %v4897 = vpop.f32.mrf.mxu0
        %v4898 = vadd.f32 0.0, %v4897
        %v4899 = vpop.f32.mrf.mxu0
        %v4900 = vadd.f32 0.0, %v4899
        %4901 = vmatmul.bf16.gmra.mxu0 %v4833
        %v4902 = vpop.f32.mrf.mxu0
        %v4903 = vadd.f32 0.0, %v4902
        %v4904 = vpop.f32.mrf.mxu0
        %v4905 = vadd.f32 0.0, %v4904
        %4906 = vmatmul.bf16.gmra.mxu0 %v4835
        %v4907 = vpop.f32.mrf.mxu0
        %v4908 = vadd.f32 0.0, %v4907
        %v4909 = vpop.f32.mrf.mxu0
        %v4910 = vadd.f32 0.0, %v4909
        %4911 = vmatmul.bf16.gmra.mxu0 %v4837
        %v4912 = vpop.f32.mrf.mxu0
        %v4913 = vadd.f32 0.0, %v4912
        %v4914 = vpop.f32.mrf.mxu0
        %v4915 = vadd.f32 0.0, %v4914
        %4916 = vmatmul.bf16.gmra.mxu0 %v4839
        %v4917 = vpop.f32.mrf.mxu0
        %v4918 = vadd.f32 0.0, %v4917
        %v4919 = vpop.f32.mrf.mxu0
        %v4920 = vadd.f32 0.0, %v4919
        %4921 = vmatmul.bf16.gmra.mxu0 %v4841
        %v4922 = vpop.f32.mrf.mxu0
        %v4923 = vadd.f32 0.0, %v4922
        %v4924 = vpop.f32.mrf.mxu0
        %v4925 = vadd.f32 0.0, %v4924
        %4926 = vmatmul.bf16.gmra.mxu0 %v4843
        %v4927 = vpop.f32.mrf.mxu0
        %v4928 = vadd.f32 0.0, %v4927
        %v4929 = vpop.f32.mrf.mxu0
        %v4930 = vadd.f32 0.0, %v4929
        %4931 = vmatmul.bf16.gmra.mxu0 %v4845
        %v4932 = vpop.f32.mrf.mxu0
        %v4933 = vadd.f32 0.0, %v4932
        %v4934 = vpop.f32.mrf.mxu0
        %v4935 = vadd.f32 0.0, %v4934
        %4936 = vmatmul.bf16.gmra.mxu0 %v4847
        %v4937 = vpop.f32.mrf.mxu0
        %v4938 = vadd.f32 0.0, %v4937
        %v4939 = vpop.f32.mrf.mxu0
        %v4940 = vadd.f32 0.0, %v4939
        %4941 = vdwg.mxu0
        %v4942 = vld [vmem:[%s5] sm:$0x1]
        %v4944 = vperm.slane %v4942, 0
        %v4946 = vmul.f32 %v4863, %v4944
        %v4947 = vmul.f32 %v4865, %v4944
        %v4948 = vmul.f32 %v4868, %v4944
        %v4949 = vmul.f32 %v4870, %v4944
        %v4950 = vmul.f32 %v4873, %v4944
        %v4951 = vmul.f32 %v4875, %v4944
        %v4952 = vmul.f32 %v4878, %v4944
        %v4953 = vmul.f32 %v4880, %v4944
        %v4954 = vmul.f32 %v4883, %v4944
        %v4955 = vmul.f32 %v4885, %v4944
        %v4956 = vmul.f32 %v4888, %v4944
        %v4957 = vmul.f32 %v4890, %v4944
        %v4958 = vmul.f32 %v4893, %v4944
        %v4959 = vmul.f32 %v4895, %v4944
        %v4960 = vmul.f32 %v4898, %v4944
        %v4961 = vmul.f32 %v4900, %v4944
        %v4962 = vmul.f32 %v4903, %v4944
        %v4963 = vmul.f32 %v4905, %v4944
        %v4964 = vmul.f32 %v4908, %v4944
        %v4965 = vmul.f32 %v4910, %v4944
        %v4966 = vmul.f32 %v4913, %v4944
        %v4967 = vmul.f32 %v4915, %v4944
        %v4968 = vmul.f32 %v4918, %v4944
        %v4969 = vmul.f32 %v4920, %v4944
        %v4970 = vmul.f32 %v4923, %v4944
        %v4971 = vmul.f32 %v4925, %v4944
        %v4972 = vmul.f32 %v4928, %v4944
        %v4973 = vmul.f32 %v4930, %v4944
        %v4974 = vmul.f32 %v4933, %v4944
        %v4975 = vmul.f32 %v4935, %v4944
        %v4976 = vmul.f32 %v4938, %v4944
        %v4977 = vmul.f32 %v4940, %v4944
        %v4978 = vld [vmem:[%s6] sm:$0x1]
        %v4980 = vperm.slane %v4978, 0
        %v4982 = vadd.f32 %v4946, %v4980
        %v4983 = vadd.f32 %v4947, %v4980
        %v4984 = vadd.f32 %v4948, %v4980
        %v4985 = vadd.f32 %v4949, %v4980
        %v4986 = vadd.f32 %v4950, %v4980
        %v4987 = vadd.f32 %v4951, %v4980
        %v4988 = vadd.f32 %v4952, %v4980
        %v4989 = vadd.f32 %v4953, %v4980
        %v4990 = vadd.f32 %v4954, %v4980
        %v4991 = vadd.f32 %v4955, %v4980
        %v4992 = vadd.f32 %v4956, %v4980
        %v4993 = vadd.f32 %v4957, %v4980
        %v4994 = vadd.f32 %v4958, %v4980
        %v4995 = vadd.f32 %v4959, %v4980
        %v4996 = vadd.f32 %v4960, %v4980
        %v4997 = vadd.f32 %v4961, %v4980
        %v4998 = vadd.f32 %v4962, %v4980
        %v4999 = vadd.f32 %v4963, %v4980
        %v5000 = vadd.f32 %v4964, %v4980
        %v5001 = vadd.f32 %v4965, %v4980
        %v5002 = vadd.f32 %v4966, %v4980
        %v5003 = vadd.f32 %v4967, %v4980
        %v5004 = vadd.f32 %v4968, %v4980
        %v5005 = vadd.f32 %v4969, %v4980
        %v5006 = vadd.f32 %v4970, %v4980
        %v5007 = vadd.f32 %v4971, %v4980
        %v5008 = vadd.f32 %v4972, %v4980
        %v5009 = vadd.f32 %v4973, %v4980
        %v5010 = vadd.f32 %v4974, %v4980
        %v5011 = vadd.f32 %v4975, %v4980
        %v5012 = vadd.f32 %v4976, %v4980
        %v5013 = vadd.f32 %v4977, %v4980
        %vm5014 = vcmp.ge.f32.partialorder %v4982, 0.0
        %vm5015 = vcmp.ge.f32.partialorder %v4983, 0.0
        %vm5016 = vcmp.ge.f32.partialorder %v4984, 0.0
        %vm5017 = vcmp.ge.f32.partialorder %v4985, 0.0
        %vm5018 = vcmp.ge.f32.partialorder %v4986, 0.0
        %vm5019 = vcmp.ge.f32.partialorder %v4987, 0.0
        %vm5020 = vcmp.ge.f32.partialorder %v4988, 0.0
        %vm5021 = vcmp.ge.f32.partialorder %v4989, 0.0
        %vm5022 = vcmp.ge.f32.partialorder %v4990, 0.0
        %vm5023 = vcmp.ge.f32.partialorder %v4991, 0.0
        %vm5024 = vcmp.ge.f32.partialorder %v4992, 0.0
        %vm5025 = vcmp.ge.f32.partialorder %v4993, 0.0
        %vm5026 = vcmp.ge.f32.partialorder %v4994, 0.0
        %vm5027 = vcmp.ge.f32.partialorder %v4995, 0.0
        %vm5028 = vcmp.ge.f32.partialorder %v4996, 0.0
        %vm5029 = vcmp.ge.f32.partialorder %v4997, 0.0
        %vm5030 = vcmp.ge.f32.partialorder %v4998, 0.0
        %vm5031 = vcmp.ge.f32.partialorder %v4999, 0.0
        %vm5032 = vcmp.ge.f32.partialorder %v5000, 0.0
        %vm5033 = vcmp.ge.f32.partialorder %v5001, 0.0
        %vm5034 = vcmp.ge.f32.partialorder %v5002, 0.0
        %vm5035 = vcmp.ge.f32.partialorder %v5003, 0.0
        %vm5036 = vcmp.ge.f32.partialorder %v5004, 0.0
        %vm5037 = vcmp.ge.f32.partialorder %v5005, 0.0
        %vm5038 = vcmp.ge.f32.partialorder %v5006, 0.0
        %vm5039 = vcmp.ge.f32.partialorder %v5007, 0.0
        %vm5040 = vcmp.ge.f32.partialorder %v5008, 0.0
        %vm5041 = vcmp.ge.f32.partialorder %v5009, 0.0
        %vm5042 = vcmp.ge.f32.partialorder %v5010, 0.0
        %vm5043 = vcmp.ge.f32.partialorder %v5011, 0.0
        %vm5044 = vcmp.ge.f32.partialorder %v5012, 0.0
        %vm5045 = vcmp.ge.f32.partialorder %v5013, 0.0
        %v5046 = vmul.f32 %v4982, 0.01
        %v5047 = vmul.f32 %v4983, 0.01
        %v5048 = vmul.f32 %v4984, 0.01
        %v5049 = vmul.f32 %v4985, 0.01
        %v5050 = vmul.f32 %v4986, 0.01
        %v5051 = vmul.f32 %v4987, 0.01
        %v5052 = vmul.f32 %v4988, 0.01
        %v5053 = vmul.f32 %v4989, 0.01
        %v5054 = vmul.f32 %v4990, 0.01
        %v5055 = vmul.f32 %v4991, 0.01
        %v5056 = vmul.f32 %v4992, 0.01
        %v5057 = vmul.f32 %v4993, 0.01
        %v5058 = vmul.f32 %v4994, 0.01
        %v5059 = vmul.f32 %v4995, 0.01
        %v5060 = vmul.f32 %v4996, 0.01
        %v5061 = vmul.f32 %v4997, 0.01
        %v5062 = vmul.f32 %v4998, 0.01
        %v5063 = vmul.f32 %v4999, 0.01
        %v5064 = vmul.f32 %v5000, 0.01
        %v5065 = vmul.f32 %v5001, 0.01
        %v5066 = vmul.f32 %v5002, 0.01
        %v5067 = vmul.f32 %v5003, 0.01
        %v5068 = vmul.f32 %v5004, 0.01
        %v5069 = vmul.f32 %v5005, 0.01
        %v5070 = vmul.f32 %v5006, 0.01
        %v5071 = vmul.f32 %v5007, 0.01
        %v5072 = vmul.f32 %v5008, 0.01
        %v5073 = vmul.f32 %v5009, 0.01
        %v5074 = vmul.f32 %v5010, 0.01
        %v5075 = vmul.f32 %v5011, 0.01
        %v5076 = vmul.f32 %v5012, 0.01
        %v5077 = vmul.f32 %v5013, 0.01
        %v5078 = vsel %vm5014, %v4982, %v5046
        %v5079 = vsel %vm5015, %v4983, %v5047
        %v5080 = vsel %vm5016, %v4984, %v5048
        %v5081 = vsel %vm5017, %v4985, %v5049
        %v5082 = vsel %vm5018, %v4986, %v5050
        %v5083 = vsel %vm5019, %v4987, %v5051
        %v5084 = vsel %vm5020, %v4988, %v5052
        %v5085 = vsel %vm5021, %v4989, %v5053
        %v5086 = vsel %vm5022, %v4990, %v5054
        %v5087 = vsel %vm5023, %v4991, %v5055
        %v5088 = vsel %vm5024, %v4992, %v5056
        %v5089 = vsel %vm5025, %v4993, %v5057
        %v5090 = vsel %vm5026, %v4994, %v5058
        %v5091 = vsel %vm5027, %v4995, %v5059
        %v5092 = vsel %vm5028, %v4996, %v5060
        %v5093 = vsel %vm5029, %v4997, %v5061
        %v5094 = vsel %vm5030, %v4998, %v5062
        %v5095 = vsel %vm5031, %v4999, %v5063
        %v5096 = vsel %vm5032, %v5000, %v5064
        %v5097 = vsel %vm5033, %v5001, %v5065
        %v5098 = vsel %vm5034, %v5002, %v5066
        %v5099 = vsel %vm5035, %v5003, %v5067
        %v5100 = vsel %vm5036, %v5004, %v5068
        %v5101 = vsel %vm5037, %v5005, %v5069
        %v5102 = vsel %vm5038, %v5006, %v5070
        %v5103 = vsel %vm5039, %v5007, %v5071
        %v5104 = vsel %vm5040, %v5008, %v5072
        %v5105 = vsel %vm5041, %v5009, %v5073
        %v5106 = vsel %vm5042, %v5010, %v5074
        %v5107 = vsel %vm5043, %v5011, %v5075
        %v5108 = vsel %vm5044, %v5012, %v5076
        %v5109 = vsel %vm5045, %v5013, %v5077
        %v5110 = vpack.c.bf16 %v5078, %v5078
        %v5111 = vpack.c.bf16 %v5079, %v5079
        %v5112 = vpack.c.bf16 %v5080, %v5080
        %v5113 = vpack.c.bf16 %v5081, %v5081
        %v5114 = vpack.c.bf16 %v5082, %v5082
        %v5115 = vpack.c.bf16 %v5083, %v5083
        %v5116 = vpack.c.bf16 %v5084, %v5084
        %v5117 = vpack.c.bf16 %v5085, %v5085
        %v5118 = vpack.c.bf16 %v5086, %v5086
        %v5119 = vpack.c.bf16 %v5087, %v5087
        %v5120 = vpack.c.bf16 %v5088, %v5088
        %v5121 = vpack.c.bf16 %v5089, %v5089
        %v5122 = vpack.c.bf16 %v5090, %v5090
        %v5123 = vpack.c.bf16 %v5091, %v5091
        %v5124 = vpack.c.bf16 %v5092, %v5092
        %v5125 = vpack.c.bf16 %v5093, %v5093
        %v5126 = vpack.c.bf16 %v5094, %v5094
        %v5127 = vpack.c.bf16 %v5095, %v5095
        %v5128 = vpack.c.bf16 %v5096, %v5096
        %v5129 = vpack.c.bf16 %v5097, %v5097
        %v5130 = vpack.c.bf16 %v5098, %v5098
        %v5131 = vpack.c.bf16 %v5099, %v5099
        %v5132 = vpack.c.bf16 %v5100, %v5100
        %v5133 = vpack.c.bf16 %v5101, %v5101
        %v5134 = vpack.c.bf16 %v5102, %v5102
        %v5135 = vpack.c.bf16 %v5103, %v5103
        %v5136 = vpack.c.bf16 %v5104, %v5104
        %v5137 = vpack.c.bf16 %v5105, %v5105
        %v5138 = vpack.c.bf16 %v5106, %v5106
        %v5139 = vpack.c.bf16 %v5107, %v5107
        %v5140 = vpack.c.bf16 %v5108, %v5108
        %v5141 = vpack.c.bf16 %v5109, %v5109
        %v5158 = vunpack.c.l.b16 %v5110
        %v5159 = vunpack.c.l.b16 %v5112
        %v5160 = vunpack.c.l.b16 %v5114
        %v5161 = vunpack.c.l.b16 %v5116
        %v5162 = vunpack.c.l.b16 %v5118
        %v5163 = vunpack.c.l.b16 %v5120
        %v5164 = vunpack.c.l.b16 %v5122
        %v5165 = vunpack.c.l.b16 %v5124
        %v5166 = vunpack.c.l.b16 %v5126
        %v5167 = vunpack.c.l.b16 %v5128
        %v5168 = vunpack.c.l.b16 %v5130
        %v5169 = vunpack.c.l.b16 %v5132
        %v5170 = vunpack.c.l.b16 %v5134
        %v5171 = vunpack.c.l.b16 %v5136
        %v5172 = vunpack.c.l.b16 %v5138
        %v5173 = vunpack.c.l.b16 %v5140
        %v5174 = vpack.c.b16 %v5158, %v5158
        %v5175 = vpack.c.b16 %v5159, %v5159
        %v5176 = vpack.c.b16 %v5160, %v5160
        %v5177 = vpack.c.b16 %v5161, %v5161
        %v5178 = vpack.c.b16 %v5162, %v5162
        %v5179 = vpack.c.b16 %v5163, %v5163
        %v5180 = vpack.c.b16 %v5164, %v5164
        %v5181 = vpack.c.b16 %v5165, %v5165
        %v5182 = vpack.c.b16 %v5166, %v5166
        %v5183 = vpack.c.b16 %v5167, %v5167
        %v5184 = vpack.c.b16 %v5168, %v5168
        %v5185 = vpack.c.b16 %v5169, %v5169
        %v5186 = vpack.c.b16 %v5170, %v5170
        %v5187 = vpack.c.b16 %v5171, %v5171
        %v5188 = vpack.c.b16 %v5172, %v5172
        %v5189 = vpack.c.b16 %v5173, %v5173
        %v5190 = vunpack.c.l.b16 %v5174
        %v5191 = vunpack.c.l.b16 %v5175
        %v5192 = vunpack.c.l.b16 %v5176
        %v5193 = vunpack.c.l.b16 %v5177
        %v5194 = vunpack.c.l.b16 %v5178
        %v5195 = vunpack.c.l.b16 %v5179
        %v5196 = vunpack.c.l.b16 %v5180
        %v5197 = vunpack.c.l.b16 %v5181
        %v5198 = vunpack.c.l.b16 %v5182
        %v5199 = vunpack.c.l.b16 %v5183
        %v5200 = vunpack.c.l.b16 %v5184
        %v5201 = vunpack.c.l.b16 %v5185
        %v5202 = vunpack.c.l.b16 %v5186
        %v5203 = vunpack.c.l.b16 %v5187
        %v5204 = vunpack.c.l.b16 %v5188
        %v5205 = vunpack.c.l.b16 %v5189
        %v5206 = vrot.slane %v5191, 7
        %vm5207 = vcmask 1041409
        %v5208 = vsel %vm5207, %v5206, %v5190
        %v5209 = vrot.slane %v5192, 6
        %vm5210 = vcmask 1042434
        %v5211 = vsel %vm5210, %v5209, %v5208
        %v5212 = vrot.slane %v5193, 5
        %vm5213 = vcmask 1043459
        %v5214 = vsel %vm5213, %v5212, %v5211
        %v5215 = vrot.slane %v5194, 4
        %vm5216 = vcmask 1044484
        %v5217 = vsel %vm5216, %v5215, %v5214
        %v5218 = vrot.slane %v5195, 3
        %vm5219 = vcmask 1045509
        %v5220 = vsel %vm5219, %v5218, %v5217
        %v5221 = vrot.slane %v5196, 2
        %vm5222 = vcmask 1046534
        %v5223 = vsel %vm5222, %v5221, %v5220
        %v5224 = vrot.slane %v5197, 1
        %vm5225 = vcmask 1047559
        %v5226 = vsel %vm5225, %v5224, %v5223
        %v5227 = vrot.slane %v5199, 7
        %v5228 = vsel %vm5207, %v5227, %v5198
        %v5229 = vrot.slane %v5200, 6
        %v5230 = vsel %vm5210, %v5229, %v5228
        %v5231 = vrot.slane %v5201, 5
        %v5232 = vsel %vm5213, %v5231, %v5230
        %v5233 = vrot.slane %v5202, 4
        %v5234 = vsel %vm5216, %v5233, %v5232
        %v5235 = vrot.slane %v5203, 3
        %v5236 = vsel %vm5219, %v5235, %v5234
        %v5237 = vrot.slane %v5204, 2
        %v5238 = vsel %vm5222, %v5237, %v5236
        %v5239 = vrot.slane %v5205, 1
        %v5240 = vsel %vm5225, %v5239, %v5238
        %v5241 = vpack.c.b16 %v5240, %v5226
        %v5242 = vrot.slane %v5190, 1
        %v5243 = vsel %vm5207, %v5191, %v5242
        %v5244 = vrot.slane %v5192, 7
        %v5245 = vsel %vm5210, %v5244, %v5243
        %v5246 = vrot.slane %v5193, 6
        %v5247 = vsel %vm5213, %v5246, %v5245
        %v5248 = vrot.slane %v5194, 5
        %v5249 = vsel %vm5216, %v5248, %v5247
        %v5250 = vrot.slane %v5195, 4
        %v5251 = vsel %vm5219, %v5250, %v5249
        %v5252 = vrot.slane %v5196, 3
        %v5253 = vsel %vm5222, %v5252, %v5251
        %v5254 = vrot.slane %v5197, 2
        %v5255 = vsel %vm5225, %v5254, %v5253
        %v5256 = vrot.slane %v5198, 1
        %v5257 = vsel %vm5207, %v5199, %v5256
        %v5258 = vrot.slane %v5200, 7
        %v5259 = vsel %vm5210, %v5258, %v5257
        %v5260 = vrot.slane %v5201, 6
        %v5261 = vsel %vm5213, %v5260, %v5259
        %v5262 = vrot.slane %v5202, 5
        %v5263 = vsel %vm5216, %v5262, %v5261
        %v5264 = vrot.slane %v5203, 4
        %v5265 = vsel %vm5219, %v5264, %v5263
        %v5266 = vrot.slane %v5204, 3
        %v5267 = vsel %vm5222, %v5266, %v5265
        %v5268 = vrot.slane %v5205, 2
        %v5269 = vsel %vm5225, %v5268, %v5267
        %v5270 = vpack.c.b16 %v5269, %v5255
        %5271 = vrot.lane.b32.xlu0 %v5270, 8
        %v5272 = vpop.permute.xlu0 %5271
        %v5273 = vrot.slane %v5190, 2
        %v5274 = vrot.slane %v5191, 1
        %v5275 = vsel %vm5207, %v5274, %v5273
        %v5276 = vsel %vm5210, %v5192, %v5275
        %v5277 = vrot.slane %v5193, 7
        %v5278 = vsel %vm5213, %v5277, %v5276
        %v5279 = vrot.slane %v5194, 6
        %v5280 = vsel %vm5216, %v5279, %v5278
        %v5281 = vrot.slane %v5195, 5
        %v5282 = vsel %vm5219, %v5281, %v5280
        %v5283 = vrot.slane %v5196, 4
        %v5284 = vsel %vm5222, %v5283, %v5282
        %v5285 = vrot.slane %v5197, 3
        %v5286 = vsel %vm5225, %v5285, %v5284
        %v5287 = vrot.slane %v5198, 2
        %v5288 = vrot.slane %v5199, 1
        %v5289 = vsel %vm5207, %v5288, %v5287
        %v5290 = vsel %vm5210, %v5200, %v5289
        %v5291 = vrot.slane %v5201, 7
        %v5292 = vsel %vm5213, %v5291, %v5290
        %v5293 = vrot.slane %v5202, 6
        %v5294 = vsel %vm5216, %v5293, %v5292
        %v5295 = vrot.slane %v5203, 5
        %v5296 = vsel %vm5219, %v5295, %v5294
        %v5297 = vrot.slane %v5204, 4
        %v5298 = vsel %vm5222, %v5297, %v5296
        %v5299 = vrot.slane %v5205, 3
        %v5300 = vsel %vm5225, %v5299, %v5298
        %v5301 = vpack.c.b16 %v5300, %v5286
        %5302 = vrot.lane.b32.xlu0 %v5301, 16
        %v5303 = vpop.permute.xlu0 %5302
        %v5304 = vrot.slane %v5190, 3
        %v5305 = vrot.slane %v5191, 2
        %v5306 = vsel %vm5207, %v5305, %v5304
        %v5307 = vrot.slane %v5192, 1
        %v5308 = vsel %vm5210, %v5307, %v5306
        %v5309 = vsel %vm5213, %v5193, %v5308
        %v5310 = vrot.slane %v5194, 7
        %v5311 = vsel %vm5216, %v5310, %v5309
        %v5312 = vrot.slane %v5195, 6
        %v5313 = vsel %vm5219, %v5312, %v5311
        %v5314 = vrot.slane %v5196, 5
        %v5315 = vsel %vm5222, %v5314, %v5313
        %v5316 = vrot.slane %v5197, 4
        %v5317 = vsel %vm5225, %v5316, %v5315
        %v5318 = vrot.slane %v5198, 3
        %v5319 = vrot.slane %v5199, 2
        %v5320 = vsel %vm5207, %v5319, %v5318
        %v5321 = vrot.slane %v5200, 1
        %v5322 = vsel %vm5210, %v5321, %v5320
        %v5323 = vsel %vm5213, %v5201, %v5322
        %v5324 = vrot.slane %v5202, 7
        %v5325 = vsel %vm5216, %v5324, %v5323
        %v5326 = vrot.slane %v5203, 6
        %v5327 = vsel %vm5219, %v5326, %v5325
        %v5328 = vrot.slane %v5204, 5
        %v5329 = vsel %vm5222, %v5328, %v5327
        %v5330 = vrot.slane %v5205, 4
        %v5331 = vsel %vm5225, %v5330, %v5329
        %v5332 = vpack.c.b16 %v5331, %v5317
        %5333 = vrot.lane.b32.xlu0 %v5332, 24
        %v5334 = vpop.permute.xlu0 %5333
        %v5335 = vrot.slane %v5190, 4
        %v5336 = vrot.slane %v5191, 3
        %v5337 = vsel %vm5207, %v5336, %v5335
        %v5338 = vrot.slane %v5192, 2
        %v5339 = vsel %vm5210, %v5338, %v5337
        %v5340 = vrot.slane %v5193, 1
        %v5341 = vsel %vm5213, %v5340, %v5339
        %v5342 = vsel %vm5216, %v5194, %v5341
        %v5343 = vrot.slane %v5195, 7
        %v5344 = vsel %vm5219, %v5343, %v5342
        %v5345 = vrot.slane %v5196, 6
        %v5346 = vsel %vm5222, %v5345, %v5344
        %v5347 = vrot.slane %v5197, 5
        %v5348 = vsel %vm5225, %v5347, %v5346
        %v5349 = vrot.slane %v5198, 4
        %v5350 = vrot.slane %v5199, 3
        %v5351 = vsel %vm5207, %v5350, %v5349
        %v5352 = vrot.slane %v5200, 2
        %v5353 = vsel %vm5210, %v5352, %v5351
        %v5354 = vrot.slane %v5201, 1
        %v5355 = vsel %vm5213, %v5354, %v5353
        %v5356 = vsel %vm5216, %v5202, %v5355
        %v5357 = vrot.slane %v5203, 7
        %v5358 = vsel %vm5219, %v5357, %v5356
        %v5359 = vrot.slane %v5204, 6
        %v5360 = vsel %vm5222, %v5359, %v5358
        %v5361 = vrot.slane %v5205, 5
        %v5362 = vsel %vm5225, %v5361, %v5360
        %v5363 = vpack.c.b16 %v5362, %v5348
        %5364 = vrot.lane.b32.xlu0 %v5363, 32
        %v5365 = vpop.permute.xlu0 %5364
        %v5366 = vrot.slane %v5190, 5
        %v5367 = vrot.slane %v5191, 4
        %v5368 = vsel %vm5207, %v5367, %v5366
        %v5369 = vrot.slane %v5192, 3
        %v5370 = vsel %vm5210, %v5369, %v5368
        %v5371 = vrot.slane %v5193, 2
        %v5372 = vsel %vm5213, %v5371, %v5370
        %v5373 = vrot.slane %v5194, 1
        %v5374 = vsel %vm5216, %v5373, %v5372
        %v5375 = vsel %vm5219, %v5195, %v5374
        %v5376 = vrot.slane %v5196, 7
        %v5377 = vsel %vm5222, %v5376, %v5375
        %v5378 = vrot.slane %v5197, 6
        %v5379 = vsel %vm5225, %v5378, %v5377
        %v5380 = vrot.slane %v5198, 5
        %v5381 = vrot.slane %v5199, 4
        %v5382 = vsel %vm5207, %v5381, %v5380
        %v5383 = vrot.slane %v5200, 3
        %v5384 = vsel %vm5210, %v5383, %v5382
        %v5385 = vrot.slane %v5201, 2
        %v5386 = vsel %vm5213, %v5385, %v5384
        %v5387 = vrot.slane %v5202, 1
        %v5388 = vsel %vm5216, %v5387, %v5386
        %v5389 = vsel %vm5219, %v5203, %v5388
        %v5390 = vrot.slane %v5204, 7
        %v5391 = vsel %vm5222, %v5390, %v5389
        %v5392 = vrot.slane %v5205, 6
        %v5393 = vsel %vm5225, %v5392, %v5391
        %v5394 = vpack.c.b16 %v5393, %v5379
        %5395 = vrot.lane.b32.xlu0 %v5394, 40
        %v5396 = vpop.permute.xlu0 %5395
        %v5397 = vrot.slane %v5190, 6
        %v5398 = vrot.slane %v5191, 5
        %v5399 = vsel %vm5207, %v5398, %v5397
        %v5400 = vrot.slane %v5192, 4
        %v5401 = vsel %vm5210, %v5400, %v5399
        %v5402 = vrot.slane %v5193, 3
        %v5403 = vsel %vm5213, %v5402, %v5401
        %v5404 = vrot.slane %v5194, 2
        %v5405 = vsel %vm5216, %v5404, %v5403
        %v5406 = vrot.slane %v5195, 1
        %v5407 = vsel %vm5219, %v5406, %v5405
        %v5408 = vsel %vm5222, %v5196, %v5407
        %v5409 = vrot.slane %v5197, 7
        %v5410 = vsel %vm5225, %v5409, %v5408
        %v5411 = vrot.slane %v5198, 6
        %v5412 = vrot.slane %v5199, 5
        %v5413 = vsel %vm5207, %v5412, %v5411
        %v5414 = vrot.slane %v5200, 4
        %v5415 = vsel %vm5210, %v5414, %v5413
        %v5416 = vrot.slane %v5201, 3
        %v5417 = vsel %vm5213, %v5416, %v5415
        %v5418 = vrot.slane %v5202, 2
        %v5419 = vsel %vm5216, %v5418, %v5417
        %v5420 = vrot.slane %v5203, 1
        %v5421 = vsel %vm5219, %v5420, %v5419
        %v5422 = vsel %vm5222, %v5204, %v5421
        %v5423 = vrot.slane %v5205, 7
        %v5424 = vsel %vm5225, %v5423, %v5422
        %v5425 = vpack.c.b16 %v5424, %v5410
        %5426 = vrot.lane.b32.xlu0 %v5425, 48
        %v5427 = vpop.permute.xlu0 %5426
        %v5428 = vrot.slane %v5190, 7
        %v5429 = vrot.slane %v5191, 6
        %v5430 = vsel %vm5207, %v5429, %v5428
        %v5431 = vrot.slane %v5192, 5
        %v5432 = vsel %vm5210, %v5431, %v5430
        %v5433 = vrot.slane %v5193, 4
        %v5434 = vsel %vm5213, %v5433, %v5432
        %v5435 = vrot.slane %v5194, 3
        %v5436 = vsel %vm5216, %v5435, %v5434
        %v5437 = vrot.slane %v5195, 2
        %v5438 = vsel %vm5219, %v5437, %v5436
        %v5439 = vrot.slane %v5196, 1
        %v5440 = vsel %vm5222, %v5439, %v5438
        %v5441 = vsel %vm5225, %v5197, %v5440
        %v5442 = vrot.slane %v5198, 7
        %v5443 = vrot.slane %v5199, 6
        %v5444 = vsel %vm5207, %v5443, %v5442
        %v5445 = vrot.slane %v5200, 5
        %v5446 = vsel %vm5210, %v5445, %v5444
        %v5447 = vrot.slane %v5201, 4
        %v5448 = vsel %vm5213, %v5447, %v5446
        %v5449 = vrot.slane %v5202, 3
        %v5450 = vsel %vm5216, %v5449, %v5448
        %v5451 = vrot.slane %v5203, 2
        %v5452 = vsel %vm5219, %v5451, %v5450
        %v5453 = vrot.slane %v5204, 1
        %v5454 = vsel %vm5222, %v5453, %v5452
        %v5455 = vsel %vm5225, %v5205, %v5454
        %v5456 = vpack.c.b16 %v5455, %v5441
        %5457 = vrot.lane.b32.xlu0 %v5456, 56
        %v5458 = vpop.permute.xlu0 %5457
        %v5475 = vunpack.c.l.b16 %v5111
        %v5476 = vunpack.c.l.b16 %v5113
        %v5477 = vunpack.c.l.b16 %v5115
        %v5478 = vunpack.c.l.b16 %v5117
        %v5479 = vunpack.c.l.b16 %v5119
        %v5480 = vunpack.c.l.b16 %v5121
        %v5481 = vunpack.c.l.b16 %v5123
        %v5482 = vunpack.c.l.b16 %v5125
        %v5483 = vunpack.c.l.b16 %v5127
        %v5484 = vunpack.c.l.b16 %v5129
        %v5485 = vunpack.c.l.b16 %v5131
        %v5486 = vunpack.c.l.b16 %v5133
        %v5487 = vunpack.c.l.b16 %v5135
        %v5488 = vunpack.c.l.b16 %v5137
        %v5489 = vunpack.c.l.b16 %v5139
        %v5490 = vunpack.c.l.b16 %v5141
        %v5491 = vpack.c.b16 %v5475, %v5475
        %v5492 = vpack.c.b16 %v5476, %v5476
        %v5493 = vpack.c.b16 %v5477, %v5477
        %v5494 = vpack.c.b16 %v5478, %v5478
        %v5495 = vpack.c.b16 %v5479, %v5479
        %v5496 = vpack.c.b16 %v5480, %v5480
        %v5497 = vpack.c.b16 %v5481, %v5481
        %v5498 = vpack.c.b16 %v5482, %v5482
        %v5499 = vpack.c.b16 %v5483, %v5483
        %v5500 = vpack.c.b16 %v5484, %v5484
        %v5501 = vpack.c.b16 %v5485, %v5485
        %v5502 = vpack.c.b16 %v5486, %v5486
        %v5503 = vpack.c.b16 %v5487, %v5487
        %v5504 = vpack.c.b16 %v5488, %v5488
        %v5505 = vpack.c.b16 %v5489, %v5489
        %v5506 = vpack.c.b16 %v5490, %v5490
        %v5507 = vunpack.c.l.b16 %v5491
        %v5508 = vunpack.c.l.b16 %v5492
        %v5509 = vunpack.c.l.b16 %v5493
        %v5510 = vunpack.c.l.b16 %v5494
        %v5511 = vunpack.c.l.b16 %v5495
        %v5512 = vunpack.c.l.b16 %v5496
        %v5513 = vunpack.c.l.b16 %v5497
        %v5514 = vunpack.c.l.b16 %v5498
        %v5515 = vunpack.c.l.b16 %v5499
        %v5516 = vunpack.c.l.b16 %v5500
        %v5517 = vunpack.c.l.b16 %v5501
        %v5518 = vunpack.c.l.b16 %v5502
        %v5519 = vunpack.c.l.b16 %v5503
        %v5520 = vunpack.c.l.b16 %v5504
        %v5521 = vunpack.c.l.b16 %v5505
        %v5522 = vunpack.c.l.b16 %v5506
        %v5523 = vrot.slane %v5508, 7
        %v5524 = vsel %vm5207, %v5523, %v5507
        %v5525 = vrot.slane %v5509, 6
        %v5526 = vsel %vm5210, %v5525, %v5524
        %v5527 = vrot.slane %v5510, 5
        %v5528 = vsel %vm5213, %v5527, %v5526
        %v5529 = vrot.slane %v5511, 4
        %v5530 = vsel %vm5216, %v5529, %v5528
        %v5531 = vrot.slane %v5512, 3
        %v5532 = vsel %vm5219, %v5531, %v5530
        %v5533 = vrot.slane %v5513, 2
        %v5534 = vsel %vm5222, %v5533, %v5532
        %v5535 = vrot.slane %v5514, 1
        %v5536 = vsel %vm5225, %v5535, %v5534
        %v5537 = vrot.slane %v5516, 7
        %v5538 = vsel %vm5207, %v5537, %v5515
        %v5539 = vrot.slane %v5517, 6
        %v5540 = vsel %vm5210, %v5539, %v5538
        %v5541 = vrot.slane %v5518, 5
        %v5542 = vsel %vm5213, %v5541, %v5540
        %v5543 = vrot.slane %v5519, 4
        %v5544 = vsel %vm5216, %v5543, %v5542
        %v5545 = vrot.slane %v5520, 3
        %v5546 = vsel %vm5219, %v5545, %v5544
        %v5547 = vrot.slane %v5521, 2
        %v5548 = vsel %vm5222, %v5547, %v5546
        %v5549 = vrot.slane %v5522, 1
        %v5550 = vsel %vm5225, %v5549, %v5548
        %v5551 = vpack.c.b16 %v5550, %v5536
        %5552 = vrot.lane.b32.xlu0 %v5551, 64
        %v5553 = vpop.permute.xlu0 %5552
        %v5554 = vrot.slane %v5507, 1
        %v5555 = vsel %vm5207, %v5508, %v5554
        %v5556 = vrot.slane %v5509, 7
        %v5557 = vsel %vm5210, %v5556, %v5555
        %v5558 = vrot.slane %v5510, 6
        %v5559 = vsel %vm5213, %v5558, %v5557
        %v5560 = vrot.slane %v5511, 5
        %v5561 = vsel %vm5216, %v5560, %v5559
        %v5562 = vrot.slane %v5512, 4
        %v5563 = vsel %vm5219, %v5562, %v5561
        %v5564 = vrot.slane %v5513, 3
        %v5565 = vsel %vm5222, %v5564, %v5563
        %v5566 = vrot.slane %v5514, 2
        %v5567 = vsel %vm5225, %v5566, %v5565
        %v5568 = vrot.slane %v5515, 1
        %v5569 = vsel %vm5207, %v5516, %v5568
        %v5570 = vrot.slane %v5517, 7
        %v5571 = vsel %vm5210, %v5570, %v5569
        %v5572 = vrot.slane %v5518, 6
        %v5573 = vsel %vm5213, %v5572, %v5571
        %v5574 = vrot.slane %v5519, 5
        %v5575 = vsel %vm5216, %v5574, %v5573
        %v5576 = vrot.slane %v5520, 4
        %v5577 = vsel %vm5219, %v5576, %v5575
        %v5578 = vrot.slane %v5521, 3
        %v5579 = vsel %vm5222, %v5578, %v5577
        %v5580 = vrot.slane %v5522, 2
        %v5581 = vsel %vm5225, %v5580, %v5579
        %v5582 = vpack.c.b16 %v5581, %v5567
        %5583 = vrot.lane.b32.xlu0 %v5582, 72
        %v5584 = vpop.permute.xlu0 %5583
        %v5585 = vrot.slane %v5507, 2
        %v5586 = vrot.slane %v5508, 1
        %v5587 = vsel %vm5207, %v5586, %v5585
        %v5588 = vsel %vm5210, %v5509, %v5587
        %v5589 = vrot.slane %v5510, 7
        %v5590 = vsel %vm5213, %v5589, %v5588
        %v5591 = vrot.slane %v5511, 6
        %v5592 = vsel %vm5216, %v5591, %v5590
        %v5593 = vrot.slane %v5512, 5
        %v5594 = vsel %vm5219, %v5593, %v5592
        %v5595 = vrot.slane %v5513, 4
        %v5596 = vsel %vm5222, %v5595, %v5594
        %v5597 = vrot.slane %v5514, 3
        %v5598 = vsel %vm5225, %v5597, %v5596
        %v5599 = vrot.slane %v5515, 2
        %v5600 = vrot.slane %v5516, 1
        %v5601 = vsel %vm5207, %v5600, %v5599
        %v5602 = vsel %vm5210, %v5517, %v5601
        %v5603 = vrot.slane %v5518, 7
        %v5604 = vsel %vm5213, %v5603, %v5602
        %v5605 = vrot.slane %v5519, 6
        %v5606 = vsel %vm5216, %v5605, %v5604
        %v5607 = vrot.slane %v5520, 5
        %v5608 = vsel %vm5219, %v5607, %v5606
        %v5609 = vrot.slane %v5521, 4
        %v5610 = vsel %vm5222, %v5609, %v5608
        %v5611 = vrot.slane %v5522, 3
        %v5612 = vsel %vm5225, %v5611, %v5610
        %v5613 = vpack.c.b16 %v5612, %v5598
        %5614 = vrot.lane.b32.xlu0 %v5613, 80
        %v5615 = vpop.permute.xlu0 %5614
        %v5616 = vrot.slane %v5507, 3
        %v5617 = vrot.slane %v5508, 2
        %v5618 = vsel %vm5207, %v5617, %v5616
        %v5619 = vrot.slane %v5509, 1
        %v5620 = vsel %vm5210, %v5619, %v5618
        %v5621 = vsel %vm5213, %v5510, %v5620
        %v5622 = vrot.slane %v5511, 7
        %v5623 = vsel %vm5216, %v5622, %v5621
        %v5624 = vrot.slane %v5512, 6
        %v5625 = vsel %vm5219, %v5624, %v5623
        %v5626 = vrot.slane %v5513, 5
        %v5627 = vsel %vm5222, %v5626, %v5625
        %v5628 = vrot.slane %v5514, 4
        %v5629 = vsel %vm5225, %v5628, %v5627
        %v5630 = vrot.slane %v5515, 3
        %v5631 = vrot.slane %v5516, 2
        %v5632 = vsel %vm5207, %v5631, %v5630
        %v5633 = vrot.slane %v5517, 1
        %v5634 = vsel %vm5210, %v5633, %v5632
        %v5635 = vsel %vm5213, %v5518, %v5634
        %v5636 = vrot.slane %v5519, 7
        %v5637 = vsel %vm5216, %v5636, %v5635
        %v5638 = vrot.slane %v5520, 6
        %v5639 = vsel %vm5219, %v5638, %v5637
        %v5640 = vrot.slane %v5521, 5
        %v5641 = vsel %vm5222, %v5640, %v5639
        %v5642 = vrot.slane %v5522, 4
        %v5643 = vsel %vm5225, %v5642, %v5641
        %v5644 = vpack.c.b16 %v5643, %v5629
        %5645 = vrot.lane.b32.xlu0 %v5644, 88
        %v5646 = vpop.permute.xlu0 %5645
        %v5647 = vrot.slane %v5507, 4
        %v5648 = vrot.slane %v5508, 3
        %v5649 = vsel %vm5207, %v5648, %v5647
        %v5650 = vrot.slane %v5509, 2
        %v5651 = vsel %vm5210, %v5650, %v5649
        %v5652 = vrot.slane %v5510, 1
        %v5653 = vsel %vm5213, %v5652, %v5651
        %v5654 = vsel %vm5216, %v5511, %v5653
        %v5655 = vrot.slane %v5512, 7
        %v5656 = vsel %vm5219, %v5655, %v5654
        %v5657 = vrot.slane %v5513, 6
        %v5658 = vsel %vm5222, %v5657, %v5656
        %v5659 = vrot.slane %v5514, 5
        %v5660 = vsel %vm5225, %v5659, %v5658
        %v5661 = vrot.slane %v5515, 4
        %v5662 = vrot.slane %v5516, 3
        %v5663 = vsel %vm5207, %v5662, %v5661
        %v5664 = vrot.slane %v5517, 2
        %v5665 = vsel %vm5210, %v5664, %v5663
        %v5666 = vrot.slane %v5518, 1
        %v5667 = vsel %vm5213, %v5666, %v5665
        %v5668 = vsel %vm5216, %v5519, %v5667
        %v5669 = vrot.slane %v5520, 7
        %v5670 = vsel %vm5219, %v5669, %v5668
        %v5671 = vrot.slane %v5521, 6
        %v5672 = vsel %vm5222, %v5671, %v5670
        %v5673 = vrot.slane %v5522, 5
        %v5674 = vsel %vm5225, %v5673, %v5672
        %v5675 = vpack.c.b16 %v5674, %v5660
        %5676 = vrot.lane.b32.xlu0 %v5675, 96
        %v5677 = vpop.permute.xlu0 %5676
        %v5678 = vrot.slane %v5507, 5
        %v5679 = vrot.slane %v5508, 4
        %v5680 = vsel %vm5207, %v5679, %v5678
        %v5681 = vrot.slane %v5509, 3
        %v5682 = vsel %vm5210, %v5681, %v5680
        %v5683 = vrot.slane %v5510, 2
        %v5684 = vsel %vm5213, %v5683, %v5682
        %v5685 = vrot.slane %v5511, 1
        %v5686 = vsel %vm5216, %v5685, %v5684
        %v5687 = vsel %vm5219, %v5512, %v5686
        %v5688 = vrot.slane %v5513, 7
        %v5689 = vsel %vm5222, %v5688, %v5687
        %v5690 = vrot.slane %v5514, 6
        %v5691 = vsel %vm5225, %v5690, %v5689
        %v5692 = vrot.slane %v5515, 5
        %v5693 = vrot.slane %v5516, 4
        %v5694 = vsel %vm5207, %v5693, %v5692
        %v5695 = vrot.slane %v5517, 3
        %v5696 = vsel %vm5210, %v5695, %v5694
        %v5697 = vrot.slane %v5518, 2
        %v5698 = vsel %vm5213, %v5697, %v5696
        %v5699 = vrot.slane %v5519, 1
        %v5700 = vsel %vm5216, %v5699, %v5698
        %v5701 = vsel %vm5219, %v5520, %v5700
        %v5702 = vrot.slane %v5521, 7
        %v5703 = vsel %vm5222, %v5702, %v5701
        %v5704 = vrot.slane %v5522, 6
        %v5705 = vsel %vm5225, %v5704, %v5703
        %v5706 = vpack.c.b16 %v5705, %v5691
        %5707 = vrot.lane.b32.xlu0 %v5706, 104
        %v5708 = vpop.permute.xlu0 %5707
        %v5709 = vrot.slane %v5507, 6
        %v5710 = vrot.slane %v5508, 5
        %v5711 = vsel %vm5207, %v5710, %v5709
        %v5712 = vrot.slane %v5509, 4
        %v5713 = vsel %vm5210, %v5712, %v5711
        %v5714 = vrot.slane %v5510, 3
        %v5715 = vsel %vm5213, %v5714, %v5713
        %v5716 = vrot.slane %v5511, 2
        %v5717 = vsel %vm5216, %v5716, %v5715
        %v5718 = vrot.slane %v5512, 1
        %v5719 = vsel %vm5219, %v5718, %v5717
        %v5720 = vsel %vm5222, %v5513, %v5719
        %v5721 = vrot.slane %v5514, 7
        %v5722 = vsel %vm5225, %v5721, %v5720
        %v5723 = vrot.slane %v5515, 6
        %v5724 = vrot.slane %v5516, 5
        %v5725 = vsel %vm5207, %v5724, %v5723
        %v5726 = vrot.slane %v5517, 4
        %v5727 = vsel %vm5210, %v5726, %v5725
        %v5728 = vrot.slane %v5518, 3
        %v5729 = vsel %vm5213, %v5728, %v5727
        %v5730 = vrot.slane %v5519, 2
        %v5731 = vsel %vm5216, %v5730, %v5729
        %v5732 = vrot.slane %v5520, 1
        %v5733 = vsel %vm5219, %v5732, %v5731
        %v5734 = vsel %vm5222, %v5521, %v5733
        %v5735 = vrot.slane %v5522, 7
        %v5736 = vsel %vm5225, %v5735, %v5734
        %v5737 = vpack.c.b16 %v5736, %v5722
        %5738 = vrot.lane.b32.xlu0 %v5737, 112
        %v5739 = vpop.permute.xlu0 %5738
        %v5740 = vrot.slane %v5507, 7
        %v5741 = vrot.slane %v5508, 6
        %v5742 = vsel %vm5207, %v5741, %v5740
        %v5743 = vrot.slane %v5509, 5
        %v5744 = vsel %vm5210, %v5743, %v5742
        %v5745 = vrot.slane %v5510, 4
        %v5746 = vsel %vm5213, %v5745, %v5744
        %v5747 = vrot.slane %v5511, 3
        %v5748 = vsel %vm5216, %v5747, %v5746
        %v5749 = vrot.slane %v5512, 2
        %v5750 = vsel %vm5219, %v5749, %v5748
        %v5751 = vrot.slane %v5513, 1
        %v5752 = vsel %vm5222, %v5751, %v5750
        %v5753 = vsel %vm5225, %v5514, %v5752
        %v5754 = vrot.slane %v5515, 7
        %v5755 = vrot.slane %v5516, 6
        %v5756 = vsel %vm5207, %v5755, %v5754
        %v5757 = vrot.slane %v5517, 5
        %v5758 = vsel %vm5210, %v5757, %v5756
        %v5759 = vrot.slane %v5518, 4
        %v5760 = vsel %vm5213, %v5759, %v5758
        %v5761 = vrot.slane %v5519, 3
        %v5762 = vsel %vm5216, %v5761, %v5760
        %v5763 = vrot.slane %v5520, 2
        %v5764 = vsel %vm5219, %v5763, %v5762
        %v5765 = vrot.slane %v5521, 1
        %v5766 = vsel %vm5222, %v5765, %v5764
        %v5767 = vsel %vm5225, %v5522, %v5766
        %v5768 = vpack.c.b16 %v5767, %v5753
        %5769 = vrot.lane.b32.xlu0 %v5768, 120
        %v5770 = vpop.permute.xlu0 %5769
        %vm5771 = vcmask 64512
        %v5774 = vsel %vm5771, %v5241, %v5272
        %vm5775 = vcmask 130048
        %v5777 = vsel %vm5775, %v5774, %v5303
        %v5779 = vsel %vm4698, %v5777, %v5334
        %vm5780 = vcmask 261120
        %v5782 = vsel %vm5780, %v5779, %v5365
        %vm5783 = vcmask 326656
        %v5785 = vsel %vm5783, %v5782, %v5396
        %v5787 = vsel %vm4747, %v5785, %v5427
        %vm5788 = vcmask 457728
        %v5790 = vsel %vm5788, %v5787, %v5458
        %vm5791 = vcmask 523264
        %v5793 = vsel %vm5791, %v5790, %v5553
        %v5795 = vsel %vm4816, %v5793, %v5584
        %vm5796 = vcmask 654336
        %v5798 = vsel %vm5796, %v5795, %v5615
        %vm5799 = vcmask 719872
        %v5801 = vsel %vm5799, %v5798, %v5646
        %vm5802 = vcmask 785408
        %v5804 = vsel %vm5802, %v5801, %v5677
        %vm5805 = vcmask 850944
        %v5807 = vsel %vm5805, %v5804, %v5708
        %vm5808 = vcmask 916480
        %v5810 = vsel %vm5808, %v5807, %v5739
        %vm5811 = vcmask 982016
        %v5813 = vsel %vm5811, %v5810, %v5770
        %v5815 = vunpack.c.l.b16 %v5813
        %v5816 = vunpack.c.h.b16 %v5813
        %v5817 = vpack.c.b16 %v5815, %v5815
        %v5818 = vpack.c.b16 %v5816, %v5816
        %5821 = vst [vmem:[%s271] sm:$0xf] %v5817
        %5822 = vst [vmem:[%s271 + $0x4] sm:$0xf] %v5818
        %s5823 = sand.u32 %s181, 1
        %s5824 = scalar_lea.sflag [#allocation5], %s5823
        %s5825 = sand.u32 %s181, 1
        %s5826 = smul.addr %s5825, 8
        %s5827 = scalar_lea.vmem [#allocation4], %s5826
        // Predicated region
        $region49: #{tpu_custom_call.1} parent=47 // pred_check
          %p5828 = pneg %p191
        $region50: #{tpu_custom_call.1} parent=47 // pred_check_branch
          %5830 = sbr.rel (%p5828) target = $region52
        $region51: #{tpu_custom_call.1} parent=47 // pred_region
          %5832 = vsyncadd %s5824, 0
          %s5833 = smul.addr %s21, 2
          %s5834 = smul.addr %s5833, 4
          %s5835 = scalar_lea.hbm %s7, %s5834
          %s5836 = sshll.u32 %s5827, 4
          %s5837 = int_to_ptr.vmem [resolvable:$true] %s5836
          %s5838 = sshll.u32 %s5835, 4
          %s5839 = int_to_ptr.hbm [resolvable:$true] %s5838
          %5844 = dma.vmem_to_hbm [thread:$0]  %s5837, 128, %s5839, %s5824, 64, 64, 4
        $region52: #{tpu_custom_call.1} parent=47 // pred_fallthru
          _
      $region48: #{tpu_custom_call.1} parent=5 // pred_fallthru
        _
      %p5845 = scmp.le.s32.totalorder 2, %s16
      // Predicated region
      $region53: #{tpu_custom_call.1} parent=5 // pred_check
        %p5846 = pneg %p5845
      $region54: #{tpu_custom_call.1} parent=5 // pred_check_branch
        %5848 = sbr.rel (%p5846) target = $region56
      $region55: #{tpu_custom_call.1} parent=5 // pred_region
        %s5849 = ssub.s32 %s16, 2
        // Predicated region
        $region57: #{tpu_custom_call.1} parent=55 // pred_check
          %p5850 = pneg %p197
        $region58: #{tpu_custom_call.1} parent=55 // pred_check_branch
          %5852 = sbr.rel (%p5850) target = $region60
        $region59: #{tpu_custom_call.1} parent=55 // pred_region
          %s5853 = sand.u32 %s182, 1
          %s5854 = scalar_lea.sflag [#allocation5], %s5853
          %s5855 = sand.u32 %s182, 1
          %s5856 = smul.addr %s5855, 8
          %s5857 = scalar_lea.vmem [#allocation4], %s5856
          %5859 = dma.done %s5854, 128
        $region60: #{tpu_custom_call.1} parent=55 // pred_fallthru
          _
      $region56: #{tpu_custom_call.1} parent=5 // pred_fallthru
        _
    $region6: #{tpu_custom_call.1} parent=1 // loop_footer
      %s20 = sadd.s32 1, %s16
    $region7: #{tpu_custom_call.1} parent=1 // loop_footer_branch
      %15 = sbr.rel target = $region3
    $region8: #{tpu_custom_call.1} parent=1 // loop_exit
      _
    %5860 = vsyncpa [#allocation5], 1
    %s5861 = scalar_lea.sflag [#allocation5], 1
    %5862 = vsyncpa %s5861, 1

</llo_original>
